<compile_context>
chip_gen: v7x
topology: tpu7x:2x2x1
jax: 0.10.0
libtpu: 0.0.40
codegen_flags: <defaults>
</compile_context>

<pallas_src>
import jax
import jax.numpy as jnp
from jax.experimental import pallas as pl
from jax.experimental.pallas import tpu as pltpu

LEAKY_SLOPE = 0.01  # nn.LeakyReLU default negative_slope


def _leaky(v):
    # valid for 0 <= slope <= 1: max(v, slope*v) == leaky_relu(v)
    return jnp.maximum(v, LEAKY_SLOPE * v)


def _round_up(a, b):
    return ((a + b - 1) // b) * b


def _pick_tm(m):
    """Batch tile: single tile for tiny M; otherwise >=2 blocks (v7x megacore)
    with up to 512 rows per tile, sublane(8)-aligned."""
    if m <= 16:
        return m                      # block == full dim, alignment exempt
    tiles = max(2, -(-m // 512))      # ceil(m/512), but at least 2 blocks
    tm = _round_up(-(-m // tiles), 8)
    return min(tm, 512)


def _fused_dnn_kernel(x_ref, w1_ref, b1_ref, w2_ref, b2_ref,
                      w3_ref, b3_ref, w4_ref, b4_ref, o_ref):
    """Whole 4-layer MLP for one batch tile; weights are VMEM-resident blocks."""
    # Layer 1: (tm, Kp) @ (Kp, 2048) -- x already bf16 + lane-padded in wrapper
    h = jnp.dot(x_ref[...], w1_ref[...], preferred_element_type=jnp.float32)
    h = _leaky(h + b1_ref[...])

    # Layer 2: (tm, 2048) @ (2048, 512)  -- the dominant matmul
    h = jnp.dot(h.astype(jnp.bfloat16), w2_ref[...],
                preferred_element_type=jnp.float32)
    h = _leaky(h + b2_ref[...])

    # Layer 3: (tm, 512) @ (512, 128)
    h = jnp.dot(h.astype(jnp.bfloat16), w3_ref[...],
                preferred_element_type=jnp.float32)
    h = _leaky(h + b3_ref[...])                      # (tm, 128) f32

    # Final Linear(128, 1): VPU multiply + lane reduce, scalar bias from SMEM.
    w4 = w4_ref[...].astype(jnp.float32)             # (1, 128)
    col = jnp.sum(h * w4, axis=-1, keepdims=True) + b4_ref[0]   # (tm, 1)
    # Lane-dense store: transpose the (tm,1) column to a (1,tm) row.
    o_ref[...] = col.T.reshape(o_ref.shape).astype(o_ref.dtype)


def dnn_forward_pallas(x, params):
    """x: (M, n_counters) f32; params: pre-transposed/padded bf16 W, f32 b."""
    (w1, b1), (w2, b2), (w3, b3), (w4, b4) = params
    M, K = x.shape
    K_pad = w1.shape[0]                              # padded contraction dim

    tm = _pick_tm(M)
    num_tiles = pl.cdiv(M, tm)
    M_pad = num_tiles * tm

    # One fused cast+pad in the wrapper: bf16 x, lane-padded K, whole tiles.
    x_pad = jnp.pad(x.astype(jnp.bfloat16), ((0, M_pad - M), (0, K_pad - K)))

    resident = lambda i: (0, 0)                      # grid-invariant blocks

    out = pl.pallas_call(
        _fused_dnn_kernel,
        out_shape=jax.ShapeDtypeStruct((num_tiles, 1, tm), jnp.float32),
        grid_spec=pltpu.PrefetchScalarGridSpec(
            num_scalar_prefetch=0,
            grid=(num_tiles,),
            in_specs=[
                pl.BlockSpec((tm, K_pad), lambda i: (i, 0)),     # x tile (bf16)
                pl.BlockSpec(w1.shape, resident),                # (Kp, 2048) bf16
                pl.BlockSpec(b1.shape, resident),                # (1, 2048) f32
                pl.BlockSpec(w2.shape, resident),                # (2048, 512) bf16
                pl.BlockSpec(b2.shape, resident),                # (1, 512) f32
                pl.BlockSpec(w3.shape, resident),                # (512, 128) bf16
                pl.BlockSpec(b3.shape, resident),                # (1, 128) f32
                pl.BlockSpec(w4.shape, resident),                # (1, 128) bf16
                pl.BlockSpec(memory_space=pltpu.MemorySpace.SMEM),  # b4 scalar
            ],
            # Lane-dense (1,1,tm) output row per grid step.
            out_specs=pl.BlockSpec((1, 1, tm), lambda i: (i, 0, 0)),
        ),
        compiler_params=pltpu.CompilerParams(
            dimension_semantics=("parallel",),       # batch axis -> v7x megacore
            vmem_limit_bytes=32 * 1024 * 1024,
        ),
    )(x_pad, w1, b1, w2, b2, w3, b3, w4, b4)

    # (num_tiles, 1, tm) -> (M, 1), dropping row padding.
    return out.reshape(M_pad)[:M].reshape(M, 1)


dnn_forward = jax.jit(dnn_forward_pallas)


def init_dnn_params(key, n_counters):
    """PyTorch-style nn.Linear init; weights pre-transposed to (in, out),
    layer-1 contraction dim zero-padded to a multiple of 128, cast to bf16
    once here (not in the forward hot path). Biases stay f32."""
    dims = [(n_counters, 2048), (2048, 512), (512, 128), (128, 1)]
    params = []
    for idx, (fan_in, fan_out) in enumerate(dims):
        key, kw, kb = jax.random.split(key, 3)
        bound = 1.0 / (fan_in ** 0.5)
        W = jax.random.uniform(kw, (fan_out, fan_in), jnp.float32, -bound, bound)
        b = jax.random.uniform(kb, (fan_out,), jnp.float32, -bound, bound)
        if idx < 3:
            Wt = W.T                                  # (in, out)
            if idx == 0:
                k_pad = max(128, _round_up(fan_in, 128))
                Wt = jnp.pad(Wt, ((0, k_pad - fan_in), (0, 0)))
            params.append((Wt.astype(jnp.bfloat16), b.reshape(1, -1)))
        else:
            # Final layer kept as a (1, 128) row (VPU reduce) + scalar bias.
            params.append((W.astype(jnp.bfloat16), b))
    return params


def dnn_forward_ref(x, params):
    """Plain-JAX reference mirroring the kernel's bf16-in / f32-accumulate math."""
    (w1, b1), (w2, b2), (w3, b3), (w4, b4) = params
    hp = jax.lax.Precision.HIGHEST
    K = x.shape[1]

    h = x.astype(jnp.bfloat16).astype(jnp.float32)
    h = jnp.dot(h, w1[:K].astype(jnp.float32), precision=hp) + b1
    h = _leaky(h)

    h = h.astype(jnp.bfloat16).astype(jnp.float32)
    h = jnp.dot(h, w2.astype(jnp.float32), precision=hp) + b2
    h = _leaky(h)

    h = h.astype(jnp.bfloat16).astype(jnp.float32)
    h = jnp.dot(h, w3.astype(jnp.float32), precision=hp) + b3
    h = _leaky(h)

    return jnp.dot(h, w4.astype(jnp.float32).T, precision=hp) + b4


if __name__ == "__main__":
    key = jax.random.PRNGKey(0)
    n_counters = 32
    batch = 8

    kx, kp = jax.random.split(key)
    x = jax.random.normal(kx, (batch, n_counters), jnp.float32)
    params = init_dnn_params(kp, n_counters)

    out = dnn_forward(x, params)
    out = jax.block_until_ready(out)

    ref = dnn_forward_ref(x, params)
    assert out.shape == (batch, 1), out.shape
    max_err = float(jnp.max(jnp.abs(out - ref)))
    assert jnp.allclose(out, ref, rtol=1e-3, atol=1e-3), (
        "mismatch vs reference: max abs err = %e" % max_err
    )
    print("KERNEL_OK")
</pallas_src>

<mosaic_0001>
module attributes {stable_mosaic.version = 11 : i64} {
  func.func @_fused_dnn_kernel(%arg0: i32, %arg1: memref<8x128xbf16, #tpu.memory_space<vmem>>, %arg2: memref<128x2048xbf16, #tpu.memory_space<vmem>>, %arg3: memref<1x2048xf32, #tpu.memory_space<vmem>>, %arg4: memref<2048x512xbf16, #tpu.memory_space<vmem>>, %arg5: memref<1x512xf32, #tpu.memory_space<vmem>>, %arg6: memref<512x128xbf16, #tpu.memory_space<vmem>>, %arg7: memref<1x128xf32, #tpu.memory_space<vmem>>, %arg8: memref<1x128xbf16, #tpu.memory_space<vmem>>, %arg9: memref<1xf32, #tpu.memory_space<smem>>, %arg10: memref<1x1x8xf32, #tpu.memory_space<vmem>>) attributes {dimension_semantics = [#tpu.dimension_semantics<parallel>], iteration_bounds = array<i64: 1>, scalar_prefetch = 0 : i64, scratch_operands = 0 : i64, tpu.core_type = #tpu.core_type<tc>, window_params = [{transform_indices = @transform_0, window_bounds = array<i64: 8, 128>}, {pipeline_mode = #tpu.pipeline_mode<synchronous>, transform_indices = @transform_1, window_bounds = array<i64: 128, 2048>}, {pipeline_mode = #tpu.pipeline_mode<synchronous>, transform_indices = @transform_2, window_bounds = array<i64: 1, 2048>}, {pipeline_mode = #tpu.pipeline_mode<synchronous>, transform_indices = @transform_3, window_bounds = array<i64: 2048, 512>}, {pipeline_mode = #tpu.pipeline_mode<synchronous>, transform_indices = @transform_4, window_bounds = array<i64: 1, 512>}, {pipeline_mode = #tpu.pipeline_mode<synchronous>, transform_indices = @transform_5, window_bounds = array<i64: 512, 128>}, {pipeline_mode = #tpu.pipeline_mode<synchronous>, transform_indices = @transform_6, window_bounds = array<i64: 1, 128>}, {pipeline_mode = #tpu.pipeline_mode<synchronous>, transform_indices = @transform_7, window_bounds = array<i64: 1, 128>}, {transform_indices = @transform_8, window_bounds = array<i64: 1>}, {transform_indices = @transform_9, window_bounds = array<i64: 1, 1, 8>}]} {
    %c0 = arith.constant 0 : index
    %c0_0 = arith.constant 0 : index
    %0 = vector.load %arg1[%c0, %c0_0] : memref<8x128xbf16, #tpu.memory_space<vmem>>, vector<8x128xbf16>
    %c0_1 = arith.constant 0 : index
    %c0_2 = arith.constant 0 : index
    %1 = vector.load %arg2[%c0_1, %c0_2] : memref<128x2048xbf16, #tpu.memory_space<vmem>>, vector<128x2048xbf16>
    %cst = arith.constant dense<0.000000e+00> : vector<8x2048xf32>
    %2 = tpu.matmul %0, %1, %cst {dimension_numbers = #tpu.dot_dimension_numbers<[1], [0], [0], [1], [0, 0, 1, 1], [], []>} : vector<8x128xbf16>, vector<128x2048xbf16>, vector<8x2048xf32> -> vector<8x2048xf32>
    %c0_3 = arith.constant 0 : index
    %c0_4 = arith.constant 0 : index
    %3 = vector.load %arg3[%c0_3, %c0_4] : memref<1x2048xf32, #tpu.memory_space<vmem>>, vector<1x2048xf32>
    %4 = vector.broadcast %3 : vector<1x2048xf32> to vector<8x2048xf32>
    %5 = arith.addf %2, %4 : vector<8x2048xf32>
    %cst_5 = arith.constant 0.00999999977 : f32
    %6 = vector.broadcast %cst_5 : f32 to vector<8x2048xf32>
    %7 = arith.mulf %6, %5 : vector<8x2048xf32>
    %8 = arith.maximumf %5, %7 : vector<8x2048xf32>
    %9 = arith.truncf %8 : vector<8x2048xf32> to vector<8x2048xbf16>
    %c0_6 = arith.constant 0 : index
    %c0_7 = arith.constant 0 : index
    %10 = vector.load %arg4[%c0_6, %c0_7] : memref<2048x512xbf16, #tpu.memory_space<vmem>>, vector<2048x512xbf16>
    %cst_8 = arith.constant dense<0.000000e+00> : vector<8x512xf32>
    %11 = tpu.matmul %9, %10, %cst_8 {dimension_numbers = #tpu.dot_dimension_numbers<[1], [0], [0], [1], [0, 0, 1, 1], [], []>} : vector<8x2048xbf16>, vector<2048x512xbf16>, vector<8x512xf32> -> vector<8x512xf32>
    %c0_9 = arith.constant 0 : index
    %c0_10 = arith.constant 0 : index
    %12 = vector.load %arg5[%c0_9, %c0_10] : memref<1x512xf32, #tpu.memory_space<vmem>>, vector<1x512xf32>
    %13 = vector.broadcast %12 : vector<1x512xf32> to vector<8x512xf32>
    %14 = arith.addf %11, %13 : vector<8x512xf32>
    %cst_11 = arith.constant 0.00999999977 : f32
    %15 = vector.broadcast %cst_11 : f32 to vector<8x512xf32>
    %16 = arith.mulf %15, %14 : vector<8x512xf32>
    %17 = arith.maximumf %14, %16 : vector<8x512xf32>
    %18 = arith.truncf %17 : vector<8x512xf32> to vector<8x512xbf16>
    %c0_12 = arith.constant 0 : index
    %c0_13 = arith.constant 0 : index
    %19 = vector.load %arg6[%c0_12, %c0_13] : memref<512x128xbf16, #tpu.memory_space<vmem>>, vector<512x128xbf16>
    %cst_14 = arith.constant dense<0.000000e+00> : vector<8x128xf32>
    %20 = tpu.matmul %18, %19, %cst_14 {dimension_numbers = #tpu.dot_dimension_numbers<[1], [0], [0], [1], [0, 0, 1, 1], [], []>} : vector<8x512xbf16>, vector<512x128xbf16>, vector<8x128xf32> -> vector<8x128xf32>
    %c0_15 = arith.constant 0 : index
    %c0_16 = arith.constant 0 : index
    %21 = vector.load %arg7[%c0_15, %c0_16] : memref<1x128xf32, #tpu.memory_space<vmem>>, vector<1x128xf32>
    %22 = vector.broadcast %21 : vector<1x128xf32> to vector<8x128xf32>
    %23 = arith.addf %20, %22 : vector<8x128xf32>
    %cst_17 = arith.constant 0.00999999977 : f32
    %24 = vector.broadcast %cst_17 : f32 to vector<8x128xf32>
    %25 = arith.mulf %24, %23 : vector<8x128xf32>
    %26 = arith.maximumf %23, %25 : vector<8x128xf32>
    %c0_18 = arith.constant 0 : index
    %c0_19 = arith.constant 0 : index
    %27 = vector.load %arg8[%c0_18, %c0_19] : memref<1x128xbf16, #tpu.memory_space<vmem>>, vector<1x128xbf16>
    %28 = arith.extf %27 : vector<1x128xbf16> to vector<1x128xf32>
    %29 = vector.broadcast %28 : vector<1x128xf32> to vector<8x128xf32>
    %30 = arith.mulf %26, %29 : vector<8x128xf32>
    %cst_20 = arith.constant dense<0.000000e+00> : vector<8xf32>
    %31 = vector.multi_reduction <add>, %30, %cst_20 [1] : vector<8x128xf32> to vector<8xf32>
    %32 = vector.shape_cast %31 : vector<8xf32> to vector<8x1xf32>
    %c0_21 = arith.constant 0 : index
    %33 = memref.load %arg9[%c0_21] : memref<1xf32, #tpu.memory_space<smem>>
    %34 = vector.broadcast %33 : f32 to vector<8x1xf32>
    %35 = arith.addf %32, %34 : vector<8x1xf32>
    %36 = tpu.transpose %35, [1, 0] : vector<8x1xf32> -> vector<1x8xf32>
    %37 = vector.shape_cast %36 : vector<1x8xf32> to vector<1x1x8xf32>
    %c0_22 = arith.constant 0 : index
    %c0_23 = arith.constant 0 : index
    %c0_24 = arith.constant 0 : index
    %38 = vector.load %arg10[%c0_22, %c0_23, %c0_24] : memref<1x1x8xf32, #tpu.memory_space<vmem>>, vector<1x1x8xf32>
    tpu.vector_store %arg10[%c0_22, %c0_23, %c0_24], %37 {strides = array<i32>} : memref<1x1x8xf32, #tpu.memory_space<vmem>>, vector<1x1x8xf32>,
    return
  }
  func.func @transform_0(%arg0: i32) -> (i32, i32) {
    %c0_i32 = arith.constant 0 : i32
    %c0_i32_0 = arith.constant 0 : i32
    return %arg0, %c0_i32 : i32, i32
  }
  func.func @transform_1(%arg0: i32) -> (i32, i32) {
    %c0_i32 = arith.constant 0 : i32
    %c0_i32_0 = arith.constant 0 : i32
    %c0_i32_1 = arith.constant 0 : i32
    return %c0_i32, %c0_i32_0 : i32, i32
  }
  func.func @transform_2(%arg0: i32) -> (i32, i32) {
    %c0_i32 = arith.constant 0 : i32
    %c0_i32_0 = arith.constant 0 : i32
    %c0_i32_1 = arith.constant 0 : i32
    return %c0_i32, %c0_i32_0 : i32, i32
  }
  func.func @transform_3(%arg0: i32) -> (i32, i32) {
    %c0_i32 = arith.constant 0 : i32
    %c0_i32_0 = arith.constant 0 : i32
    %c0_i32_1 = arith.constant 0 : i32
    return %c0_i32, %c0_i32_0 : i32, i32
  }
  func.func @transform_4(%arg0: i32) -> (i32, i32) {
    %c0_i32 = arith.constant 0 : i32
    %c0_i32_0 = arith.constant 0 : i32
    %c0_i32_1 = arith.constant 0 : i32
    return %c0_i32, %c0_i32_0 : i32, i32
  }
  func.func @transform_5(%arg0: i32) -> (i32, i32) {
    %c0_i32 = arith.constant 0 : i32
    %c0_i32_0 = arith.constant 0 : i32
    %c0_i32_1 = arith.constant 0 : i32
    return %c0_i32, %c0_i32_0 : i32, i32
  }
  func.func @transform_6(%arg0: i32) -> (i32, i32) {
    %c0_i32 = arith.constant 0 : i32
    %c0_i32_0 = arith.constant 0 : i32
    %c0_i32_1 = arith.constant 0 : i32
    return %c0_i32, %c0_i32_0 : i32, i32
  }
  func.func @transform_7(%arg0: i32) -> (i32, i32) {
    %c0_i32 = arith.constant 0 : i32
    %c0_i32_0 = arith.constant 0 : i32
    %c0_i32_1 = arith.constant 0 : i32
    return %c0_i32, %c0_i32_0 : i32, i32
  }
  func.func @transform_8(%arg0: i32) -> i32 {
    %c0_i32 = arith.constant 0 : i32
    %c0_i32_0 = arith.constant 0 : i32
    return %c0_i32 : i32
  }
  func.func @transform_9(%arg0: i32) -> (i32, i32, i32) {
    %c0_i32 = arith.constant 0 : i32
    %c0_i32_0 = arith.constant 0 : i32
    %c0_i32_1 = arith.constant 0 : i32
    return %arg0, %c0_i32, %c0_i32_0 : i32, i32, i32
  }
}

</mosaic_0001>

<llo_original>
// kernel: dnn_forward_pallas.1
$region0: #{dnn_forward_pallas.1}
  #allocation0 [shape = 'u32[]', space=smem, size = 0x4, offset = 0x4, fixed_abs, tag = 'smem constant byte address 0x4 - core index']
  #allocation1 [shape = 'u32[144,128]{1,0:T(1,128)}', space=vmem, size = 0x12000, scoped, tag = 'internal scratch']
  #allocation2 [shape = 'f32[1]{0:T(128)S(6)}', space=smem, size = 0x200, scoped, tag = 'scoped memory for dnn_forward_pallas.1']
  %s0 = inlined_call_operand.vmem [shape: bf16[8,128], index: 0, kind: input, shape index: {}]
  %s1 = inlined_call_operand.hbm [shape: bf16[128,2048], index: 1, kind: input, shape index: {}]
  %s2 = inlined_call_operand.hbm [shape: f32[1,2048], index: 2, kind: input, shape index: {}]
  %s3 = inlined_call_operand.hbm [shape: bf16[2048,512], index: 3, kind: input, shape index: {}]
  %s4 = inlined_call_operand.hbm [shape: f32[1,512], index: 4, kind: input, shape index: {}]
  %s5 = inlined_call_operand.hbm [shape: bf16[512,128], index: 5, kind: input, shape index: {}]
  %s6 = inlined_call_operand.hbm [shape: f32[1,128], index: 6, kind: input, shape index: {}]
  %s7 = inlined_call_operand.hbm [shape: bf16[1,128], index: 7, kind: input, shape index: {}]
  %s8 = inlined_call_operand.<no memory space> [shape: f32[1], index: 8, kind: input, shape index: {}]
  %s9 = inlined_call_operand.hbm [shape: f32[1,1,8], index: 9, kind: output, shape index: {}]
  %s10 = sld [smem:[#allocation0]]
  $region74: #{dnn_forward_pallas.1} parent=0
    _
  %s12 = ssub.s32 1, %s10
  %s13 = scalar_select 0, %s12, %s10
  %14 = sst [smem:[#allocation2]] %s8
  $region1: #{dnn_forward_pallas.1} parent=0
    #allocation3 [shape = 'u8[524288]{0}', space=vmem, size = 0x80000, scoped, tag = 'input window, operand 1, single buffered']
    #allocation4 [shape = 's32[1]{0}', space=sflag, size = 0x4, scoped, tag = 'scoped memory for dnn_forward_pallas.1']
    #allocation5 [shape = 's32[1]{0}', space=sflag, size = 0x4, scoped, tag = 'scoped memory for dnn_forward_pallas.1']
    #allocation6 [shape = 'u8[8192]{0}', space=vmem, size = 0x2000, scoped, tag = 'input window, operand 2, single buffered']
    #allocation7 [shape = 's32[1]{0}', space=sflag, size = 0x4, scoped, tag = 'scoped memory for dnn_forward_pallas.1']
    #allocation8 [shape = 'u8[2097152]{0}', space=vmem, size = 0x200000, scoped, tag = 'input window, operand 3, single buffered']
    #allocation9 [shape = 'u8[2048]{0}', space=vmem, size = 0x800, scoped, tag = 'input window, operand 4, single buffered']
    #allocation10 [shape = 's32[1]{0}', space=sflag, size = 0x4, scoped, tag = 'scoped memory for dnn_forward_pallas.1']
    #allocation11 [shape = 'u8[131072]{0}', space=vmem, size = 0x20000, scoped, tag = 'input window, operand 5, single buffered']
    #allocation12 [shape = 'u8[512]{0}', space=vmem, size = 0x400, scoped, tag = 'input window, operand 6, single buffered']
    #allocation13 [shape = 's32[1]{0}', space=sflag, size = 0x4, scoped, tag = 'scoped memory for dnn_forward_pallas.1']
    #allocation14 [shape = 'u8[512]{0}', space=vmem, size = 0x400, scoped, tag = 'input window, operand 7, single buffered']
    #allocation15 [shape = 'u8[512]{0}', space=vmem, size = 0x400, scoped, tag = 'output window, operand 0, single buffered']
    %15 = vsyncpa [#allocation4], 0
    %16 = vsyncpa [#allocation7], 0
    %17 = vsyncpa [#allocation10], 0
    %18 = vsyncpa [#allocation13], 0
    %19 = vsyncpa [#allocation5], 0
    // Predicated region
    $region2: #{dnn_forward_pallas.1} parent=1 // pred_check
      _
    $region3: #{dnn_forward_pallas.1} parent=1 // pred_check_branch
      %21 = sbr.rel (0) target = $region5
    $region4: #{dnn_forward_pallas.1} parent=1 // pred_region
      _
    $region5: #{dnn_forward_pallas.1} parent=1 // pred_fallthru
      _
    // Predicated region
    $region6: #{dnn_forward_pallas.1} parent=1 // pred_check
      _
    $region7: #{dnn_forward_pallas.1} parent=1 // pred_check_branch
      %23 = sbr.rel (0) target = $region9
    $region8: #{dnn_forward_pallas.1} parent=1 // pred_region
      %s25 = ssub.s32 16384, 16384
      %26 = vsyncadd [#allocation4], %s25
      %s27 = sshll.u32 [#allocation3], 4
      %s28 = int_to_ptr.vmem [resolvable:$true] %s27
      %33 = dma.hbm_to_vmem [thread:$0]  %s1, 16384, %s28, [#allocation4], 1024, 1024, 64
    $region9: #{dnn_forward_pallas.1} parent=1 // pred_fallthru
      _
    // Predicated region
    $region10: #{dnn_forward_pallas.1} parent=1 // pred_check
      _
    $region11: #{dnn_forward_pallas.1} parent=1 // pred_check_branch
      %35 = sbr.rel (0) target = $region13
    $region12: #{dnn_forward_pallas.1} parent=1 // pred_region
      %s37 = ssub.s32 256, 256
      %38 = vsyncadd [#allocation7], %s37
      %s40 = sshll.u32 [#allocation6], 4
      %s41 = int_to_ptr.vmem [resolvable:$true] %s40
      %43 = dma.hbm_to_vmem [thread:$0]  %s2, 256, %s41, [#allocation7]
    $region13: #{dnn_forward_pallas.1} parent=1 // pred_fallthru
      _
    // Predicated region
    $region14: #{dnn_forward_pallas.1} parent=1 // pred_check
      _
    $region15: #{dnn_forward_pallas.1} parent=1 // pred_check_branch
      %45 = sbr.rel (0) target = $region17
    $region16: #{dnn_forward_pallas.1} parent=1 // pred_region
      %s47 = ssub.s32 65536, 65536
      %48 = vsyncadd [#allocation7], %s47
      %s49 = sshll.u32 [#allocation8], 4
      %s50 = int_to_ptr.vmem [resolvable:$true] %s49
      %55 = dma.hbm_to_vmem [thread:$0]  %s3, 65536, %s50, [#allocation7], 256, 256, 16
    $region17: #{dnn_forward_pallas.1} parent=1 // pred_fallthru
      _
    // Predicated region
    $region18: #{dnn_forward_pallas.1} parent=1 // pred_check
      _
    $region19: #{dnn_forward_pallas.1} parent=1 // pred_check_branch
      %57 = sbr.rel (0) target = $region21
    $region20: #{dnn_forward_pallas.1} parent=1 // pred_region
      %s59 = ssub.s32 64, 64
      %60 = vsyncadd [#allocation10], %s59
      %s62 = sshll.u32 [#allocation9], 4
      %s63 = int_to_ptr.vmem [resolvable:$true] %s62
      %65 = dma.hbm_to_vmem [thread:$0]  %s4, 64, %s63, [#allocation10]
    $region21: #{dnn_forward_pallas.1} parent=1 // pred_fallthru
      _
    // Predicated region
    $region22: #{dnn_forward_pallas.1} parent=1 // pred_check
      _
    $region23: #{dnn_forward_pallas.1} parent=1 // pred_check_branch
      %67 = sbr.rel (0) target = $region25
    $region24: #{dnn_forward_pallas.1} parent=1 // pred_region
      %s69 = ssub.s32 4096, 4096
      %70 = vsyncadd [#allocation10], %s69
      %s71 = sshll.u32 [#allocation11], 4
      %s72 = int_to_ptr.vmem [resolvable:$true] %s71
      %77 = dma.hbm_to_vmem [thread:$0]  %s5, 4096, %s72, [#allocation10], 64, 64, 4
    $region25: #{dnn_forward_pallas.1} parent=1 // pred_fallthru
      _
    // Predicated region
    $region26: #{dnn_forward_pallas.1} parent=1 // pred_check
      _
    $region27: #{dnn_forward_pallas.1} parent=1 // pred_check_branch
      %79 = sbr.rel (0) target = $region29
    $region28: #{dnn_forward_pallas.1} parent=1 // pred_region
      %s81 = ssub.s32 16, 16
      %82 = vsyncadd [#allocation13], %s81
      %s84 = sshll.u32 [#allocation12], 4
      %s85 = int_to_ptr.vmem [resolvable:$true] %s84
      %87 = dma.hbm_to_vmem [thread:$0]  %s6, 16, %s85, [#allocation13]
    $region29: #{dnn_forward_pallas.1} parent=1 // pred_fallthru
      _
    // Predicated region
    $region30: #{dnn_forward_pallas.1} parent=1 // pred_check
      _
    $region31: #{dnn_forward_pallas.1} parent=1 // pred_check_branch
      %89 = sbr.rel (0) target = $region33
    $region32: #{dnn_forward_pallas.1} parent=1 // pred_region
      %s91 = ssub.s32 16, 16
      %92 = vsyncadd [#allocation13], %s91
      %s94 = sshll.u32 [#allocation14], 4
      %s95 = int_to_ptr.vmem [resolvable:$true] %s94
      %97 = dma.hbm_to_vmem [thread:$0]  %s7, 16, %s95, [#allocation13]
    $region33: #{dnn_forward_pallas.1} parent=1 // pred_fallthru
      _
    // Predicated region
    $region34: #{dnn_forward_pallas.1} parent=1 // pred_check
      _
    $region35: #{dnn_forward_pallas.1} parent=1 // pred_check_branch
      %99 = sbr.rel (0) target = $region37
    $region36: #{dnn_forward_pallas.1} parent=1 // pred_region
      _
    $region37: #{dnn_forward_pallas.1} parent=1 // pred_fallthru
      _
    // Predicated region
    $region38: #{dnn_forward_pallas.1} parent=1 // pred_check
      _
    $region39: #{dnn_forward_pallas.1} parent=1 // pred_check_branch
      %101 = sbr.rel (0) target = $region41
    $region40: #{dnn_forward_pallas.1} parent=1 // pred_region
      %102 = dma.done [#allocation4], 16384
    $region41: #{dnn_forward_pallas.1} parent=1 // pred_fallthru
      _
    // Predicated region
    $region42: #{dnn_forward_pallas.1} parent=1 // pred_check
      _
    $region43: #{dnn_forward_pallas.1} parent=1 // pred_check_branch
      %104 = sbr.rel (0) target = $region45
    $region44: #{dnn_forward_pallas.1} parent=1 // pred_region
      %105 = dma.done [#allocation7], 256
    $region45: #{dnn_forward_pallas.1} parent=1 // pred_fallthru
      _
    // Predicated region
    $region46: #{dnn_forward_pallas.1} parent=1 // pred_check
      _
    $region47: #{dnn_forward_pallas.1} parent=1 // pred_check_branch
      %107 = sbr.rel (0) target = $region49
    $region48: #{dnn_forward_pallas.1} parent=1 // pred_region
      %108 = dma.done [#allocation7], 65536
    $region49: #{dnn_forward_pallas.1} parent=1 // pred_fallthru
      _
    // Predicated region
    $region50: #{dnn_forward_pallas.1} parent=1 // pred_check
      _
    $region51: #{dnn_forward_pallas.1} parent=1 // pred_check_branch
      %110 = sbr.rel (0) target = $region53
    $region52: #{dnn_forward_pallas.1} parent=1 // pred_region
      %111 = dma.done [#allocation10], 64
    $region53: #{dnn_forward_pallas.1} parent=1 // pred_fallthru
      _
    // Predicated region
    $region54: #{dnn_forward_pallas.1} parent=1 // pred_check
      _
    $region55: #{dnn_forward_pallas.1} parent=1 // pred_check_branch
      %113 = sbr.rel (0) target = $region57
    $region56: #{dnn_forward_pallas.1} parent=1 // pred_region
      %114 = dma.done [#allocation10], 4096
    $region57: #{dnn_forward_pallas.1} parent=1 // pred_fallthru
      _
    // Predicated region
    $region58: #{dnn_forward_pallas.1} parent=1 // pred_check
      _
    $region59: #{dnn_forward_pallas.1} parent=1 // pred_check_branch
      %116 = sbr.rel (0) target = $region61
    $region60: #{dnn_forward_pallas.1} parent=1 // pred_region
      %117 = dma.done [#allocation13], 16
    $region61: #{dnn_forward_pallas.1} parent=1 // pred_fallthru
      _
    // Predicated region
    $region62: #{dnn_forward_pallas.1} parent=1 // pred_check
      _
    $region63: #{dnn_forward_pallas.1} parent=1 // pred_check_branch
      %119 = sbr.rel (0) target = $region65
    $region64: #{dnn_forward_pallas.1} parent=1 // pred_region
      %120 = dma.done [#allocation13], 16
    $region65: #{dnn_forward_pallas.1} parent=1 // pred_fallthru
      _
    %v122 = vld [vmem:[%s0] sm:$0xf]
    %v123 = vld [vmem:[#allocation3] sm:$0xff]
    %v124 = vld [vmem:[#allocation3 + $0x8] sm:$0xff]
    %v125 = vld [vmem:[#allocation3 + $0x10] sm:$0xff]
    %v126 = vld [vmem:[#allocation3 + $0x18] sm:$0xff]
    %v127 = vld [vmem:[#allocation3 + $0x20] sm:$0xff]
    %v128 = vld [vmem:[#allocation3 + $0x28] sm:$0xff]
    %v129 = vld [vmem:[#allocation3 + $0x30] sm:$0xff]
    %v130 = vld [vmem:[#allocation3 + $0x38] sm:$0xff]
    %v131 = vld [vmem:[#allocation3 + $0x40] sm:$0xff]
    %v132 = vld [vmem:[#allocation3 + $0x48] sm:$0xff]
    %v133 = vld [vmem:[#allocation3 + $0x50] sm:$0xff]
    %v134 = vld [vmem:[#allocation3 + $0x58] sm:$0xff]
    %v135 = vld [vmem:[#allocation3 + $0x60] sm:$0xff]
    %v136 = vld [vmem:[#allocation3 + $0x68] sm:$0xff]
    %v137 = vld [vmem:[#allocation3 + $0x70] sm:$0xff]
    %v138 = vld [vmem:[#allocation3 + $0x78] sm:$0xff]
    %v139 = vld [vmem:[#allocation3 + $0x80] sm:$0xff]
    %v140 = vld [vmem:[#allocation3 + $0x88] sm:$0xff]
    %v141 = vld [vmem:[#allocation3 + $0x90] sm:$0xff]
    %v142 = vld [vmem:[#allocation3 + $0x98] sm:$0xff]
    %v143 = vld [vmem:[#allocation3 + $0xa0] sm:$0xff]
    %v144 = vld [vmem:[#allocation3 + $0xa8] sm:$0xff]
    %v145 = vld [vmem:[#allocation3 + $0xb0] sm:$0xff]
    %v146 = vld [vmem:[#allocation3 + $0xb8] sm:$0xff]
    %v147 = vld [vmem:[#allocation3 + $0xc0] sm:$0xff]
    %v148 = vld [vmem:[#allocation3 + $0xc8] sm:$0xff]
    %v149 = vld [vmem:[#allocation3 + $0xd0] sm:$0xff]
    %v150 = vld [vmem:[#allocation3 + $0xd8] sm:$0xff]
    %v151 = vld [vmem:[#allocation3 + $0xe0] sm:$0xff]
    %v152 = vld [vmem:[#allocation3 + $0xe8] sm:$0xff]
    %v153 = vld [vmem:[#allocation3 + $0xf0] sm:$0xff]
    %v154 = vld [vmem:[#allocation3 + $0xf8] sm:$0xff]
    %v155 = vld [vmem:[#allocation3 + $0x100] sm:$0xff]
    %v156 = vld [vmem:[#allocation3 + $0x108] sm:$0xff]
    %v157 = vld [vmem:[#allocation3 + $0x110] sm:$0xff]
    %v158 = vld [vmem:[#allocation3 + $0x118] sm:$0xff]
    %v159 = vld [vmem:[#allocation3 + $0x120] sm:$0xff]
    %v160 = vld [vmem:[#allocation3 + $0x128] sm:$0xff]
    %v161 = vld [vmem:[#allocation3 + $0x130] sm:$0xff]
    %v162 = vld [vmem:[#allocation3 + $0x138] sm:$0xff]
    %v163 = vld [vmem:[#allocation3 + $0x140] sm:$0xff]
    %v164 = vld [vmem:[#allocation3 + $0x148] sm:$0xff]
    %v165 = vld [vmem:[#allocation3 + $0x150] sm:$0xff]
    %v166 = vld [vmem:[#allocation3 + $0x158] sm:$0xff]
    %v167 = vld [vmem:[#allocation3 + $0x160] sm:$0xff]
    %v168 = vld [vmem:[#allocation3 + $0x168] sm:$0xff]
    %v169 = vld [vmem:[#allocation3 + $0x170] sm:$0xff]
    %v170 = vld [vmem:[#allocation3 + $0x178] sm:$0xff]
    %v171 = vld [vmem:[#allocation3 + $0x180] sm:$0xff]
    %v172 = vld [vmem:[#allocation3 + $0x188] sm:$0xff]
    %v173 = vld [vmem:[#allocation3 + $0x190] sm:$0xff]
    %v174 = vld [vmem:[#allocation3 + $0x198] sm:$0xff]
    %v175 = vld [vmem:[#allocation3 + $0x1a0] sm:$0xff]
    %v176 = vld [vmem:[#allocation3 + $0x1a8] sm:$0xff]
    %v177 = vld [vmem:[#allocation3 + $0x1b0] sm:$0xff]
    %v178 = vld [vmem:[#allocation3 + $0x1b8] sm:$0xff]
    %v179 = vld [vmem:[#allocation3 + $0x1c0] sm:$0xff]
    %v180 = vld [vmem:[#allocation3 + $0x1c8] sm:$0xff]
    %v181 = vld [vmem:[#allocation3 + $0x1d0] sm:$0xff]
    %v182 = vld [vmem:[#allocation3 + $0x1d8] sm:$0xff]
    %v183 = vld [vmem:[#allocation3 + $0x1e0] sm:$0xff]
    %v184 = vld [vmem:[#allocation3 + $0x1e8] sm:$0xff]
    %v185 = vld [vmem:[#allocation3 + $0x1f0] sm:$0xff]
    %v186 = vld [vmem:[#allocation3 + $0x1f8] sm:$0xff]
    %v187 = vld [vmem:[#allocation3 + $0x200] sm:$0xff]
    %v188 = vld [vmem:[#allocation3 + $0x208] sm:$0xff]
    %v189 = vld [vmem:[#allocation3 + $0x210] sm:$0xff]
    %v190 = vld [vmem:[#allocation3 + $0x218] sm:$0xff]
    %v191 = vld [vmem:[#allocation3 + $0x220] sm:$0xff]
    %v192 = vld [vmem:[#allocation3 + $0x228] sm:$0xff]
    %v193 = vld [vmem:[#allocation3 + $0x230] sm:$0xff]
    %v194 = vld [vmem:[#allocation3 + $0x238] sm:$0xff]
    %v195 = vld [vmem:[#allocation3 + $0x240] sm:$0xff]
    %v196 = vld [vmem:[#allocation3 + $0x248] sm:$0xff]
    %v197 = vld [vmem:[#allocation3 + $0x250] sm:$0xff]
    %v198 = vld [vmem:[#allocation3 + $0x258] sm:$0xff]
    %v199 = vld [vmem:[#allocation3 + $0x260] sm:$0xff]
    %v200 = vld [vmem:[#allocation3 + $0x268] sm:$0xff]
    %v201 = vld [vmem:[#allocation3 + $0x270] sm:$0xff]
    %v202 = vld [vmem:[#allocation3 + $0x278] sm:$0xff]
    %v203 = vld [vmem:[#allocation3 + $0x280] sm:$0xff]
    %v204 = vld [vmem:[#allocation3 + $0x288] sm:$0xff]
    %v205 = vld [vmem:[#allocation3 + $0x290] sm:$0xff]
    %v206 = vld [vmem:[#allocation3 + $0x298] sm:$0xff]
    %v207 = vld [vmem:[#allocation3 + $0x2a0] sm:$0xff]
    %v208 = vld [vmem:[#allocation3 + $0x2a8] sm:$0xff]
    %v209 = vld [vmem:[#allocation3 + $0x2b0] sm:$0xff]
    %v210 = vld [vmem:[#allocation3 + $0x2b8] sm:$0xff]
    %v211 = vld [vmem:[#allocation3 + $0x2c0] sm:$0xff]
    %v212 = vld [vmem:[#allocation3 + $0x2c8] sm:$0xff]
    %v213 = vld [vmem:[#allocation3 + $0x2d0] sm:$0xff]
    %v214 = vld [vmem:[#allocation3 + $0x2d8] sm:$0xff]
    %v215 = vld [vmem:[#allocation3 + $0x2e0] sm:$0xff]
    %v216 = vld [vmem:[#allocation3 + $0x2e8] sm:$0xff]
    %v217 = vld [vmem:[#allocation3 + $0x2f0] sm:$0xff]
    %v218 = vld [vmem:[#allocation3 + $0x2f8] sm:$0xff]
    %v219 = vld [vmem:[#allocation3 + $0x300] sm:$0xff]
    %v220 = vld [vmem:[#allocation3 + $0x308] sm:$0xff]
    %v221 = vld [vmem:[#allocation3 + $0x310] sm:$0xff]
    %v222 = vld [vmem:[#allocation3 + $0x318] sm:$0xff]
    %v223 = vld [vmem:[#allocation3 + $0x320] sm:$0xff]
    %v224 = vld [vmem:[#allocation3 + $0x328] sm:$0xff]
    %v225 = vld [vmem:[#allocation3 + $0x330] sm:$0xff]
    %v226 = vld [vmem:[#allocation3 + $0x338] sm:$0xff]
    %v227 = vld [vmem:[#allocation3 + $0x340] sm:$0xff]
    %v228 = vld [vmem:[#allocation3 + $0x348] sm:$0xff]
    %v229 = vld [vmem:[#allocation3 + $0x350] sm:$0xff]
    %v230 = vld [vmem:[#allocation3 + $0x358] sm:$0xff]
    %v231 = vld [vmem:[#allocation3 + $0x360] sm:$0xff]
    %v232 = vld [vmem:[#allocation3 + $0x368] sm:$0xff]
    %v233 = vld [vmem:[#allocation3 + $0x370] sm:$0xff]
    %v234 = vld [vmem:[#allocation3 + $0x378] sm:$0xff]
    %v235 = vld [vmem:[#allocation3 + $0x380] sm:$0xff]
    %v236 = vld [vmem:[#allocation3 + $0x388] sm:$0xff]
    %v237 = vld [vmem:[#allocation3 + $0x390] sm:$0xff]
    %v238 = vld [vmem:[#allocation3 + $0x398] sm:$0xff]
    %v239 = vld [vmem:[#allocation3 + $0x3a0] sm:$0xff]
    %v240 = vld [vmem:[#allocation3 + $0x3a8] sm:$0xff]
    %v241 = vld [vmem:[#allocation3 + $0x3b0] sm:$0xff]
    %v242 = vld [vmem:[#allocation3 + $0x3b8] sm:$0xff]
    %v243 = vld [vmem:[#allocation3 + $0x3c0] sm:$0xff]
    %v244 = vld [vmem:[#allocation3 + $0x3c8] sm:$0xff]
    %v245 = vld [vmem:[#allocation3 + $0x3d0] sm:$0xff]
    %v246 = vld [vmem:[#allocation3 + $0x3d8] sm:$0xff]
    %v247 = vld [vmem:[#allocation3 + $0x3e0] sm:$0xff]
    %v248 = vld [vmem:[#allocation3 + $0x3e8] sm:$0xff]
    %v249 = vld [vmem:[#allocation3 + $0x3f0] sm:$0xff]
    %v250 = vld [vmem:[#allocation3 + $0x3f8] sm:$0xff]
    %v251 = vld [vmem:[#allocation6] sm:$0xff]
    %v252 = vld [vmem:[#allocation6 + $0x8] sm:$0xff]
    %v255 = vlaneseq
    %v256 = vshrl.u32 %v255, 7
    %v257 = vsub.s32 0, %v256
    %v258 = vrot.slane %v251, %v257
    %v259 = vlaneseq
    %v260 = vshrl.u32 %v259, 7
    %v261 = vsub.s32 1, %v260
    %v262 = vrot.slane %v251, %v261
    %v263 = vlaneseq
    %v264 = vshrl.u32 %v263, 7
    %v265 = vsub.s32 2, %v264
    %v266 = vrot.slane %v251, %v265
    %v267 = vlaneseq
    %v268 = vshrl.u32 %v267, 7
    %v269 = vsub.s32 3, %v268
    %v270 = vrot.slane %v251, %v269
    %v271 = vlaneseq
    %v272 = vshrl.u32 %v271, 7
    %v273 = vsub.s32 4, %v272
    %v274 = vrot.slane %v251, %v273
    %v275 = vlaneseq
    %v276 = vshrl.u32 %v275, 7
    %v277 = vsub.s32 5, %v276
    %v278 = vrot.slane %v251, %v277
    %v279 = vlaneseq
    %v280 = vshrl.u32 %v279, 7
    %v281 = vsub.s32 6, %v280
    %v282 = vrot.slane %v251, %v281
    %v283 = vlaneseq
    %v284 = vshrl.u32 %v283, 7
    %v285 = vsub.s32 7, %v284
    %v286 = vrot.slane %v251, %v285
    %v287 = vlaneseq
    %v288 = vshrl.u32 %v287, 7
    %v289 = vsub.s32 0, %v288
    %v290 = vrot.slane %v252, %v289
    %v291 = vlaneseq
    %v292 = vshrl.u32 %v291, 7
    %v293 = vsub.s32 1, %v292
    %v294 = vrot.slane %v252, %v293
    %v295 = vlaneseq
    %v296 = vshrl.u32 %v295, 7
    %v297 = vsub.s32 2, %v296
    %v298 = vrot.slane %v252, %v297
    %v299 = vlaneseq
    %v300 = vshrl.u32 %v299, 7
    %v301 = vsub.s32 3, %v300
    %v302 = vrot.slane %v252, %v301
    %v303 = vlaneseq
    %v304 = vshrl.u32 %v303, 7
    %v305 = vsub.s32 4, %v304
    %v306 = vrot.slane %v252, %v305
    %v307 = vlaneseq
    %v308 = vshrl.u32 %v307, 7
    %v309 = vsub.s32 5, %v308
    %v310 = vrot.slane %v252, %v309
    %v311 = vlaneseq
    %v312 = vshrl.u32 %v311, 7
    %v313 = vsub.s32 6, %v312
    %v314 = vrot.slane %v252, %v313
    %v315 = vlaneseq
    %v316 = vshrl.u32 %v315, 7
    %v317 = vsub.s32 7, %v316
    %v318 = vrot.slane %v252, %v317
    %v463 = vunpack.c.l.b16 %v123
    %v464 = vunpack.c.h.b16 %v123
    %v465 = vunpack.c.l.b16 %v124
    %v466 = vunpack.c.h.b16 %v124
    %v467 = vunpack.c.l.b16 %v125
    %v468 = vunpack.c.h.b16 %v125
    %v469 = vunpack.c.l.b16 %v126
    %v470 = vunpack.c.h.b16 %v126
    %v471 = vunpack.c.l.b16 %v127
    %v472 = vunpack.c.h.b16 %v127
    %v473 = vunpack.c.l.b16 %v128
    %v474 = vunpack.c.h.b16 %v128
    %v475 = vunpack.c.l.b16 %v129
    %v476 = vunpack.c.h.b16 %v129
    %v477 = vunpack.c.l.b16 %v130
    %v478 = vunpack.c.h.b16 %v130
    %v479 = vunpack.c.l.b16 %v131
    %v480 = vunpack.c.h.b16 %v131
    %v481 = vunpack.c.l.b16 %v132
    %v482 = vunpack.c.h.b16 %v132
    %v483 = vunpack.c.l.b16 %v133
    %v484 = vunpack.c.h.b16 %v133
    %v485 = vunpack.c.l.b16 %v134
    %v486 = vunpack.c.h.b16 %v134
    %v487 = vunpack.c.l.b16 %v135
    %v488 = vunpack.c.h.b16 %v135
    %v489 = vunpack.c.l.b16 %v136
    %v490 = vunpack.c.h.b16 %v136
    %v491 = vunpack.c.l.b16 %v137
    %v492 = vunpack.c.h.b16 %v137
    %v493 = vunpack.c.l.b16 %v138
    %v494 = vunpack.c.h.b16 %v138
    %v495 = vunpack.c.l.b16 %v139
    %v496 = vunpack.c.h.b16 %v139
    %v497 = vunpack.c.l.b16 %v140
    %v498 = vunpack.c.h.b16 %v140
    %v499 = vunpack.c.l.b16 %v141
    %v500 = vunpack.c.h.b16 %v141
    %v501 = vunpack.c.l.b16 %v142
    %v502 = vunpack.c.h.b16 %v142
    %v503 = vunpack.c.l.b16 %v143
    %v504 = vunpack.c.h.b16 %v143
    %v505 = vunpack.c.l.b16 %v144
    %v506 = vunpack.c.h.b16 %v144
    %v507 = vunpack.c.l.b16 %v145
    %v508 = vunpack.c.h.b16 %v145
    %v509 = vunpack.c.l.b16 %v146
    %v510 = vunpack.c.h.b16 %v146
    %v511 = vunpack.c.l.b16 %v147
    %v512 = vunpack.c.h.b16 %v147
    %v513 = vunpack.c.l.b16 %v148
    %v514 = vunpack.c.h.b16 %v148
    %v515 = vunpack.c.l.b16 %v149
    %v516 = vunpack.c.h.b16 %v149
    %v517 = vunpack.c.l.b16 %v150
    %v518 = vunpack.c.h.b16 %v150
    %v519 = vunpack.c.l.b16 %v151
    %v520 = vunpack.c.h.b16 %v151
    %v521 = vunpack.c.l.b16 %v152
    %v522 = vunpack.c.h.b16 %v152
    %v523 = vunpack.c.l.b16 %v153
    %v524 = vunpack.c.h.b16 %v153
    %v525 = vunpack.c.l.b16 %v154
    %v526 = vunpack.c.h.b16 %v154
    %v527 = vunpack.c.l.b16 %v155
    %v528 = vunpack.c.h.b16 %v155
    %v529 = vunpack.c.l.b16 %v156
    %v530 = vunpack.c.h.b16 %v156
    %v531 = vunpack.c.l.b16 %v157
    %v532 = vunpack.c.h.b16 %v157
    %v533 = vunpack.c.l.b16 %v158
    %v534 = vunpack.c.h.b16 %v158
    %v535 = vunpack.c.l.b16 %v159
    %v536 = vunpack.c.h.b16 %v159
    %v537 = vunpack.c.l.b16 %v160
    %v538 = vunpack.c.h.b16 %v160
    %v539 = vunpack.c.l.b16 %v161
    %v540 = vunpack.c.h.b16 %v161
    %v541 = vunpack.c.l.b16 %v162
    %v542 = vunpack.c.h.b16 %v162
    %v543 = vunpack.c.l.b16 %v163
    %v544 = vunpack.c.h.b16 %v163
    %v545 = vunpack.c.l.b16 %v164
    %v546 = vunpack.c.h.b16 %v164
    %v547 = vunpack.c.l.b16 %v165
    %v548 = vunpack.c.h.b16 %v165
    %v549 = vunpack.c.l.b16 %v166
    %v550 = vunpack.c.h.b16 %v166
    %v551 = vunpack.c.l.b16 %v167
    %v552 = vunpack.c.h.b16 %v167
    %v553 = vunpack.c.l.b16 %v168
    %v554 = vunpack.c.h.b16 %v168
    %v555 = vunpack.c.l.b16 %v169
    %v556 = vunpack.c.h.b16 %v169
    %v557 = vunpack.c.l.b16 %v170
    %v558 = vunpack.c.h.b16 %v170
    %v559 = vunpack.c.l.b16 %v171
    %v560 = vunpack.c.h.b16 %v171
    %v561 = vunpack.c.l.b16 %v172
    %v562 = vunpack.c.h.b16 %v172
    %v563 = vunpack.c.l.b16 %v173
    %v564 = vunpack.c.h.b16 %v173
    %v565 = vunpack.c.l.b16 %v174
    %v566 = vunpack.c.h.b16 %v174
    %v567 = vunpack.c.l.b16 %v175
    %v568 = vunpack.c.h.b16 %v175
    %v569 = vunpack.c.l.b16 %v176
    %v570 = vunpack.c.h.b16 %v176
    %v571 = vunpack.c.l.b16 %v177
    %v572 = vunpack.c.h.b16 %v177
    %v573 = vunpack.c.l.b16 %v178
    %v574 = vunpack.c.h.b16 %v178
    %v575 = vunpack.c.l.b16 %v179
    %v576 = vunpack.c.h.b16 %v179
    %v577 = vunpack.c.l.b16 %v180
    %v578 = vunpack.c.h.b16 %v180
    %v579 = vunpack.c.l.b16 %v181
    %v580 = vunpack.c.h.b16 %v181
    %v581 = vunpack.c.l.b16 %v182
    %v582 = vunpack.c.h.b16 %v182
    %v583 = vunpack.c.l.b16 %v183
    %v584 = vunpack.c.h.b16 %v183
    %v585 = vunpack.c.l.b16 %v184
    %v586 = vunpack.c.h.b16 %v184
    %v587 = vunpack.c.l.b16 %v185
    %v588 = vunpack.c.h.b16 %v185
    %v589 = vunpack.c.l.b16 %v186
    %v590 = vunpack.c.h.b16 %v186
    %v591 = vunpack.c.l.b16 %v187
    %v592 = vunpack.c.h.b16 %v187
    %v593 = vunpack.c.l.b16 %v188
    %v594 = vunpack.c.h.b16 %v188
    %v595 = vunpack.c.l.b16 %v189
    %v596 = vunpack.c.h.b16 %v189
    %v597 = vunpack.c.l.b16 %v190
    %v598 = vunpack.c.h.b16 %v190
    %v599 = vunpack.c.l.b16 %v191
    %v600 = vunpack.c.h.b16 %v191
    %v601 = vunpack.c.l.b16 %v192
    %v602 = vunpack.c.h.b16 %v192
    %v603 = vunpack.c.l.b16 %v193
    %v604 = vunpack.c.h.b16 %v193
    %v605 = vunpack.c.l.b16 %v194
    %v606 = vunpack.c.h.b16 %v194
    %v607 = vunpack.c.l.b16 %v195
    %v608 = vunpack.c.h.b16 %v195
    %v609 = vunpack.c.l.b16 %v196
    %v610 = vunpack.c.h.b16 %v196
    %v611 = vunpack.c.l.b16 %v197
    %v612 = vunpack.c.h.b16 %v197
    %v613 = vunpack.c.l.b16 %v198
    %v614 = vunpack.c.h.b16 %v198
    %v615 = vunpack.c.l.b16 %v199
    %v616 = vunpack.c.h.b16 %v199
    %v617 = vunpack.c.l.b16 %v200
    %v618 = vunpack.c.h.b16 %v200
    %v619 = vunpack.c.l.b16 %v201
    %v620 = vunpack.c.h.b16 %v201
    %v621 = vunpack.c.l.b16 %v202
    %v622 = vunpack.c.h.b16 %v202
    %v623 = vunpack.c.l.b16 %v203
    %v624 = vunpack.c.h.b16 %v203
    %v625 = vunpack.c.l.b16 %v204
    %v626 = vunpack.c.h.b16 %v204
    %v627 = vunpack.c.l.b16 %v205
    %v628 = vunpack.c.h.b16 %v205
    %v629 = vunpack.c.l.b16 %v206
    %v630 = vunpack.c.h.b16 %v206
    %v631 = vunpack.c.l.b16 %v207
    %v632 = vunpack.c.h.b16 %v207
    %v633 = vunpack.c.l.b16 %v208
    %v634 = vunpack.c.h.b16 %v208
    %v635 = vunpack.c.l.b16 %v209
    %v636 = vunpack.c.h.b16 %v209
    %v637 = vunpack.c.l.b16 %v210
    %v638 = vunpack.c.h.b16 %v210
    %v639 = vunpack.c.l.b16 %v211
    %v640 = vunpack.c.h.b16 %v211
    %v641 = vunpack.c.l.b16 %v212
    %v642 = vunpack.c.h.b16 %v212
    %v643 = vunpack.c.l.b16 %v213
    %v644 = vunpack.c.h.b16 %v213
    %v645 = vunpack.c.l.b16 %v214
    %v646 = vunpack.c.h.b16 %v214
    %v647 = vunpack.c.l.b16 %v215
    %v648 = vunpack.c.h.b16 %v215
    %v649 = vunpack.c.l.b16 %v216
    %v650 = vunpack.c.h.b16 %v216
    %v651 = vunpack.c.l.b16 %v217
    %v652 = vunpack.c.h.b16 %v217
    %v653 = vunpack.c.l.b16 %v218
    %v654 = vunpack.c.h.b16 %v218
    %v655 = vunpack.c.l.b16 %v219
    %v656 = vunpack.c.h.b16 %v219
    %v657 = vunpack.c.l.b16 %v220
    %v658 = vunpack.c.h.b16 %v220
    %v659 = vunpack.c.l.b16 %v221
    %v660 = vunpack.c.h.b16 %v221
    %v661 = vunpack.c.l.b16 %v222
    %v662 = vunpack.c.h.b16 %v222
    %v663 = vunpack.c.l.b16 %v223
    %v664 = vunpack.c.h.b16 %v223
    %v665 = vunpack.c.l.b16 %v224
    %v666 = vunpack.c.h.b16 %v224
    %v667 = vunpack.c.l.b16 %v225
    %v668 = vunpack.c.h.b16 %v225
    %v669 = vunpack.c.l.b16 %v226
    %v670 = vunpack.c.h.b16 %v226
    %v671 = vunpack.c.l.b16 %v227
    %v672 = vunpack.c.h.b16 %v227
    %v673 = vunpack.c.l.b16 %v228
    %v674 = vunpack.c.h.b16 %v228
    %v675 = vunpack.c.l.b16 %v229
    %v676 = vunpack.c.h.b16 %v229
    %v677 = vunpack.c.l.b16 %v230
    %v678 = vunpack.c.h.b16 %v230
    %v679 = vunpack.c.l.b16 %v231
    %v680 = vunpack.c.h.b16 %v231
    %v681 = vunpack.c.l.b16 %v232
    %v682 = vunpack.c.h.b16 %v232
    %v683 = vunpack.c.l.b16 %v233
    %v684 = vunpack.c.h.b16 %v233
    %v685 = vunpack.c.l.b16 %v234
    %v686 = vunpack.c.h.b16 %v234
    %v687 = vunpack.c.l.b16 %v235
    %v688 = vunpack.c.h.b16 %v235
    %v689 = vunpack.c.l.b16 %v236
    %v690 = vunpack.c.h.b16 %v236
    %v691 = vunpack.c.l.b16 %v237
    %v692 = vunpack.c.h.b16 %v237
    %v693 = vunpack.c.l.b16 %v238
    %v694 = vunpack.c.h.b16 %v238
    %v695 = vunpack.c.l.b16 %v239
    %v696 = vunpack.c.h.b16 %v239
    %v697 = vunpack.c.l.b16 %v240
    %v698 = vunpack.c.h.b16 %v240
    %v699 = vunpack.c.l.b16 %v241
    %v700 = vunpack.c.h.b16 %v241
    %v701 = vunpack.c.l.b16 %v242
    %v702 = vunpack.c.h.b16 %v242
    %v703 = vunpack.c.l.b16 %v243
    %v704 = vunpack.c.h.b16 %v243
    %v705 = vunpack.c.l.b16 %v244
    %v706 = vunpack.c.h.b16 %v244
    %v707 = vunpack.c.l.b16 %v245
    %v708 = vunpack.c.h.b16 %v245
    %v709 = vunpack.c.l.b16 %v246
    %v710 = vunpack.c.h.b16 %v246
    %v711 = vunpack.c.l.b16 %v247
    %v712 = vunpack.c.h.b16 %v247
    %v713 = vunpack.c.l.b16 %v248
    %v714 = vunpack.c.h.b16 %v248
    %v715 = vunpack.c.l.b16 %v249
    %v716 = vunpack.c.h.b16 %v249
    %v717 = vunpack.c.l.b16 %v250
    %v718 = vunpack.c.h.b16 %v250
    %v719 = vpack.c.b16 %v479, %v463
    %v720 = vpack.c.b16 %v480, %v464
    %v721 = vpack.c.b16 %v481, %v465
    %v722 = vpack.c.b16 %v482, %v466
    %v723 = vpack.c.b16 %v483, %v467
    %v724 = vpack.c.b16 %v484, %v468
    %v725 = vpack.c.b16 %v485, %v469
    %v726 = vpack.c.b16 %v486, %v470
    %v727 = vpack.c.b16 %v487, %v471
    %v728 = vpack.c.b16 %v488, %v472
    %v729 = vpack.c.b16 %v489, %v473
    %v730 = vpack.c.b16 %v490, %v474
    %v731 = vpack.c.b16 %v491, %v475
    %v732 = vpack.c.b16 %v492, %v476
    %v733 = vpack.c.b16 %v493, %v477
    %v734 = vpack.c.b16 %v494, %v478
    %v735 = vpack.c.b16 %v511, %v495
    %v736 = vpack.c.b16 %v512, %v496
    %v737 = vpack.c.b16 %v513, %v497
    %v738 = vpack.c.b16 %v514, %v498
    %v739 = vpack.c.b16 %v515, %v499
    %v740 = vpack.c.b16 %v516, %v500
    %v741 = vpack.c.b16 %v517, %v501
    %v742 = vpack.c.b16 %v518, %v502
    %v743 = vpack.c.b16 %v519, %v503
    %v744 = vpack.c.b16 %v520, %v504
    %v745 = vpack.c.b16 %v521, %v505
    %v746 = vpack.c.b16 %v522, %v506
    %v747 = vpack.c.b16 %v523, %v507
    %v748 = vpack.c.b16 %v524, %v508
    %v749 = vpack.c.b16 %v525, %v509
    %v750 = vpack.c.b16 %v526, %v510
    %v751 = vpack.c.b16 %v543, %v527
    %v752 = vpack.c.b16 %v544, %v528
    %v753 = vpack.c.b16 %v545, %v529
    %v754 = vpack.c.b16 %v546, %v530
    %v755 = vpack.c.b16 %v547, %v531
    %v756 = vpack.c.b16 %v548, %v532
    %v757 = vpack.c.b16 %v549, %v533
    %v758 = vpack.c.b16 %v550, %v534
    %v759 = vpack.c.b16 %v551, %v535
    %v760 = vpack.c.b16 %v552, %v536
    %v761 = vpack.c.b16 %v553, %v537
    %v762 = vpack.c.b16 %v554, %v538
    %v763 = vpack.c.b16 %v555, %v539
    %v764 = vpack.c.b16 %v556, %v540
    %v765 = vpack.c.b16 %v557, %v541
    %v766 = vpack.c.b16 %v558, %v542
    %v767 = vpack.c.b16 %v575, %v559
    %v768 = vpack.c.b16 %v576, %v560
    %v769 = vpack.c.b16 %v577, %v561
    %v770 = vpack.c.b16 %v578, %v562
    %v771 = vpack.c.b16 %v579, %v563
    %v772 = vpack.c.b16 %v580, %v564
    %v773 = vpack.c.b16 %v581, %v565
    %v774 = vpack.c.b16 %v582, %v566
    %v775 = vpack.c.b16 %v583, %v567
    %v776 = vpack.c.b16 %v584, %v568
    %v777 = vpack.c.b16 %v585, %v569
    %v778 = vpack.c.b16 %v586, %v570
    %v779 = vpack.c.b16 %v587, %v571
    %v780 = vpack.c.b16 %v588, %v572
    %v781 = vpack.c.b16 %v589, %v573
    %v782 = vpack.c.b16 %v590, %v574
    %v783 = vpack.c.b16 %v607, %v591
    %v784 = vpack.c.b16 %v608, %v592
    %v785 = vpack.c.b16 %v609, %v593
    %v786 = vpack.c.b16 %v610, %v594
    %v787 = vpack.c.b16 %v611, %v595
    %v788 = vpack.c.b16 %v612, %v596
    %v789 = vpack.c.b16 %v613, %v597
    %v790 = vpack.c.b16 %v614, %v598
    %v791 = vpack.c.b16 %v615, %v599
    %v792 = vpack.c.b16 %v616, %v600
    %v793 = vpack.c.b16 %v617, %v601
    %v794 = vpack.c.b16 %v618, %v602
    %v795 = vpack.c.b16 %v619, %v603
    %v796 = vpack.c.b16 %v620, %v604
    %v797 = vpack.c.b16 %v621, %v605
    %v798 = vpack.c.b16 %v622, %v606
    %v799 = vpack.c.b16 %v639, %v623
    %v800 = vpack.c.b16 %v640, %v624
    %v801 = vpack.c.b16 %v641, %v625
    %v802 = vpack.c.b16 %v642, %v626
    %v803 = vpack.c.b16 %v643, %v627
    %v804 = vpack.c.b16 %v644, %v628
    %v805 = vpack.c.b16 %v645, %v629
    %v806 = vpack.c.b16 %v646, %v630
    %v807 = vpack.c.b16 %v647, %v631
    %v808 = vpack.c.b16 %v648, %v632
    %v809 = vpack.c.b16 %v649, %v633
    %v810 = vpack.c.b16 %v650, %v634
    %v811 = vpack.c.b16 %v651, %v635
    %v812 = vpack.c.b16 %v652, %v636
    %v813 = vpack.c.b16 %v653, %v637
    %v814 = vpack.c.b16 %v654, %v638
    %v815 = vpack.c.b16 %v671, %v655
    %v816 = vpack.c.b16 %v672, %v656
    %v817 = vpack.c.b16 %v673, %v657
    %v818 = vpack.c.b16 %v674, %v658
    %v819 = vpack.c.b16 %v675, %v659
    %v820 = vpack.c.b16 %v676, %v660
    %v821 = vpack.c.b16 %v677, %v661
    %v822 = vpack.c.b16 %v678, %v662
    %v823 = vpack.c.b16 %v679, %v663
    %v824 = vpack.c.b16 %v680, %v664
    %v825 = vpack.c.b16 %v681, %v665
    %v826 = vpack.c.b16 %v682, %v666
    %v827 = vpack.c.b16 %v683, %v667
    %v828 = vpack.c.b16 %v684, %v668
    %v829 = vpack.c.b16 %v685, %v669
    %v830 = vpack.c.b16 %v686, %v670
    %v831 = vpack.c.b16 %v703, %v687
    %v832 = vpack.c.b16 %v704, %v688
    %v833 = vpack.c.b16 %v705, %v689
    %v834 = vpack.c.b16 %v706, %v690
    %v835 = vpack.c.b16 %v707, %v691
    %v836 = vpack.c.b16 %v708, %v692
    %v837 = vpack.c.b16 %v709, %v693
    %v838 = vpack.c.b16 %v710, %v694
    %v839 = vpack.c.b16 %v711, %v695
    %v840 = vpack.c.b16 %v712, %v696
    %v841 = vpack.c.b16 %v713, %v697
    %v842 = vpack.c.b16 %v714, %v698
    %v843 = vpack.c.b16 %v715, %v699
    %v844 = vpack.c.b16 %v716, %v700
    %v845 = vpack.c.b16 %v717, %v701
    %v846 = vpack.c.b16 %v718, %v702
    %975 = vmatprep.subr.bf16.mxu0 %v720
    %976 = vmatpush1.bf16.msra.mxu0 %v719
    %977 = vmatprep.subr.bf16.mxu0 %v736
    %978 = vmatpush1.bf16.msra.mxu0 %v735
    %979 = vmatprep.subr.bf16.mxu0 %v752
    %980 = vmatpush1.bf16.msra.mxu0 %v751
    %981 = vmatprep.subr.bf16.mxu0 %v768
    %982 = vmatpush1.bf16.msra.mxu0 %v767
    %983 = vmatprep.subr.bf16.mxu0 %v784
    %984 = vmatpush1.bf16.msra.mxu0 %v783
    %985 = vmatprep.subr.bf16.mxu0 %v800
    %986 = vmatpush1.bf16.msra.mxu0 %v799
    %987 = vmatprep.subr.bf16.mxu0 %v816
    %988 = vmatpush1.bf16.msra.mxu0 %v815
    %989 = vmatprep.subr.bf16.mxu0 %v832
    %990 = vmatpush1.bf16.msra.mxu0 %v831
    %991 = vmatprep.subr.bf16.mxu0 0
    %992 = vmatpush1.bf16.msra.mxu0 0
    %993 = vmatprep.subr.bf16.mxu0 0
    %994 = vmatpush1.bf16.msra.mxu0 0
    %995 = vmatprep.subr.bf16.mxu0 0
    %996 = vmatpush1.bf16.msra.mxu0 0
    %997 = vmatprep.subr.bf16.mxu0 0
    %998 = vmatpush1.bf16.msra.mxu0 0
    %999 = vmatprep.subr.bf16.mxu0 0
    %1000 = vmatpush1.bf16.msra.mxu0 0
    %1001 = vmatprep.subr.bf16.mxu0 0
    %1002 = vmatpush1.bf16.msra.mxu0 0
    %1003 = vmatprep.subr.bf16.mxu0 0
    %1004 = vmatpush1.bf16.msra.mxu0 0
    %1005 = vmatprep.subr.bf16.mxu0 0
    %1006 = vmatpush1.bf16.msra.mxu0 0
    %1007 = vmatprep.mubr.bf16.mxu0 0
    %1008 = vmatmul.mubr.bf16.gmra.mrb[0].mxu0 %v122
    %v1009 = vpop.f32.mrb[0].mxu0
    %v1010 = vadd.f32 %v258, %v1009
    %v1011 = vpop.f32.mrb[0].mxu0
    %v1012 = vadd.f32 %v262, %v1011
    %v1013 = vpop.f32.mrb[0].mxu0
    %v1014 = vpop.f32.mrb[0].mxu0
    %1015 = vdwg.mxu0
    %1016 = vmatprep.subr.bf16.mxu0 %v722
    %1017 = vmatpush1.bf16.msra.mxu0 %v721
    %1018 = vmatprep.subr.bf16.mxu0 %v738
    %1019 = vmatpush1.bf16.msra.mxu0 %v737
    %1020 = vmatprep.subr.bf16.mxu0 %v754
    %1021 = vmatpush1.bf16.msra.mxu0 %v753
    %1022 = vmatprep.subr.bf16.mxu0 %v770
    %1023 = vmatpush1.bf16.msra.mxu0 %v769
    %1024 = vmatprep.subr.bf16.mxu0 %v786
    %1025 = vmatpush1.bf16.msra.mxu0 %v785
    %1026 = vmatprep.subr.bf16.mxu0 %v802
    %1027 = vmatpush1.bf16.msra.mxu0 %v801
    %1028 = vmatprep.subr.bf16.mxu0 %v818
    %1029 = vmatpush1.bf16.msra.mxu0 %v817
    %1030 = vmatprep.subr.bf16.mxu0 %v834
    %1031 = vmatpush1.bf16.msra.mxu0 %v833
    %1032 = vmatprep.subr.bf16.mxu0 0
    %1033 = vmatpush1.bf16.msra.mxu0 0
    %1034 = vmatprep.subr.bf16.mxu0 0
    %1035 = vmatpush1.bf16.msra.mxu0 0
    %1036 = vmatprep.subr.bf16.mxu0 0
    %1037 = vmatpush1.bf16.msra.mxu0 0
    %1038 = vmatprep.subr.bf16.mxu0 0
    %1039 = vmatpush1.bf16.msra.mxu0 0
    %1040 = vmatprep.subr.bf16.mxu0 0
    %1041 = vmatpush1.bf16.msra.mxu0 0
    %1042 = vmatprep.subr.bf16.mxu0 0
    %1043 = vmatpush1.bf16.msra.mxu0 0
    %1044 = vmatprep.subr.bf16.mxu0 0
    %1045 = vmatpush1.bf16.msra.mxu0 0
    %1046 = vmatprep.subr.bf16.mxu0 0
    %1047 = vmatpush1.bf16.msra.mxu0 0
    %1048 = vmatprep.mubr.bf16.mxu0 0
    %1049 = vmatmul.mubr.bf16.gmra.mrb[0].mxu0 %v122
    %v1050 = vpop.f32.mrb[0].mxu0
    %v1051 = vadd.f32 %v266, %v1050
    %v1052 = vpop.f32.mrb[0].mxu0
    %v1053 = vadd.f32 %v270, %v1052
    %v1054 = vpop.f32.mrb[0].mxu0
    %v1055 = vpop.f32.mrb[0].mxu0
    %1056 = vdwg.mxu0
    %1057 = vmatprep.subr.bf16.mxu0 %v724
    %1058 = vmatpush1.bf16.msra.mxu0 %v723
    %1059 = vmatprep.subr.bf16.mxu0 %v740
    %1060 = vmatpush1.bf16.msra.mxu0 %v739
    %1061 = vmatprep.subr.bf16.mxu0 %v756
    %1062 = vmatpush1.bf16.msra.mxu0 %v755
    %1063 = vmatprep.subr.bf16.mxu0 %v772
    %1064 = vmatpush1.bf16.msra.mxu0 %v771
    %1065 = vmatprep.subr.bf16.mxu0 %v788
    %1066 = vmatpush1.bf16.msra.mxu0 %v787
    %1067 = vmatprep.subr.bf16.mxu0 %v804
    %1068 = vmatpush1.bf16.msra.mxu0 %v803
    %1069 = vmatprep.subr.bf16.mxu0 %v820
    %1070 = vmatpush1.bf16.msra.mxu0 %v819
    %1071 = vmatprep.subr.bf16.mxu0 %v836
    %1072 = vmatpush1.bf16.msra.mxu0 %v835
    %1073 = vmatprep.subr.bf16.mxu0 0
    %1074 = vmatpush1.bf16.msra.mxu0 0
    %1075 = vmatprep.subr.bf16.mxu0 0
    %1076 = vmatpush1.bf16.msra.mxu0 0
    %1077 = vmatprep.subr.bf16.mxu0 0
    %1078 = vmatpush1.bf16.msra.mxu0 0
    %1079 = vmatprep.subr.bf16.mxu0 0
    %1080 = vmatpush1.bf16.msra.mxu0 0
    %1081 = vmatprep.subr.bf16.mxu0 0
    %1082 = vmatpush1.bf16.msra.mxu0 0
    %1083 = vmatprep.subr.bf16.mxu0 0
    %1084 = vmatpush1.bf16.msra.mxu0 0
    %1085 = vmatprep.subr.bf16.mxu0 0
    %1086 = vmatpush1.bf16.msra.mxu0 0
    %1087 = vmatprep.subr.bf16.mxu0 0
    %1088 = vmatpush1.bf16.msra.mxu0 0
    %1089 = vmatprep.mubr.bf16.mxu0 0
    %1090 = vmatmul.mubr.bf16.gmra.mrb[0].mxu0 %v122
    %v1091 = vpop.f32.mrb[0].mxu0
    %v1092 = vadd.f32 %v274, %v1091
    %v1093 = vpop.f32.mrb[0].mxu0
    %v1094 = vadd.f32 %v278, %v1093
    %v1095 = vpop.f32.mrb[0].mxu0
    %v1096 = vpop.f32.mrb[0].mxu0
    %1097 = vdwg.mxu0
    %1098 = vmatprep.subr.bf16.mxu0 %v726
    %1099 = vmatpush1.bf16.msra.mxu0 %v725
    %1100 = vmatprep.subr.bf16.mxu0 %v742
    %1101 = vmatpush1.bf16.msra.mxu0 %v741
    %1102 = vmatprep.subr.bf16.mxu0 %v758
    %1103 = vmatpush1.bf16.msra.mxu0 %v757
    %1104 = vmatprep.subr.bf16.mxu0 %v774
    %1105 = vmatpush1.bf16.msra.mxu0 %v773
    %1106 = vmatprep.subr.bf16.mxu0 %v790
    %1107 = vmatpush1.bf16.msra.mxu0 %v789
    %1108 = vmatprep.subr.bf16.mxu0 %v806
    %1109 = vmatpush1.bf16.msra.mxu0 %v805
    %1110 = vmatprep.subr.bf16.mxu0 %v822
    %1111 = vmatpush1.bf16.msra.mxu0 %v821
    %1112 = vmatprep.subr.bf16.mxu0 %v838
    %1113 = vmatpush1.bf16.msra.mxu0 %v837
    %1114 = vmatprep.subr.bf16.mxu0 0
    %1115 = vmatpush1.bf16.msra.mxu0 0
    %1116 = vmatprep.subr.bf16.mxu0 0
    %1117 = vmatpush1.bf16.msra.mxu0 0
    %1118 = vmatprep.subr.bf16.mxu0 0
    %1119 = vmatpush1.bf16.msra.mxu0 0
    %1120 = vmatprep.subr.bf16.mxu0 0
    %1121 = vmatpush1.bf16.msra.mxu0 0
    %1122 = vmatprep.subr.bf16.mxu0 0
    %1123 = vmatpush1.bf16.msra.mxu0 0
    %1124 = vmatprep.subr.bf16.mxu0 0
    %1125 = vmatpush1.bf16.msra.mxu0 0
    %1126 = vmatprep.subr.bf16.mxu0 0
    %1127 = vmatpush1.bf16.msra.mxu0 0
    %1128 = vmatprep.subr.bf16.mxu0 0
    %1129 = vmatpush1.bf16.msra.mxu0 0
    %1130 = vmatprep.mubr.bf16.mxu0 0
    %1131 = vmatmul.mubr.bf16.gmra.mrb[0].mxu0 %v122
    %v1132 = vpop.f32.mrb[0].mxu0
    %v1133 = vadd.f32 %v282, %v1132
    %v1134 = vpop.f32.mrb[0].mxu0
    %v1135 = vadd.f32 %v286, %v1134
    %v1136 = vpop.f32.mrb[0].mxu0
    %v1137 = vpop.f32.mrb[0].mxu0
    %1138 = vdwg.mxu0
    %1139 = vmatprep.subr.bf16.mxu0 %v728
    %1140 = vmatpush1.bf16.msra.mxu0 %v727
    %1141 = vmatprep.subr.bf16.mxu0 %v744
    %1142 = vmatpush1.bf16.msra.mxu0 %v743
    %1143 = vmatprep.subr.bf16.mxu0 %v760
    %1144 = vmatpush1.bf16.msra.mxu0 %v759
    %1145 = vmatprep.subr.bf16.mxu0 %v776
    %1146 = vmatpush1.bf16.msra.mxu0 %v775
    %1147 = vmatprep.subr.bf16.mxu0 %v792
    %1148 = vmatpush1.bf16.msra.mxu0 %v791
    %1149 = vmatprep.subr.bf16.mxu0 %v808
    %1150 = vmatpush1.bf16.msra.mxu0 %v807
    %1151 = vmatprep.subr.bf16.mxu0 %v824
    %1152 = vmatpush1.bf16.msra.mxu0 %v823
    %1153 = vmatprep.subr.bf16.mxu0 %v840
    %1154 = vmatpush1.bf16.msra.mxu0 %v839
    %1155 = vmatprep.subr.bf16.mxu0 0
    %1156 = vmatpush1.bf16.msra.mxu0 0
    %1157 = vmatprep.subr.bf16.mxu0 0
    %1158 = vmatpush1.bf16.msra.mxu0 0
    %1159 = vmatprep.subr.bf16.mxu0 0
    %1160 = vmatpush1.bf16.msra.mxu0 0
    %1161 = vmatprep.subr.bf16.mxu0 0
    %1162 = vmatpush1.bf16.msra.mxu0 0
    %1163 = vmatprep.subr.bf16.mxu0 0
    %1164 = vmatpush1.bf16.msra.mxu0 0
    %1165 = vmatprep.subr.bf16.mxu0 0
    %1166 = vmatpush1.bf16.msra.mxu0 0
    %1167 = vmatprep.subr.bf16.mxu0 0
    %1168 = vmatpush1.bf16.msra.mxu0 0
    %1169 = vmatprep.subr.bf16.mxu0 0
    %1170 = vmatpush1.bf16.msra.mxu0 0
    %1171 = vmatprep.mubr.bf16.mxu0 0
    %1172 = vmatmul.mubr.bf16.gmra.mrb[0].mxu0 %v122
    %v1173 = vpop.f32.mrb[0].mxu0
    %v1174 = vadd.f32 %v290, %v1173
    %v1175 = vpop.f32.mrb[0].mxu0
    %v1176 = vadd.f32 %v294, %v1175
    %v1177 = vpop.f32.mrb[0].mxu0
    %v1178 = vpop.f32.mrb[0].mxu0
    %1179 = vdwg.mxu0
    %1180 = vmatprep.subr.bf16.mxu0 %v730
    %1181 = vmatpush1.bf16.msra.mxu0 %v729
    %1182 = vmatprep.subr.bf16.mxu0 %v746
    %1183 = vmatpush1.bf16.msra.mxu0 %v745
    %1184 = vmatprep.subr.bf16.mxu0 %v762
    %1185 = vmatpush1.bf16.msra.mxu0 %v761
    %1186 = vmatprep.subr.bf16.mxu0 %v778
    %1187 = vmatpush1.bf16.msra.mxu0 %v777
    %1188 = vmatprep.subr.bf16.mxu0 %v794
    %1189 = vmatpush1.bf16.msra.mxu0 %v793
    %1190 = vmatprep.subr.bf16.mxu0 %v810
    %1191 = vmatpush1.bf16.msra.mxu0 %v809
    %1192 = vmatprep.subr.bf16.mxu0 %v826
    %1193 = vmatpush1.bf16.msra.mxu0 %v825
    %1194 = vmatprep.subr.bf16.mxu0 %v842
    %1195 = vmatpush1.bf16.msra.mxu0 %v841
    %1196 = vmatprep.subr.bf16.mxu0 0
    %1197 = vmatpush1.bf16.msra.mxu0 0
    %1198 = vmatprep.subr.bf16.mxu0 0
    %1199 = vmatpush1.bf16.msra.mxu0 0
    %1200 = vmatprep.subr.bf16.mxu0 0
    %1201 = vmatpush1.bf16.msra.mxu0 0
    %1202 = vmatprep.subr.bf16.mxu0 0
    %1203 = vmatpush1.bf16.msra.mxu0 0
    %1204 = vmatprep.subr.bf16.mxu0 0
    %1205 = vmatpush1.bf16.msra.mxu0 0
    %1206 = vmatprep.subr.bf16.mxu0 0
    %1207 = vmatpush1.bf16.msra.mxu0 0
    %1208 = vmatprep.subr.bf16.mxu0 0
    %1209 = vmatpush1.bf16.msra.mxu0 0
    %1210 = vmatprep.subr.bf16.mxu0 0
    %1211 = vmatpush1.bf16.msra.mxu0 0
    %1212 = vmatprep.mubr.bf16.mxu0 0
    %1213 = vmatmul.mubr.bf16.gmra.mrb[0].mxu0 %v122
    %v1214 = vpop.f32.mrb[0].mxu0
    %v1215 = vadd.f32 %v298, %v1214
    %v1216 = vpop.f32.mrb[0].mxu0
    %v1217 = vadd.f32 %v302, %v1216
    %v1218 = vpop.f32.mrb[0].mxu0
    %v1219 = vpop.f32.mrb[0].mxu0
    %1220 = vdwg.mxu0
    %1221 = vmatprep.subr.bf16.mxu0 %v732
    %1222 = vmatpush1.bf16.msra.mxu0 %v731
    %1223 = vmatprep.subr.bf16.mxu0 %v748
    %1224 = vmatpush1.bf16.msra.mxu0 %v747
    %1225 = vmatprep.subr.bf16.mxu0 %v764
    %1226 = vmatpush1.bf16.msra.mxu0 %v763
    %1227 = vmatprep.subr.bf16.mxu0 %v780
    %1228 = vmatpush1.bf16.msra.mxu0 %v779
    %1229 = vmatprep.subr.bf16.mxu0 %v796
    %1230 = vmatpush1.bf16.msra.mxu0 %v795
    %1231 = vmatprep.subr.bf16.mxu0 %v812
    %1232 = vmatpush1.bf16.msra.mxu0 %v811
    %1233 = vmatprep.subr.bf16.mxu0 %v828
    %1234 = vmatpush1.bf16.msra.mxu0 %v827
    %1235 = vmatprep.subr.bf16.mxu0 %v844
    %1236 = vmatpush1.bf16.msra.mxu0 %v843
    %1237 = vmatprep.subr.bf16.mxu0 0
    %1238 = vmatpush1.bf16.msra.mxu0 0
    %1239 = vmatprep.subr.bf16.mxu0 0
    %1240 = vmatpush1.bf16.msra.mxu0 0
    %1241 = vmatprep.subr.bf16.mxu0 0
    %1242 = vmatpush1.bf16.msra.mxu0 0
    %1243 = vmatprep.subr.bf16.mxu0 0
    %1244 = vmatpush1.bf16.msra.mxu0 0
    %1245 = vmatprep.subr.bf16.mxu0 0
    %1246 = vmatpush1.bf16.msra.mxu0 0
    %1247 = vmatprep.subr.bf16.mxu0 0
    %1248 = vmatpush1.bf16.msra.mxu0 0
    %1249 = vmatprep.subr.bf16.mxu0 0
    %1250 = vmatpush1.bf16.msra.mxu0 0
    %1251 = vmatprep.subr.bf16.mxu0 0
    %1252 = vmatpush1.bf16.msra.mxu0 0
    %1253 = vmatprep.mubr.bf16.mxu0 0
    %1254 = vmatmul.mubr.bf16.gmra.mrb[0].mxu0 %v122
    %v1255 = vpop.f32.mrb[0].mxu0
    %v1256 = vadd.f32 %v306, %v1255
    %v1257 = vpop.f32.mrb[0].mxu0
    %v1258 = vadd.f32 %v310, %v1257
    %v1259 = vpop.f32.mrb[0].mxu0
    %v1260 = vpop.f32.mrb[0].mxu0
    %1261 = vdwg.mxu0
    %1262 = vmatprep.subr.bf16.mxu0 %v734
    %1263 = vmatpush1.bf16.msra.mxu0 %v733
    %1264 = vmatprep.subr.bf16.mxu0 %v750
    %1265 = vmatpush1.bf16.msra.mxu0 %v749
    %1266 = vmatprep.subr.bf16.mxu0 %v766
    %1267 = vmatpush1.bf16.msra.mxu0 %v765
    %1268 = vmatprep.subr.bf16.mxu0 %v782
    %1269 = vmatpush1.bf16.msra.mxu0 %v781
    %1270 = vmatprep.subr.bf16.mxu0 %v798
    %1271 = vmatpush1.bf16.msra.mxu0 %v797
    %1272 = vmatprep.subr.bf16.mxu0 %v814
    %1273 = vmatpush1.bf16.msra.mxu0 %v813
    %1274 = vmatprep.subr.bf16.mxu0 %v830
    %1275 = vmatpush1.bf16.msra.mxu0 %v829
    %1276 = vmatprep.subr.bf16.mxu0 %v846
    %1277 = vmatpush1.bf16.msra.mxu0 %v845
    %1278 = vmatprep.subr.bf16.mxu0 0
    %1279 = vmatpush1.bf16.msra.mxu0 0
    %1280 = vmatprep.subr.bf16.mxu0 0
    %1281 = vmatpush1.bf16.msra.mxu0 0
    %1282 = vmatprep.subr.bf16.mxu0 0
    %1283 = vmatpush1.bf16.msra.mxu0 0
    %1284 = vmatprep.subr.bf16.mxu0 0
    %1285 = vmatpush1.bf16.msra.mxu0 0
    %1286 = vmatprep.subr.bf16.mxu0 0
    %1287 = vmatpush1.bf16.msra.mxu0 0
    %1288 = vmatprep.subr.bf16.mxu0 0
    %1289 = vmatpush1.bf16.msra.mxu0 0
    %1290 = vmatprep.subr.bf16.mxu0 0
    %1291 = vmatpush1.bf16.msra.mxu0 0
    %1292 = vmatprep.subr.bf16.mxu0 0
    %1293 = vmatpush1.bf16.msra.mxu0 0
    %1294 = vmatprep.mubr.bf16.mxu0 0
    %1295 = vmatmul.mubr.bf16.gmra.mrb[0].mxu0 %v122
    %v1296 = vpop.f32.mrb[0].mxu0
    %v1297 = vadd.f32 %v314, %v1296
    %v1298 = vpop.f32.mrb[0].mxu0
    %v1299 = vadd.f32 %v318, %v1298
    %v1300 = vpop.f32.mrb[0].mxu0
    %v1301 = vpop.f32.mrb[0].mxu0
    %1302 = vdwg.mxu0
    %v1303 = vmul.f32 %v1010, 0.01
    %v1304 = vmul.f32 %v1012, 0.01
    %v1305 = vmul.f32 %v1051, 0.01
    %v1306 = vmul.f32 %v1053, 0.01
    %v1307 = vmul.f32 %v1092, 0.01
    %v1308 = vmul.f32 %v1094, 0.01
    %v1309 = vmul.f32 %v1133, 0.01
    %v1310 = vmul.f32 %v1135, 0.01
    %v1311 = vmul.f32 %v1174, 0.01
    %v1312 = vmul.f32 %v1176, 0.01
    %v1313 = vmul.f32 %v1215, 0.01
    %v1314 = vmul.f32 %v1217, 0.01
    %v1315 = vmul.f32 %v1256, 0.01
    %v1316 = vmul.f32 %v1258, 0.01
    %v1317 = vmul.f32 %v1297, 0.01
    %v1318 = vmul.f32 %v1299, 0.01
    %v1319 = vmax.f32 %v1010, %v1303
    %v1320 = vmax.f32 %v1012, %v1304
    %v1321 = vmax.f32 %v1051, %v1305
    %v1322 = vmax.f32 %v1053, %v1306
    %v1323 = vmax.f32 %v1092, %v1307
    %v1324 = vmax.f32 %v1094, %v1308
    %v1325 = vmax.f32 %v1133, %v1309
    %v1326 = vmax.f32 %v1135, %v1310
    %v1327 = vmax.f32 %v1174, %v1311
    %v1328 = vmax.f32 %v1176, %v1312
    %v1329 = vmax.f32 %v1215, %v1313
    %v1330 = vmax.f32 %v1217, %v1314
    %v1331 = vmax.f32 %v1256, %v1315
    %v1332 = vmax.f32 %v1258, %v1316
    %v1333 = vmax.f32 %v1297, %v1317
    %v1334 = vmax.f32 %v1299, %v1318
    %v1335 = vpack.c.bf16 %v1319, %v1319
    %v1336 = vpack.c.bf16 %v1320, %v1320
    %v1337 = vpack.c.bf16 %v1321, %v1321
    %v1338 = vpack.c.bf16 %v1322, %v1322
    %v1339 = vpack.c.bf16 %v1323, %v1323
    %v1340 = vpack.c.bf16 %v1324, %v1324
    %v1341 = vpack.c.bf16 %v1325, %v1325
    %v1342 = vpack.c.bf16 %v1326, %v1326
    %v1343 = vpack.c.bf16 %v1327, %v1327
    %v1344 = vpack.c.bf16 %v1328, %v1328
    %v1345 = vpack.c.bf16 %v1329, %v1329
    %v1346 = vpack.c.bf16 %v1330, %v1330
    %v1347 = vpack.c.bf16 %v1331, %v1331
    %v1348 = vpack.c.bf16 %v1332, %v1332
    %v1349 = vpack.c.bf16 %v1333, %v1333
    %v1350 = vpack.c.bf16 %v1334, %v1334
    %v1351 = vld [vmem:[#allocation8] sm:$0xff]
    %v1352 = vld [vmem:[#allocation8 + $0x8] sm:$0xff]
    %v1353 = vld [vmem:[#allocation8 + $0x10] sm:$0xff]
    %v1354 = vld [vmem:[#allocation8 + $0x18] sm:$0xff]
    %v1355 = vld [vmem:[#allocation8 + $0x20] sm:$0xff]
    %v1356 = vld [vmem:[#allocation8 + $0x28] sm:$0xff]
    %v1357 = vld [vmem:[#allocation8 + $0x30] sm:$0xff]
    %v1358 = vld [vmem:[#allocation8 + $0x38] sm:$0xff]
    %v1359 = vld [vmem:[#allocation8 + $0x40] sm:$0xff]
    %v1360 = vld [vmem:[#allocation8 + $0x48] sm:$0xff]
    %v1361 = vld [vmem:[#allocation8 + $0x50] sm:$0xff]
    %v1362 = vld [vmem:[#allocation8 + $0x58] sm:$0xff]
    %v1363 = vld [vmem:[#allocation8 + $0x60] sm:$0xff]
    %v1364 = vld [vmem:[#allocation8 + $0x68] sm:$0xff]
    %v1365 = vld [vmem:[#allocation8 + $0x70] sm:$0xff]
    %v1366 = vld [vmem:[#allocation8 + $0x78] sm:$0xff]
    %v1367 = vld [vmem:[#allocation8 + $0x80] sm:$0xff]
    %v1368 = vld [vmem:[#allocation8 + $0x88] sm:$0xff]
    %v1369 = vld [vmem:[#allocation8 + $0x90] sm:$0xff]
    %v1370 = vld [vmem:[#allocation8 + $0x98] sm:$0xff]
    %v1371 = vld [vmem:[#allocation8 + $0xa0] sm:$0xff]
    %v1372 = vld [vmem:[#allocation8 + $0xa8] sm:$0xff]
    %v1373 = vld [vmem:[#allocation8 + $0xb0] sm:$0xff]
    %v1374 = vld [vmem:[#allocation8 + $0xb8] sm:$0xff]
    %v1375 = vld [vmem:[#allocation8 + $0xc0] sm:$0xff]
    %v1376 = vld [vmem:[#allocation8 + $0xc8] sm:$0xff]
    %v1377 = vld [vmem:[#allocation8 + $0xd0] sm:$0xff]
    %v1378 = vld [vmem:[#allocation8 + $0xd8] sm:$0xff]
    %v1379 = vld [vmem:[#allocation8 + $0xe0] sm:$0xff]
    %v1380 = vld [vmem:[#allocation8 + $0xe8] sm:$0xff]
    %v1381 = vld [vmem:[#allocation8 + $0xf0] sm:$0xff]
    %v1382 = vld [vmem:[#allocation8 + $0xf8] sm:$0xff]
    %v1383 = vld [vmem:[#allocation8 + $0x100] sm:$0xff]
    %v1384 = vld [vmem:[#allocation8 + $0x108] sm:$0xff]
    %v1385 = vld [vmem:[#allocation8 + $0x110] sm:$0xff]
    %v1386 = vld [vmem:[#allocation8 + $0x118] sm:$0xff]
    %v1387 = vld [vmem:[#allocation8 + $0x120] sm:$0xff]
    %v1388 = vld [vmem:[#allocation8 + $0x128] sm:$0xff]
    %v1389 = vld [vmem:[#allocation8 + $0x130] sm:$0xff]
    %v1390 = vld [vmem:[#allocation8 + $0x138] sm:$0xff]
    %v1391 = vld [vmem:[#allocation8 + $0x140] sm:$0xff]
    %v1392 = vld [vmem:[#allocation8 + $0x148] sm:$0xff]
    %v1393 = vld [vmem:[#allocation8 + $0x150] sm:$0xff]
    %v1394 = vld [vmem:[#allocation8 + $0x158] sm:$0xff]
    %v1395 = vld [vmem:[#allocation8 + $0x160] sm:$0xff]
    %v1396 = vld [vmem:[#allocation8 + $0x168] sm:$0xff]
    %v1397 = vld [vmem:[#allocation8 + $0x170] sm:$0xff]
    %v1398 = vld [vmem:[#allocation8 + $0x178] sm:$0xff]
    %v1399 = vld [vmem:[#allocation8 + $0x180] sm:$0xff]
    %v1400 = vld [vmem:[#allocation8 + $0x188] sm:$0xff]
    %v1401 = vld [vmem:[#allocation8 + $0x190] sm:$0xff]
    %v1402 = vld [vmem:[#allocation8 + $0x198] sm:$0xff]
    %v1403 = vld [vmem:[#allocation8 + $0x1a0] sm:$0xff]
    %v1404 = vld [vmem:[#allocation8 + $0x1a8] sm:$0xff]
    %v1405 = vld [vmem:[#allocation8 + $0x1b0] sm:$0xff]
    %v1406 = vld [vmem:[#allocation8 + $0x1b8] sm:$0xff]
    %v1407 = vld [vmem:[#allocation8 + $0x1c0] sm:$0xff]
    %v1408 = vld [vmem:[#allocation8 + $0x1c8] sm:$0xff]
    %v1409 = vld [vmem:[#allocation8 + $0x1d0] sm:$0xff]
    %v1410 = vld [vmem:[#allocation8 + $0x1d8] sm:$0xff]
    %v1411 = vld [vmem:[#allocation8 + $0x1e0] sm:$0xff]
    %v1412 = vld [vmem:[#allocation8 + $0x1e8] sm:$0xff]
    %v1413 = vld [vmem:[#allocation8 + $0x1f0] sm:$0xff]
    %v1414 = vld [vmem:[#allocation8 + $0x1f8] sm:$0xff]
    %v1415 = vld [vmem:[#allocation8 + $0x200] sm:$0xff]
    %v1416 = vld [vmem:[#allocation8 + $0x208] sm:$0xff]
    %v1417 = vld [vmem:[#allocation8 + $0x210] sm:$0xff]
    %v1418 = vld [vmem:[#allocation8 + $0x218] sm:$0xff]
    %v1419 = vld [vmem:[#allocation8 + $0x220] sm:$0xff]
    %v1420 = vld [vmem:[#allocation8 + $0x228] sm:$0xff]
    %v1421 = vld [vmem:[#allocation8 + $0x230] sm:$0xff]
    %v1422 = vld [vmem:[#allocation8 + $0x238] sm:$0xff]
    %v1423 = vld [vmem:[#allocation8 + $0x240] sm:$0xff]
    %v1424 = vld [vmem:[#allocation8 + $0x248] sm:$0xff]
    %v1425 = vld [vmem:[#allocation8 + $0x250] sm:$0xff]
    %v1426 = vld [vmem:[#allocation8 + $0x258] sm:$0xff]
    %v1427 = vld [vmem:[#allocation8 + $0x260] sm:$0xff]
    %v1428 = vld [vmem:[#allocation8 + $0x268] sm:$0xff]
    %v1429 = vld [vmem:[#allocation8 + $0x270] sm:$0xff]
    %v1430 = vld [vmem:[#allocation8 + $0x278] sm:$0xff]
    %v1431 = vld [vmem:[#allocation8 + $0x280] sm:$0xff]
    %v1432 = vld [vmem:[#allocation8 + $0x288] sm:$0xff]
    %v1433 = vld [vmem:[#allocation8 + $0x290] sm:$0xff]
    %v1434 = vld [vmem:[#allocation8 + $0x298] sm:$0xff]
    %v1435 = vld [vmem:[#allocation8 + $0x2a0] sm:$0xff]
    %v1436 = vld [vmem:[#allocation8 + $0x2a8] sm:$0xff]
    %v1437 = vld [vmem:[#allocation8 + $0x2b0] sm:$0xff]
    %v1438 = vld [vmem:[#allocation8 + $0x2b8] sm:$0xff]
    %v1439 = vld [vmem:[#allocation8 + $0x2c0] sm:$0xff]
    %v1440 = vld [vmem:[#allocation8 + $0x2c8] sm:$0xff]
    %v1441 = vld [vmem:[#allocation8 + $0x2d0] sm:$0xff]
    %v1442 = vld [vmem:[#allocation8 + $0x2d8] sm:$0xff]
    %v1443 = vld [vmem:[#allocation8 + $0x2e0] sm:$0xff]
    %v1444 = vld [vmem:[#allocation8 + $0x2e8] sm:$0xff]
    %v1445 = vld [vmem:[#allocation8 + $0x2f0] sm:$0xff]
    %v1446 = vld [vmem:[#allocation8 + $0x2f8] sm:$0xff]
    %v1447 = vld [vmem:[#allocation8 + $0x300] sm:$0xff]
    %v1448 = vld [vmem:[#allocation8 + $0x308] sm:$0xff]
    %v1449 = vld [vmem:[#allocation8 + $0x310] sm:$0xff]
    %v1450 = vld [vmem:[#allocation8 + $0x318] sm:$0xff]
    %v1451 = vld [vmem:[#allocation8 + $0x320] sm:$0xff]
    %v1452 = vld [vmem:[#allocation8 + $0x328] sm:$0xff]
    %v1453 = vld [vmem:[#allocation8 + $0x330] sm:$0xff]
    %v1454 = vld [vmem:[#allocation8 + $0x338] sm:$0xff]
    %v1455 = vld [vmem:[#allocation8 + $0x340] sm:$0xff]
    %v1456 = vld [vmem:[#allocation8 + $0x348] sm:$0xff]
    %v1457 = vld [vmem:[#allocation8 + $0x350] sm:$0xff]
    %v1458 = vld [vmem:[#allocation8 + $0x358] sm:$0xff]
    %v1459 = vld [vmem:[#allocation8 + $0x360] sm:$0xff]
    %v1460 = vld [vmem:[#allocation8 + $0x368] sm:$0xff]
    %v1461 = vld [vmem:[#allocation8 + $0x370] sm:$0xff]
    %v1462 = vld [vmem:[#allocation8 + $0x378] sm:$0xff]
    %v1463 = vld [vmem:[#allocation8 + $0x380] sm:$0xff]
    %v1464 = vld [vmem:[#allocation8 + $0x388] sm:$0xff]
    %v1465 = vld [vmem:[#allocation8 + $0x390] sm:$0xff]
    %v1466 = vld [vmem:[#allocation8 + $0x398] sm:$0xff]
    %v1467 = vld [vmem:[#allocation8 + $0x3a0] sm:$0xff]
    %v1468 = vld [vmem:[#allocation8 + $0x3a8] sm:$0xff]
    %v1469 = vld [vmem:[#allocation8 + $0x3b0] sm:$0xff]
    %v1470 = vld [vmem:[#allocation8 + $0x3b8] sm:$0xff]
    %v1471 = vld [vmem:[#allocation8 + $0x3c0] sm:$0xff]
    %v1472 = vld [vmem:[#allocation8 + $0x3c8] sm:$0xff]
    %v1473 = vld [vmem:[#allocation8 + $0x3d0] sm:$0xff]
    %v1474 = vld [vmem:[#allocation8 + $0x3d8] sm:$0xff]
    %v1475 = vld [vmem:[#allocation8 + $0x3e0] sm:$0xff]
    %v1476 = vld [vmem:[#allocation8 + $0x3e8] sm:$0xff]
    %v1477 = vld [vmem:[#allocation8 + $0x3f0] sm:$0xff]
    %v1478 = vld [vmem:[#allocation8 + $0x3f8] sm:$0xff]
    %v1479 = vld [vmem:[#allocation8 + $0x400] sm:$0xff]
    %v1480 = vld [vmem:[#allocation8 + $0x408] sm:$0xff]
    %v1481 = vld [vmem:[#allocation8 + $0x410] sm:$0xff]
    %v1482 = vld [vmem:[#allocation8 + $0x418] sm:$0xff]
    %v1483 = vld [vmem:[#allocation8 + $0x420] sm:$0xff]
    %v1484 = vld [vmem:[#allocation8 + $0x428] sm:$0xff]
    %v1485 = vld [vmem:[#allocation8 + $0x430] sm:$0xff]
    %v1486 = vld [vmem:[#allocation8 + $0x438] sm:$0xff]
    %v1487 = vld [vmem:[#allocation8 + $0x440] sm:$0xff]
    %v1488 = vld [vmem:[#allocation8 + $0x448] sm:$0xff]
    %v1489 = vld [vmem:[#allocation8 + $0x450] sm:$0xff]
    %v1490 = vld [vmem:[#allocation8 + $0x458] sm:$0xff]
    %v1491 = vld [vmem:[#allocation8 + $0x460] sm:$0xff]
    %v1492 = vld [vmem:[#allocation8 + $0x468] sm:$0xff]
    %v1493 = vld [vmem:[#allocation8 + $0x470] sm:$0xff]
    %v1494 = vld [vmem:[#allocation8 + $0x478] sm:$0xff]
    %v1495 = vld [vmem:[#allocation8 + $0x480] sm:$0xff]
    %v1496 = vld [vmem:[#allocation8 + $0x488] sm:$0xff]
    %v1497 = vld [vmem:[#allocation8 + $0x490] sm:$0xff]
    %v1498 = vld [vmem:[#allocation8 + $0x498] sm:$0xff]
    %v1499 = vld [vmem:[#allocation8 + $0x4a0] sm:$0xff]
    %v1500 = vld [vmem:[#allocation8 + $0x4a8] sm:$0xff]
    %v1501 = vld [vmem:[#allocation8 + $0x4b0] sm:$0xff]
    %v1502 = vld [vmem:[#allocation8 + $0x4b8] sm:$0xff]
    %v1503 = vld [vmem:[#allocation8 + $0x4c0] sm:$0xff]
    %v1504 = vld [vmem:[#allocation8 + $0x4c8] sm:$0xff]
    %v1505 = vld [vmem:[#allocation8 + $0x4d0] sm:$0xff]
    %v1506 = vld [vmem:[#allocation8 + $0x4d8] sm:$0xff]
    %v1507 = vld [vmem:[#allocation8 + $0x4e0] sm:$0xff]
    %v1508 = vld [vmem:[#allocation8 + $0x4e8] sm:$0xff]
    %v1509 = vld [vmem:[#allocation8 + $0x4f0] sm:$0xff]
    %v1510 = vld [vmem:[#allocation8 + $0x4f8] sm:$0xff]
    %v1511 = vld [vmem:[#allocation8 + $0x500] sm:$0xff]
    %v1512 = vld [vmem:[#allocation8 + $0x508] sm:$0xff]
    %v1513 = vld [vmem:[#allocation8 + $0x510] sm:$0xff]
    %v1514 = vld [vmem:[#allocation8 + $0x518] sm:$0xff]
    %v1515 = vld [vmem:[#allocation8 + $0x520] sm:$0xff]
    %v1516 = vld [vmem:[#allocation8 + $0x528] sm:$0xff]
    %v1517 = vld [vmem:[#allocation8 + $0x530] sm:$0xff]
    %v1518 = vld [vmem:[#allocation8 + $0x538] sm:$0xff]
    %v1519 = vld [vmem:[#allocation8 + $0x540] sm:$0xff]
    %v1520 = vld [vmem:[#allocation8 + $0x548] sm:$0xff]
    %v1521 = vld [vmem:[#allocation8 + $0x550] sm:$0xff]
    %v1522 = vld [vmem:[#allocation8 + $0x558] sm:$0xff]
    %v1523 = vld [vmem:[#allocation8 + $0x560] sm:$0xff]
    %v1524 = vld [vmem:[#allocation8 + $0x568] sm:$0xff]
    %v1525 = vld [vmem:[#allocation8 + $0x570] sm:$0xff]
    %v1526 = vld [vmem:[#allocation8 + $0x578] sm:$0xff]
    %v1527 = vld [vmem:[#allocation8 + $0x580] sm:$0xff]
    %v1528 = vld [vmem:[#allocation8 + $0x588] sm:$0xff]
    %v1529 = vld [vmem:[#allocation8 + $0x590] sm:$0xff]
    %v1530 = vld [vmem:[#allocation8 + $0x598] sm:$0xff]
    %v1531 = vld [vmem:[#allocation8 + $0x5a0] sm:$0xff]
    %v1532 = vld [vmem:[#allocation8 + $0x5a8] sm:$0xff]
    %v1533 = vld [vmem:[#allocation8 + $0x5b0] sm:$0xff]
    %v1534 = vld [vmem:[#allocation8 + $0x5b8] sm:$0xff]
    %v1535 = vld [vmem:[#allocation8 + $0x5c0] sm:$0xff]
    %v1536 = vld [vmem:[#allocation8 + $0x5c8] sm:$0xff]
    %v1537 = vld [vmem:[#allocation8 + $0x5d0] sm:$0xff]
    %v1538 = vld [vmem:[#allocation8 + $0x5d8] sm:$0xff]
    %v1539 = vld [vmem:[#allocation8 + $0x5e0] sm:$0xff]
    %v1540 = vld [vmem:[#allocation8 + $0x5e8] sm:$0xff]
    %v1541 = vld [vmem:[#allocation8 + $0x5f0] sm:$0xff]
    %v1542 = vld [vmem:[#allocation8 + $0x5f8] sm:$0xff]
    %v1543 = vld [vmem:[#allocation8 + $0x600] sm:$0xff]
    %v1544 = vld [vmem:[#allocation8 + $0x608] sm:$0xff]
    %v1545 = vld [vmem:[#allocation8 + $0x610] sm:$0xff]
    %v1546 = vld [vmem:[#allocation8 + $0x618] sm:$0xff]
    %v1547 = vld [vmem:[#allocation8 + $0x620] sm:$0xff]
    %v1548 = vld [vmem:[#allocation8 + $0x628] sm:$0xff]
    %v1549 = vld [vmem:[#allocation8 + $0x630] sm:$0xff]
    %v1550 = vld [vmem:[#allocation8 + $0x638] sm:$0xff]
    %v1551 = vld [vmem:[#allocation8 + $0x640] sm:$0xff]
    %v1552 = vld [vmem:[#allocation8 + $0x648] sm:$0xff]
    %v1553 = vld [vmem:[#allocation8 + $0x650] sm:$0xff]
    %v1554 = vld [vmem:[#allocation8 + $0x658] sm:$0xff]
    %v1555 = vld [vmem:[#allocation8 + $0x660] sm:$0xff]
    %v1556 = vld [vmem:[#allocation8 + $0x668] sm:$0xff]
    %v1557 = vld [vmem:[#allocation8 + $0x670] sm:$0xff]
    %v1558 = vld [vmem:[#allocation8 + $0x678] sm:$0xff]
    %v1559 = vld [vmem:[#allocation8 + $0x680] sm:$0xff]
    %v1560 = vld [vmem:[#allocation8 + $0x688] sm:$0xff]
    %v1561 = vld [vmem:[#allocation8 + $0x690] sm:$0xff]
    %v1562 = vld [vmem:[#allocation8 + $0x698] sm:$0xff]
    %v1563 = vld [vmem:[#allocation8 + $0x6a0] sm:$0xff]
    %v1564 = vld [vmem:[#allocation8 + $0x6a8] sm:$0xff]
    %v1565 = vld [vmem:[#allocation8 + $0x6b0] sm:$0xff]
    %v1566 = vld [vmem:[#allocation8 + $0x6b8] sm:$0xff]
    %v1567 = vld [vmem:[#allocation8 + $0x6c0] sm:$0xff]
    %v1568 = vld [vmem:[#allocation8 + $0x6c8] sm:$0xff]
    %v1569 = vld [vmem:[#allocation8 + $0x6d0] sm:$0xff]
    %v1570 = vld [vmem:[#allocation8 + $0x6d8] sm:$0xff]
    %v1571 = vld [vmem:[#allocation8 + $0x6e0] sm:$0xff]
    %v1572 = vld [vmem:[#allocation8 + $0x6e8] sm:$0xff]
    %v1573 = vld [vmem:[#allocation8 + $0x6f0] sm:$0xff]
    %v1574 = vld [vmem:[#allocation8 + $0x6f8] sm:$0xff]
    %v1575 = vld [vmem:[#allocation8 + $0x700] sm:$0xff]
    %v1576 = vld [vmem:[#allocation8 + $0x708] sm:$0xff]
    %v1577 = vld [vmem:[#allocation8 + $0x710] sm:$0xff]
    %v1578 = vld [vmem:[#allocation8 + $0x718] sm:$0xff]
    %v1579 = vld [vmem:[#allocation8 + $0x720] sm:$0xff]
    %v1580 = vld [vmem:[#allocation8 + $0x728] sm:$0xff]
    %v1581 = vld [vmem:[#allocation8 + $0x730] sm:$0xff]
    %v1582 = vld [vmem:[#allocation8 + $0x738] sm:$0xff]
    %v1583 = vld [vmem:[#allocation8 + $0x740] sm:$0xff]
    %v1584 = vld [vmem:[#allocation8 + $0x748] sm:$0xff]
    %v1585 = vld [vmem:[#allocation8 + $0x750] sm:$0xff]
    %v1586 = vld [vmem:[#allocation8 + $0x758] sm:$0xff]
    %v1587 = vld [vmem:[#allocation8 + $0x760] sm:$0xff]
    %v1588 = vld [vmem:[#allocation8 + $0x768] sm:$0xff]
    %v1589 = vld [vmem:[#allocation8 + $0x770] sm:$0xff]
    %v1590 = vld [vmem:[#allocation8 + $0x778] sm:$0xff]
    %v1591 = vld [vmem:[#allocation8 + $0x780] sm:$0xff]
    %v1592 = vld [vmem:[#allocation8 + $0x788] sm:$0xff]
    %v1593 = vld [vmem:[#allocation8 + $0x790] sm:$0xff]
    %v1594 = vld [vmem:[#allocation8 + $0x798] sm:$0xff]
    %v1595 = vld [vmem:[#allocation8 + $0x7a0] sm:$0xff]
    %v1596 = vld [vmem:[#allocation8 + $0x7a8] sm:$0xff]
    %v1597 = vld [vmem:[#allocation8 + $0x7b0] sm:$0xff]
    %v1598 = vld [vmem:[#allocation8 + $0x7b8] sm:$0xff]
    %v1599 = vld [vmem:[#allocation8 + $0x7c0] sm:$0xff]
    %v1600 = vld [vmem:[#allocation8 + $0x7c8] sm:$0xff]
    %v1601 = vld [vmem:[#allocation8 + $0x7d0] sm:$0xff]
    %v1602 = vld [vmem:[#allocation8 + $0x7d8] sm:$0xff]
    %v1603 = vld [vmem:[#allocation8 + $0x7e0] sm:$0xff]
    %v1604 = vld [vmem:[#allocation8 + $0x7e8] sm:$0xff]
    %v1605 = vld [vmem:[#allocation8 + $0x7f0] sm:$0xff]
    %v1606 = vld [vmem:[#allocation8 + $0x7f8] sm:$0xff]
    %v1607 = vld [vmem:[#allocation8 + $0x800] sm:$0xff]
    %v1608 = vld [vmem:[#allocation8 + $0x808] sm:$0xff]
    %v1609 = vld [vmem:[#allocation8 + $0x810] sm:$0xff]
    %v1610 = vld [vmem:[#allocation8 + $0x818] sm:$0xff]
    %v1611 = vld [vmem:[#allocation8 + $0x820] sm:$0xff]
    %v1612 = vld [vmem:[#allocation8 + $0x828] sm:$0xff]
    %v1613 = vld [vmem:[#allocation8 + $0x830] sm:$0xff]
    %v1614 = vld [vmem:[#allocation8 + $0x838] sm:$0xff]
    %v1615 = vld [vmem:[#allocation8 + $0x840] sm:$0xff]
    %v1616 = vld [vmem:[#allocation8 + $0x848] sm:$0xff]
    %v1617 = vld [vmem:[#allocation8 + $0x850] sm:$0xff]
    %v1618 = vld [vmem:[#allocation8 + $0x858] sm:$0xff]
    %v1619 = vld [vmem:[#allocation8 + $0x860] sm:$0xff]
    %v1620 = vld [vmem:[#allocation8 + $0x868] sm:$0xff]
    %v1621 = vld [vmem:[#allocation8 + $0x870] sm:$0xff]
    %v1622 = vld [vmem:[#allocation8 + $0x878] sm:$0xff]
    %v1623 = vld [vmem:[#allocation8 + $0x880] sm:$0xff]
    %v1624 = vld [vmem:[#allocation8 + $0x888] sm:$0xff]
    %v1625 = vld [vmem:[#allocation8 + $0x890] sm:$0xff]
    %v1626 = vld [vmem:[#allocation8 + $0x898] sm:$0xff]
    %v1627 = vld [vmem:[#allocation8 + $0x8a0] sm:$0xff]
    %v1628 = vld [vmem:[#allocation8 + $0x8a8] sm:$0xff]
    %v1629 = vld [vmem:[#allocation8 + $0x8b0] sm:$0xff]
    %v1630 = vld [vmem:[#allocation8 + $0x8b8] sm:$0xff]
    %v1631 = vld [vmem:[#allocation8 + $0x8c0] sm:$0xff]
    %v1632 = vld [vmem:[#allocation8 + $0x8c8] sm:$0xff]
    %v1633 = vld [vmem:[#allocation8 + $0x8d0] sm:$0xff]
    %v1634 = vld [vmem:[#allocation8 + $0x8d8] sm:$0xff]
    %v1635 = vld [vmem:[#allocation8 + $0x8e0] sm:$0xff]
    %v1636 = vld [vmem:[#allocation8 + $0x8e8] sm:$0xff]
    %v1637 = vld [vmem:[#allocation8 + $0x8f0] sm:$0xff]
    %v1638 = vld [vmem:[#allocation8 + $0x8f8] sm:$0xff]
    %v1639 = vld [vmem:[#allocation8 + $0x900] sm:$0xff]
    %v1640 = vld [vmem:[#allocation8 + $0x908] sm:$0xff]
    %v1641 = vld [vmem:[#allocation8 + $0x910] sm:$0xff]
    %v1642 = vld [vmem:[#allocation8 + $0x918] sm:$0xff]
    %v1643 = vld [vmem:[#allocation8 + $0x920] sm:$0xff]
    %v1644 = vld [vmem:[#allocation8 + $0x928] sm:$0xff]
    %v1645 = vld [vmem:[#allocation8 + $0x930] sm:$0xff]
    %v1646 = vld [vmem:[#allocation8 + $0x938] sm:$0xff]
    %v1647 = vld [vmem:[#allocation8 + $0x940] sm:$0xff]
    %v1648 = vld [vmem:[#allocation8 + $0x948] sm:$0xff]
    %v1649 = vld [vmem:[#allocation8 + $0x950] sm:$0xff]
    %v1650 = vld [vmem:[#allocation8 + $0x958] sm:$0xff]
    %v1651 = vld [vmem:[#allocation8 + $0x960] sm:$0xff]
    %v1652 = vld [vmem:[#allocation8 + $0x968] sm:$0xff]
    %v1653 = vld [vmem:[#allocation8 + $0x970] sm:$0xff]
    %v1654 = vld [vmem:[#allocation8 + $0x978] sm:$0xff]
    %v1655 = vld [vmem:[#allocation8 + $0x980] sm:$0xff]
    %v1656 = vld [vmem:[#allocation8 + $0x988] sm:$0xff]
    %v1657 = vld [vmem:[#allocation8 + $0x990] sm:$0xff]
    %v1658 = vld [vmem:[#allocation8 + $0x998] sm:$0xff]
    %v1659 = vld [vmem:[#allocation8 + $0x9a0] sm:$0xff]
    %v1660 = vld [vmem:[#allocation8 + $0x9a8] sm:$0xff]
    %v1661 = vld [vmem:[#allocation8 + $0x9b0] sm:$0xff]
    %v1662 = vld [vmem:[#allocation8 + $0x9b8] sm:$0xff]
    %v1663 = vld [vmem:[#allocation8 + $0x9c0] sm:$0xff]
    %v1664 = vld [vmem:[#allocation8 + $0x9c8] sm:$0xff]
    %v1665 = vld [vmem:[#allocation8 + $0x9d0] sm:$0xff]
    %v1666 = vld [vmem:[#allocation8 + $0x9d8] sm:$0xff]
    %v1667 = vld [vmem:[#allocation8 + $0x9e0] sm:$0xff]
    %v1668 = vld [vmem:[#allocation8 + $0x9e8] sm:$0xff]
    %v1669 = vld [vmem:[#allocation8 + $0x9f0] sm:$0xff]
    %v1670 = vld [vmem:[#allocation8 + $0x9f8] sm:$0xff]
    %v1671 = vld [vmem:[#allocation8 + $0xa00] sm:$0xff]
    %v1672 = vld [vmem:[#allocation8 + $0xa08] sm:$0xff]
    %v1673 = vld [vmem:[#allocation8 + $0xa10] sm:$0xff]
    %v1674 = vld [vmem:[#allocation8 + $0xa18] sm:$0xff]
    %v1675 = vld [vmem:[#allocation8 + $0xa20] sm:$0xff]
    %v1676 = vld [vmem:[#allocation8 + $0xa28] sm:$0xff]
    %v1677 = vld [vmem:[#allocation8 + $0xa30] sm:$0xff]
    %v1678 = vld [vmem:[#allocation8 + $0xa38] sm:$0xff]
    %v1679 = vld [vmem:[#allocation8 + $0xa40] sm:$0xff]
    %v1680 = vld [vmem:[#allocation8 + $0xa48] sm:$0xff]
    %v1681 = vld [vmem:[#allocation8 + $0xa50] sm:$0xff]
    %v1682 = vld [vmem:[#allocation8 + $0xa58] sm:$0xff]
    %v1683 = vld [vmem:[#allocation8 + $0xa60] sm:$0xff]
    %v1684 = vld [vmem:[#allocation8 + $0xa68] sm:$0xff]
    %v1685 = vld [vmem:[#allocation8 + $0xa70] sm:$0xff]
    %v1686 = vld [vmem:[#allocation8 + $0xa78] sm:$0xff]
    %v1687 = vld [vmem:[#allocation8 + $0xa80] sm:$0xff]
    %v1688 = vld [vmem:[#allocation8 + $0xa88] sm:$0xff]
    %v1689 = vld [vmem:[#allocation8 + $0xa90] sm:$0xff]
    %v1690 = vld [vmem:[#allocation8 + $0xa98] sm:$0xff]
    %v1691 = vld [vmem:[#allocation8 + $0xaa0] sm:$0xff]
    %v1692 = vld [vmem:[#allocation8 + $0xaa8] sm:$0xff]
    %v1693 = vld [vmem:[#allocation8 + $0xab0] sm:$0xff]
    %v1694 = vld [vmem:[#allocation8 + $0xab8] sm:$0xff]
    %v1695 = vld [vmem:[#allocation8 + $0xac0] sm:$0xff]
    %v1696 = vld [vmem:[#allocation8 + $0xac8] sm:$0xff]
    %v1697 = vld [vmem:[#allocation8 + $0xad0] sm:$0xff]
    %v1698 = vld [vmem:[#allocation8 + $0xad8] sm:$0xff]
    %v1699 = vld [vmem:[#allocation8 + $0xae0] sm:$0xff]
    %v1700 = vld [vmem:[#allocation8 + $0xae8] sm:$0xff]
    %v1701 = vld [vmem:[#allocation8 + $0xaf0] sm:$0xff]
    %v1702 = vld [vmem:[#allocation8 + $0xaf8] sm:$0xff]
    %v1703 = vld [vmem:[#allocation8 + $0xb00] sm:$0xff]
    %v1704 = vld [vmem:[#allocation8 + $0xb08] sm:$0xff]
    %v1705 = vld [vmem:[#allocation8 + $0xb10] sm:$0xff]
    %v1706 = vld [vmem:[#allocation8 + $0xb18] sm:$0xff]
    %v1707 = vld [vmem:[#allocation8 + $0xb20] sm:$0xff]
    %v1708 = vld [vmem:[#allocation8 + $0xb28] sm:$0xff]
    %v1709 = vld [vmem:[#allocation8 + $0xb30] sm:$0xff]
    %v1710 = vld [vmem:[#allocation8 + $0xb38] sm:$0xff]
    %v1711 = vld [vmem:[#allocation8 + $0xb40] sm:$0xff]
    %v1712 = vld [vmem:[#allocation8 + $0xb48] sm:$0xff]
    %v1713 = vld [vmem:[#allocation8 + $0xb50] sm:$0xff]
    %v1714 = vld [vmem:[#allocation8 + $0xb58] sm:$0xff]
    %v1715 = vld [vmem:[#allocation8 + $0xb60] sm:$0xff]
    %v1716 = vld [vmem:[#allocation8 + $0xb68] sm:$0xff]
    %v1717 = vld [vmem:[#allocation8 + $0xb70] sm:$0xff]
    %v1718 = vld [vmem:[#allocation8 + $0xb78] sm:$0xff]
    %v1719 = vld [vmem:[#allocation8 + $0xb80] sm:$0xff]
    %v1720 = vld [vmem:[#allocation8 + $0xb88] sm:$0xff]
    %v1721 = vld [vmem:[#allocation8 + $0xb90] sm:$0xff]
    %v1722 = vld [vmem:[#allocation8 + $0xb98] sm:$0xff]
    %v1723 = vld [vmem:[#allocation8 + $0xba0] sm:$0xff]
    %v1724 = vld [vmem:[#allocation8 + $0xba8] sm:$0xff]
    %v1725 = vld [vmem:[#allocation8 + $0xbb0] sm:$0xff]
    %v1726 = vld [vmem:[#allocation8 + $0xbb8] sm:$0xff]
    %v1727 = vld [vmem:[#allocation8 + $0xbc0] sm:$0xff]
    %v1728 = vld [vmem:[#allocation8 + $0xbc8] sm:$0xff]
    %v1729 = vld [vmem:[#allocation8 + $0xbd0] sm:$0xff]
    %v1730 = vld [vmem:[#allocation8 + $0xbd8] sm:$0xff]
    %v1731 = vld [vmem:[#allocation8 + $0xbe0] sm:$0xff]
    %v1732 = vld [vmem:[#allocation8 + $0xbe8] sm:$0xff]
    %v1733 = vld [vmem:[#allocation8 + $0xbf0] sm:$0xff]
    %v1734 = vld [vmem:[#allocation8 + $0xbf8] sm:$0xff]
    %v1735 = vld [vmem:[#allocation8 + $0xc00] sm:$0xff]
    %v1736 = vld [vmem:[#allocation8 + $0xc08] sm:$0xff]
    %v1737 = vld [vmem:[#allocation8 + $0xc10] sm:$0xff]
    %v1738 = vld [vmem:[#allocation8 + $0xc18] sm:$0xff]
    %v1739 = vld [vmem:[#allocation8 + $0xc20] sm:$0xff]
    %v1740 = vld [vmem:[#allocation8 + $0xc28] sm:$0xff]
    %v1741 = vld [vmem:[#allocation8 + $0xc30] sm:$0xff]
    %v1742 = vld [vmem:[#allocation8 + $0xc38] sm:$0xff]
    %v1743 = vld [vmem:[#allocation8 + $0xc40] sm:$0xff]
    %v1744 = vld [vmem:[#allocation8 + $0xc48] sm:$0xff]
    %v1745 = vld [vmem:[#allocation8 + $0xc50] sm:$0xff]
    %v1746 = vld [vmem:[#allocation8 + $0xc58] sm:$0xff]
    %v1747 = vld [vmem:[#allocation8 + $0xc60] sm:$0xff]
    %v1748 = vld [vmem:[#allocation8 + $0xc68] sm:$0xff]
    %v1749 = vld [vmem:[#allocation8 + $0xc70] sm:$0xff]
    %v1750 = vld [vmem:[#allocation8 + $0xc78] sm:$0xff]
    %v1751 = vld [vmem:[#allocation8 + $0xc80] sm:$0xff]
    %v1752 = vld [vmem:[#allocation8 + $0xc88] sm:$0xff]
    %v1753 = vld [vmem:[#allocation8 + $0xc90] sm:$0xff]
    %v1754 = vld [vmem:[#allocation8 + $0xc98] sm:$0xff]
    %v1755 = vld [vmem:[#allocation8 + $0xca0] sm:$0xff]
    %v1756 = vld [vmem:[#allocation8 + $0xca8] sm:$0xff]
    %v1757 = vld [vmem:[#allocation8 + $0xcb0] sm:$0xff]
    %v1758 = vld [vmem:[#allocation8 + $0xcb8] sm:$0xff]
    %v1759 = vld [vmem:[#allocation8 + $0xcc0] sm:$0xff]
    %v1760 = vld [vmem:[#allocation8 + $0xcc8] sm:$0xff]
    %v1761 = vld [vmem:[#allocation8 + $0xcd0] sm:$0xff]
    %v1762 = vld [vmem:[#allocation8 + $0xcd8] sm:$0xff]
    %v1763 = vld [vmem:[#allocation8 + $0xce0] sm:$0xff]
    %v1764 = vld [vmem:[#allocation8 + $0xce8] sm:$0xff]
    %v1765 = vld [vmem:[#allocation8 + $0xcf0] sm:$0xff]
    %v1766 = vld [vmem:[#allocation8 + $0xcf8] sm:$0xff]
    %v1767 = vld [vmem:[#allocation8 + $0xd00] sm:$0xff]
    %v1768 = vld [vmem:[#allocation8 + $0xd08] sm:$0xff]
    %v1769 = vld [vmem:[#allocation8 + $0xd10] sm:$0xff]
    %v1770 = vld [vmem:[#allocation8 + $0xd18] sm:$0xff]
    %v1771 = vld [vmem:[#allocation8 + $0xd20] sm:$0xff]
    %v1772 = vld [vmem:[#allocation8 + $0xd28] sm:$0xff]
    %v1773 = vld [vmem:[#allocation8 + $0xd30] sm:$0xff]
    %v1774 = vld [vmem:[#allocation8 + $0xd38] sm:$0xff]
    %v1775 = vld [vmem:[#allocation8 + $0xd40] sm:$0xff]
    %v1776 = vld [vmem:[#allocation8 + $0xd48] sm:$0xff]
    %v1777 = vld [vmem:[#allocation8 + $0xd50] sm:$0xff]
    %v1778 = vld [vmem:[#allocation8 + $0xd58] sm:$0xff]
    %v1779 = vld [vmem:[#allocation8 + $0xd60] sm:$0xff]
    %v1780 = vld [vmem:[#allocation8 + $0xd68] sm:$0xff]
    %v1781 = vld [vmem:[#allocation8 + $0xd70] sm:$0xff]
    %v1782 = vld [vmem:[#allocation8 + $0xd78] sm:$0xff]
    %v1783 = vld [vmem:[#allocation8 + $0xd80] sm:$0xff]
    %v1784 = vld [vmem:[#allocation8 + $0xd88] sm:$0xff]
    %v1785 = vld [vmem:[#allocation8 + $0xd90] sm:$0xff]
    %v1786 = vld [vmem:[#allocation8 + $0xd98] sm:$0xff]
    %v1787 = vld [vmem:[#allocation8 + $0xda0] sm:$0xff]
    %v1788 = vld [vmem:[#allocation8 + $0xda8] sm:$0xff]
    %v1789 = vld [vmem:[#allocation8 + $0xdb0] sm:$0xff]
    %v1790 = vld [vmem:[#allocation8 + $0xdb8] sm:$0xff]
    %v1791 = vld [vmem:[#allocation8 + $0xdc0] sm:$0xff]
    %v1792 = vld [vmem:[#allocation8 + $0xdc8] sm:$0xff]
    %v1793 = vld [vmem:[#allocation8 + $0xdd0] sm:$0xff]
    %v1794 = vld [vmem:[#allocation8 + $0xdd8] sm:$0xff]
    %v1795 = vld [vmem:[#allocation8 + $0xde0] sm:$0xff]
    %v1796 = vld [vmem:[#allocation8 + $0xde8] sm:$0xff]
    %v1797 = vld [vmem:[#allocation8 + $0xdf0] sm:$0xff]
    %v1798 = vld [vmem:[#allocation8 + $0xdf8] sm:$0xff]
    %v1799 = vld [vmem:[#allocation8 + $0xe00] sm:$0xff]
    %v1800 = vld [vmem:[#allocation8 + $0xe08] sm:$0xff]
    %v1801 = vld [vmem:[#allocation8 + $0xe10] sm:$0xff]
    %v1802 = vld [vmem:[#allocation8 + $0xe18] sm:$0xff]
    %v1803 = vld [vmem:[#allocation8 + $0xe20] sm:$0xff]
    %v1804 = vld [vmem:[#allocation8 + $0xe28] sm:$0xff]
    %v1805 = vld [vmem:[#allocation8 + $0xe30] sm:$0xff]
    %v1806 = vld [vmem:[#allocation8 + $0xe38] sm:$0xff]
    %v1807 = vld [vmem:[#allocation8 + $0xe40] sm:$0xff]
    %v1808 = vld [vmem:[#allocation8 + $0xe48] sm:$0xff]
    %v1809 = vld [vmem:[#allocation8 + $0xe50] sm:$0xff]
    %v1810 = vld [vmem:[#allocation8 + $0xe58] sm:$0xff]
    %v1811 = vld [vmem:[#allocation8 + $0xe60] sm:$0xff]
    %v1812 = vld [vmem:[#allocation8 + $0xe68] sm:$0xff]
    %v1813 = vld [vmem:[#allocation8 + $0xe70] sm:$0xff]
    %v1814 = vld [vmem:[#allocation8 + $0xe78] sm:$0xff]
    %v1815 = vld [vmem:[#allocation8 + $0xe80] sm:$0xff]
    %v1816 = vld [vmem:[#allocation8 + $0xe88] sm:$0xff]
    %v1817 = vld [vmem:[#allocation8 + $0xe90] sm:$0xff]
    %v1818 = vld [vmem:[#allocation8 + $0xe98] sm:$0xff]
    %v1819 = vld [vmem:[#allocation8 + $0xea0] sm:$0xff]
    %v1820 = vld [vmem:[#allocation8 + $0xea8] sm:$0xff]
    %v1821 = vld [vmem:[#allocation8 + $0xeb0] sm:$0xff]
    %v1822 = vld [vmem:[#allocation8 + $0xeb8] sm:$0xff]
    %v1823 = vld [vmem:[#allocation8 + $0xec0] sm:$0xff]
    %v1824 = vld [vmem:[#allocation8 + $0xec8] sm:$0xff]
    %v1825 = vld [vmem:[#allocation8 + $0xed0] sm:$0xff]
    %v1826 = vld [vmem:[#allocation8 + $0xed8] sm:$0xff]
    %v1827 = vld [vmem:[#allocation8 + $0xee0] sm:$0xff]
    %v1828 = vld [vmem:[#allocation8 + $0xee8] sm:$0xff]
    %v1829 = vld [vmem:[#allocation8 + $0xef0] sm:$0xff]
    %v1830 = vld [vmem:[#allocation8 + $0xef8] sm:$0xff]
    %v1831 = vld [vmem:[#allocation8 + $0xf00] sm:$0xff]
    %v1832 = vld [vmem:[#allocation8 + $0xf08] sm:$0xff]
    %v1833 = vld [vmem:[#allocation8 + $0xf10] sm:$0xff]
    %v1834 = vld [vmem:[#allocation8 + $0xf18] sm:$0xff]
    %v1835 = vld [vmem:[#allocation8 + $0xf20] sm:$0xff]
    %v1836 = vld [vmem:[#allocation8 + $0xf28] sm:$0xff]
    %v1837 = vld [vmem:[#allocation8 + $0xf30] sm:$0xff]
    %v1838 = vld [vmem:[#allocation8 + $0xf38] sm:$0xff]
    %v1839 = vld [vmem:[#allocation8 + $0xf40] sm:$0xff]
    %v1840 = vld [vmem:[#allocation8 + $0xf48] sm:$0xff]
    %v1841 = vld [vmem:[#allocation8 + $0xf50] sm:$0xff]
    %v1842 = vld [vmem:[#allocation8 + $0xf58] sm:$0xff]
    %v1843 = vld [vmem:[#allocation8 + $0xf60] sm:$0xff]
    %v1844 = vld [vmem:[#allocation8 + $0xf68] sm:$0xff]
    %v1845 = vld [vmem:[#allocation8 + $0xf70] sm:$0xff]
    %v1846 = vld [vmem:[#allocation8 + $0xf78] sm:$0xff]
    %v1847 = vld [vmem:[#allocation8 + $0xf80] sm:$0xff]
    %v1848 = vld [vmem:[#allocation8 + $0xf88] sm:$0xff]
    %v1849 = vld [vmem:[#allocation8 + $0xf90] sm:$0xff]
    %v1850 = vld [vmem:[#allocation8 + $0xf98] sm:$0xff]
    %v1851 = vld [vmem:[#allocation8 + $0xfa0] sm:$0xff]
    %v1852 = vld [vmem:[#allocation8 + $0xfa8] sm:$0xff]
    %v1853 = vld [vmem:[#allocation8 + $0xfb0] sm:$0xff]
    %v1854 = vld [vmem:[#allocation8 + $0xfb8] sm:$0xff]
    %v1855 = vld [vmem:[#allocation8 + $0xfc0] sm:$0xff]
    %v1856 = vld [vmem:[#allocation8 + $0xfc8] sm:$0xff]
    %v1857 = vld [vmem:[#allocation8 + $0xfd0] sm:$0xff]
    %v1858 = vld [vmem:[#allocation8 + $0xfd8] sm:$0xff]
    %v1859 = vld [vmem:[#allocation8 + $0xfe0] sm:$0xff]
    %v1860 = vld [vmem:[#allocation8 + $0xfe8] sm:$0xff]
    %v1861 = vld [vmem:[#allocation8 + $0xff0] sm:$0xff]
    %v1862 = vld [vmem:[#allocation8 + $0xff8] sm:$0xff]
    %v1863 = vld [vmem:[#allocation9] sm:$0xf]
    %v1865 = vlaneseq
    %v1866 = vshrl.u32 %v1865, 7
    %v1867 = vsub.s32 0, %v1866
    %v1868 = vrot.slane %v1863, %v1867
    %v1869 = vlaneseq
    %v1870 = vshrl.u32 %v1869, 7
    %v1871 = vsub.s32 1, %v1870
    %v1872 = vrot.slane %v1863, %v1871
    %v1873 = vlaneseq
    %v1874 = vshrl.u32 %v1873, 7
    %v1875 = vsub.s32 2, %v1874
    %v1876 = vrot.slane %v1863, %v1875
    %v1877 = vlaneseq
    %v1878 = vshrl.u32 %v1877, 7
    %v1879 = vsub.s32 3, %v1878
    %v1880 = vrot.slane %v1863, %v1879
    %v2397 = vunpack.c.l.b16 %v1351
    %v2398 = vunpack.c.h.b16 %v1351
    %v2399 = vunpack.c.l.b16 %v1352
    %v2400 = vunpack.c.h.b16 %v1352
    %v2401 = vunpack.c.l.b16 %v1353
    %v2402 = vunpack.c.h.b16 %v1353
    %v2403 = vunpack.c.l.b16 %v1354
    %v2404 = vunpack.c.h.b16 %v1354
    %v2405 = vunpack.c.l.b16 %v1355
    %v2406 = vunpack.c.h.b16 %v1355
    %v2407 = vunpack.c.l.b16 %v1356
    %v2408 = vunpack.c.h.b16 %v1356
    %v2409 = vunpack.c.l.b16 %v1357
    %v2410 = vunpack.c.h.b16 %v1357
    %v2411 = vunpack.c.l.b16 %v1358
    %v2412 = vunpack.c.h.b16 %v1358
    %v2413 = vunpack.c.l.b16 %v1359
    %v2414 = vunpack.c.h.b16 %v1359
    %v2415 = vunpack.c.l.b16 %v1360
    %v2416 = vunpack.c.h.b16 %v1360
    %v2417 = vunpack.c.l.b16 %v1361
    %v2418 = vunpack.c.h.b16 %v1361
    %v2419 = vunpack.c.l.b16 %v1362
    %v2420 = vunpack.c.h.b16 %v1362
    %v2421 = vunpack.c.l.b16 %v1363
    %v2422 = vunpack.c.h.b16 %v1363
    %v2423 = vunpack.c.l.b16 %v1364
    %v2424 = vunpack.c.h.b16 %v1364
    %v2425 = vunpack.c.l.b16 %v1365
    %v2426 = vunpack.c.h.b16 %v1365
    %v2427 = vunpack.c.l.b16 %v1366
    %v2428 = vunpack.c.h.b16 %v1366
    %v2429 = vunpack.c.l.b16 %v1367
    %v2430 = vunpack.c.h.b16 %v1367
    %v2431 = vunpack.c.l.b16 %v1368
    %v2432 = vunpack.c.h.b16 %v1368
    %v2433 = vunpack.c.l.b16 %v1369
    %v2434 = vunpack.c.h.b16 %v1369
    %v2435 = vunpack.c.l.b16 %v1370
    %v2436 = vunpack.c.h.b16 %v1370
    %v2437 = vunpack.c.l.b16 %v1371
    %v2438 = vunpack.c.h.b16 %v1371
    %v2439 = vunpack.c.l.b16 %v1372
    %v2440 = vunpack.c.h.b16 %v1372
    %v2441 = vunpack.c.l.b16 %v1373
    %v2442 = vunpack.c.h.b16 %v1373
    %v2443 = vunpack.c.l.b16 %v1374
    %v2444 = vunpack.c.h.b16 %v1374
    %v2445 = vunpack.c.l.b16 %v1375
    %v2446 = vunpack.c.h.b16 %v1375
    %v2447 = vunpack.c.l.b16 %v1376
    %v2448 = vunpack.c.h.b16 %v1376
    %v2449 = vunpack.c.l.b16 %v1377
    %v2450 = vunpack.c.h.b16 %v1377
    %v2451 = vunpack.c.l.b16 %v1378
    %v2452 = vunpack.c.h.b16 %v1378
    %v2453 = vunpack.c.l.b16 %v1379
    %v2454 = vunpack.c.h.b16 %v1379
    %v2455 = vunpack.c.l.b16 %v1380
    %v2456 = vunpack.c.h.b16 %v1380
    %v2457 = vunpack.c.l.b16 %v1381
    %v2458 = vunpack.c.h.b16 %v1381
    %v2459 = vunpack.c.l.b16 %v1382
    %v2460 = vunpack.c.h.b16 %v1382
    %v2461 = vunpack.c.l.b16 %v1383
    %v2462 = vunpack.c.h.b16 %v1383
    %v2463 = vunpack.c.l.b16 %v1384
    %v2464 = vunpack.c.h.b16 %v1384
    %v2465 = vunpack.c.l.b16 %v1385
    %v2466 = vunpack.c.h.b16 %v1385
    %v2467 = vunpack.c.l.b16 %v1386
    %v2468 = vunpack.c.h.b16 %v1386
    %v2469 = vunpack.c.l.b16 %v1387
    %v2470 = vunpack.c.h.b16 %v1387
    %v2471 = vunpack.c.l.b16 %v1388
    %v2472 = vunpack.c.h.b16 %v1388
    %v2473 = vunpack.c.l.b16 %v1389
    %v2474 = vunpack.c.h.b16 %v1389
    %v2475 = vunpack.c.l.b16 %v1390
    %v2476 = vunpack.c.h.b16 %v1390
    %v2477 = vunpack.c.l.b16 %v1391
    %v2478 = vunpack.c.h.b16 %v1391
    %v2479 = vunpack.c.l.b16 %v1392
    %v2480 = vunpack.c.h.b16 %v1392
    %v2481 = vunpack.c.l.b16 %v1393
    %v2482 = vunpack.c.h.b16 %v1393
    %v2483 = vunpack.c.l.b16 %v1394
    %v2484 = vunpack.c.h.b16 %v1394
    %v2485 = vunpack.c.l.b16 %v1395
    %v2486 = vunpack.c.h.b16 %v1395
    %v2487 = vunpack.c.l.b16 %v1396
    %v2488 = vunpack.c.h.b16 %v1396
    %v2489 = vunpack.c.l.b16 %v1397
    %v2490 = vunpack.c.h.b16 %v1397
    %v2491 = vunpack.c.l.b16 %v1398
    %v2492 = vunpack.c.h.b16 %v1398
    %v2493 = vunpack.c.l.b16 %v1399
    %v2494 = vunpack.c.h.b16 %v1399
    %v2495 = vunpack.c.l.b16 %v1400
    %v2496 = vunpack.c.h.b16 %v1400
    %v2497 = vunpack.c.l.b16 %v1401
    %v2498 = vunpack.c.h.b16 %v1401
    %v2499 = vunpack.c.l.b16 %v1402
    %v2500 = vunpack.c.h.b16 %v1402
    %v2501 = vunpack.c.l.b16 %v1403
    %v2502 = vunpack.c.h.b16 %v1403
    %v2503 = vunpack.c.l.b16 %v1404
    %v2504 = vunpack.c.h.b16 %v1404
    %v2505 = vunpack.c.l.b16 %v1405
    %v2506 = vunpack.c.h.b16 %v1405
    %v2507 = vunpack.c.l.b16 %v1406
    %v2508 = vunpack.c.h.b16 %v1406
    %v2509 = vunpack.c.l.b16 %v1407
    %v2510 = vunpack.c.h.b16 %v1407
    %v2511 = vunpack.c.l.b16 %v1408
    %v2512 = vunpack.c.h.b16 %v1408
    %v2513 = vunpack.c.l.b16 %v1409
    %v2514 = vunpack.c.h.b16 %v1409
    %v2515 = vunpack.c.l.b16 %v1410
    %v2516 = vunpack.c.h.b16 %v1410
    %v2517 = vunpack.c.l.b16 %v1411
    %v2518 = vunpack.c.h.b16 %v1411
    %v2519 = vunpack.c.l.b16 %v1412
    %v2520 = vunpack.c.h.b16 %v1412
    %v2521 = vunpack.c.l.b16 %v1413
    %v2522 = vunpack.c.h.b16 %v1413
    %v2523 = vunpack.c.l.b16 %v1414
    %v2524 = vunpack.c.h.b16 %v1414
    %v2525 = vunpack.c.l.b16 %v1415
    %v2526 = vunpack.c.h.b16 %v1415
    %v2527 = vunpack.c.l.b16 %v1416
    %v2528 = vunpack.c.h.b16 %v1416
    %v2529 = vunpack.c.l.b16 %v1417
    %v2530 = vunpack.c.h.b16 %v1417
    %v2531 = vunpack.c.l.b16 %v1418
    %v2532 = vunpack.c.h.b16 %v1418
    %v2533 = vunpack.c.l.b16 %v1419
    %v2534 = vunpack.c.h.b16 %v1419
    %v2535 = vunpack.c.l.b16 %v1420
    %v2536 = vunpack.c.h.b16 %v1420
    %v2537 = vunpack.c.l.b16 %v1421
    %v2538 = vunpack.c.h.b16 %v1421
    %v2539 = vunpack.c.l.b16 %v1422
    %v2540 = vunpack.c.h.b16 %v1422
    %v2541 = vunpack.c.l.b16 %v1423
    %v2542 = vunpack.c.h.b16 %v1423
    %v2543 = vunpack.c.l.b16 %v1424
    %v2544 = vunpack.c.h.b16 %v1424
    %v2545 = vunpack.c.l.b16 %v1425
    %v2546 = vunpack.c.h.b16 %v1425
    %v2547 = vunpack.c.l.b16 %v1426
    %v2548 = vunpack.c.h.b16 %v1426
    %v2549 = vunpack.c.l.b16 %v1427
    %v2550 = vunpack.c.h.b16 %v1427
    %v2551 = vunpack.c.l.b16 %v1428
    %v2552 = vunpack.c.h.b16 %v1428
    %v2553 = vunpack.c.l.b16 %v1429
    %v2554 = vunpack.c.h.b16 %v1429
    %v2555 = vunpack.c.l.b16 %v1430
    %v2556 = vunpack.c.h.b16 %v1430
    %v2557 = vunpack.c.l.b16 %v1431
    %v2558 = vunpack.c.h.b16 %v1431
    %v2559 = vunpack.c.l.b16 %v1432
    %v2560 = vunpack.c.h.b16 %v1432
    %v2561 = vunpack.c.l.b16 %v1433
    %v2562 = vunpack.c.h.b16 %v1433
    %v2563 = vunpack.c.l.b16 %v1434
    %v2564 = vunpack.c.h.b16 %v1434
    %v2565 = vunpack.c.l.b16 %v1435
    %v2566 = vunpack.c.h.b16 %v1435
    %v2567 = vunpack.c.l.b16 %v1436
    %v2568 = vunpack.c.h.b16 %v1436
    %v2569 = vunpack.c.l.b16 %v1437
    %v2570 = vunpack.c.h.b16 %v1437
    %v2571 = vunpack.c.l.b16 %v1438
    %v2572 = vunpack.c.h.b16 %v1438
    %v2573 = vunpack.c.l.b16 %v1439
    %v2574 = vunpack.c.h.b16 %v1439
    %v2575 = vunpack.c.l.b16 %v1440
    %v2576 = vunpack.c.h.b16 %v1440
    %v2577 = vunpack.c.l.b16 %v1441
    %v2578 = vunpack.c.h.b16 %v1441
    %v2579 = vunpack.c.l.b16 %v1442
    %v2580 = vunpack.c.h.b16 %v1442
    %v2581 = vunpack.c.l.b16 %v1443
    %v2582 = vunpack.c.h.b16 %v1443
    %v2583 = vunpack.c.l.b16 %v1444
    %v2584 = vunpack.c.h.b16 %v1444
    %v2585 = vunpack.c.l.b16 %v1445
    %v2586 = vunpack.c.h.b16 %v1445
    %v2587 = vunpack.c.l.b16 %v1446
    %v2588 = vunpack.c.h.b16 %v1446
    %v2589 = vunpack.c.l.b16 %v1447
    %v2590 = vunpack.c.h.b16 %v1447
    %v2591 = vunpack.c.l.b16 %v1448
    %v2592 = vunpack.c.h.b16 %v1448
    %v2593 = vunpack.c.l.b16 %v1449
    %v2594 = vunpack.c.h.b16 %v1449
    %v2595 = vunpack.c.l.b16 %v1450
    %v2596 = vunpack.c.h.b16 %v1450
    %v2597 = vunpack.c.l.b16 %v1451
    %v2598 = vunpack.c.h.b16 %v1451
    %v2599 = vunpack.c.l.b16 %v1452
    %v2600 = vunpack.c.h.b16 %v1452
    %v2601 = vunpack.c.l.b16 %v1453
    %v2602 = vunpack.c.h.b16 %v1453
    %v2603 = vunpack.c.l.b16 %v1454
    %v2604 = vunpack.c.h.b16 %v1454
    %v2605 = vunpack.c.l.b16 %v1455
    %v2606 = vunpack.c.h.b16 %v1455
    %v2607 = vunpack.c.l.b16 %v1456
    %v2608 = vunpack.c.h.b16 %v1456
    %v2609 = vunpack.c.l.b16 %v1457
    %v2610 = vunpack.c.h.b16 %v1457
    %v2611 = vunpack.c.l.b16 %v1458
    %v2612 = vunpack.c.h.b16 %v1458
    %v2613 = vunpack.c.l.b16 %v1459
    %v2614 = vunpack.c.h.b16 %v1459
    %v2615 = vunpack.c.l.b16 %v1460
    %v2616 = vunpack.c.h.b16 %v1460
    %v2617 = vunpack.c.l.b16 %v1461
    %v2618 = vunpack.c.h.b16 %v1461
    %v2619 = vunpack.c.l.b16 %v1462
    %v2620 = vunpack.c.h.b16 %v1462
    %v2621 = vunpack.c.l.b16 %v1463
    %v2622 = vunpack.c.h.b16 %v1463
    %v2623 = vunpack.c.l.b16 %v1464
    %v2624 = vunpack.c.h.b16 %v1464
    %v2625 = vunpack.c.l.b16 %v1465
    %v2626 = vunpack.c.h.b16 %v1465
    %v2627 = vunpack.c.l.b16 %v1466
    %v2628 = vunpack.c.h.b16 %v1466
    %v2629 = vunpack.c.l.b16 %v1467
    %v2630 = vunpack.c.h.b16 %v1467
    %v2631 = vunpack.c.l.b16 %v1468
    %v2632 = vunpack.c.h.b16 %v1468
    %v2633 = vunpack.c.l.b16 %v1469
    %v2634 = vunpack.c.h.b16 %v1469
    %v2635 = vunpack.c.l.b16 %v1470
    %v2636 = vunpack.c.h.b16 %v1470
    %v2637 = vunpack.c.l.b16 %v1471
    %v2638 = vunpack.c.h.b16 %v1471
    %v2639 = vunpack.c.l.b16 %v1472
    %v2640 = vunpack.c.h.b16 %v1472
    %v2641 = vunpack.c.l.b16 %v1473
    %v2642 = vunpack.c.h.b16 %v1473
    %v2643 = vunpack.c.l.b16 %v1474
    %v2644 = vunpack.c.h.b16 %v1474
    %v2645 = vunpack.c.l.b16 %v1475
    %v2646 = vunpack.c.h.b16 %v1475
    %v2647 = vunpack.c.l.b16 %v1476
    %v2648 = vunpack.c.h.b16 %v1476
    %v2649 = vunpack.c.l.b16 %v1477
    %v2650 = vunpack.c.h.b16 %v1477
    %v2651 = vunpack.c.l.b16 %v1478
    %v2652 = vunpack.c.h.b16 %v1478
    %v2653 = vunpack.c.l.b16 %v1479
    %v2654 = vunpack.c.h.b16 %v1479
    %v2655 = vunpack.c.l.b16 %v1480
    %v2656 = vunpack.c.h.b16 %v1480
    %v2657 = vunpack.c.l.b16 %v1481
    %v2658 = vunpack.c.h.b16 %v1481
    %v2659 = vunpack.c.l.b16 %v1482
    %v2660 = vunpack.c.h.b16 %v1482
    %v2661 = vunpack.c.l.b16 %v1483
    %v2662 = vunpack.c.h.b16 %v1483
    %v2663 = vunpack.c.l.b16 %v1484
    %v2664 = vunpack.c.h.b16 %v1484
    %v2665 = vunpack.c.l.b16 %v1485
    %v2666 = vunpack.c.h.b16 %v1485
    %v2667 = vunpack.c.l.b16 %v1486
    %v2668 = vunpack.c.h.b16 %v1486
    %v2669 = vunpack.c.l.b16 %v1487
    %v2670 = vunpack.c.h.b16 %v1487
    %v2671 = vunpack.c.l.b16 %v1488
    %v2672 = vunpack.c.h.b16 %v1488
    %v2673 = vunpack.c.l.b16 %v1489
    %v2674 = vunpack.c.h.b16 %v1489
    %v2675 = vunpack.c.l.b16 %v1490
    %v2676 = vunpack.c.h.b16 %v1490
    %v2677 = vunpack.c.l.b16 %v1491
    %v2678 = vunpack.c.h.b16 %v1491
    %v2679 = vunpack.c.l.b16 %v1492
    %v2680 = vunpack.c.h.b16 %v1492
    %v2681 = vunpack.c.l.b16 %v1493
    %v2682 = vunpack.c.h.b16 %v1493
    %v2683 = vunpack.c.l.b16 %v1494
    %v2684 = vunpack.c.h.b16 %v1494
    %v2685 = vunpack.c.l.b16 %v1495
    %v2686 = vunpack.c.h.b16 %v1495
    %v2687 = vunpack.c.l.b16 %v1496
    %v2688 = vunpack.c.h.b16 %v1496
    %v2689 = vunpack.c.l.b16 %v1497
    %v2690 = vunpack.c.h.b16 %v1497
    %v2691 = vunpack.c.l.b16 %v1498
    %v2692 = vunpack.c.h.b16 %v1498
    %v2693 = vunpack.c.l.b16 %v1499
    %v2694 = vunpack.c.h.b16 %v1499
    %v2695 = vunpack.c.l.b16 %v1500
    %v2696 = vunpack.c.h.b16 %v1500
    %v2697 = vunpack.c.l.b16 %v1501
    %v2698 = vunpack.c.h.b16 %v1501
    %v2699 = vunpack.c.l.b16 %v1502
    %v2700 = vunpack.c.h.b16 %v1502
    %v2701 = vunpack.c.l.b16 %v1503
    %v2702 = vunpack.c.h.b16 %v1503
    %v2703 = vunpack.c.l.b16 %v1504
    %v2704 = vunpack.c.h.b16 %v1504
    %v2705 = vunpack.c.l.b16 %v1505
    %v2706 = vunpack.c.h.b16 %v1505
    %v2707 = vunpack.c.l.b16 %v1506
    %v2708 = vunpack.c.h.b16 %v1506
    %v2709 = vunpack.c.l.b16 %v1507
    %v2710 = vunpack.c.h.b16 %v1507
    %v2711 = vunpack.c.l.b16 %v1508
    %v2712 = vunpack.c.h.b16 %v1508
    %v2713 = vunpack.c.l.b16 %v1509
    %v2714 = vunpack.c.h.b16 %v1509
    %v2715 = vunpack.c.l.b16 %v1510
    %v2716 = vunpack.c.h.b16 %v1510
    %v2717 = vunpack.c.l.b16 %v1511
    %v2718 = vunpack.c.h.b16 %v1511
    %v2719 = vunpack.c.l.b16 %v1512
    %v2720 = vunpack.c.h.b16 %v1512
    %v2721 = vunpack.c.l.b16 %v1513
    %v2722 = vunpack.c.h.b16 %v1513
    %v2723 = vunpack.c.l.b16 %v1514
    %v2724 = vunpack.c.h.b16 %v1514
    %v2725 = vunpack.c.l.b16 %v1515
    %v2726 = vunpack.c.h.b16 %v1515
    %v2727 = vunpack.c.l.b16 %v1516
    %v2728 = vunpack.c.h.b16 %v1516
    %v2729 = vunpack.c.l.b16 %v1517
    %v2730 = vunpack.c.h.b16 %v1517
    %v2731 = vunpack.c.l.b16 %v1518
    %v2732 = vunpack.c.h.b16 %v1518
    %v2733 = vunpack.c.l.b16 %v1519
    %v2734 = vunpack.c.h.b16 %v1519
    %v2735 = vunpack.c.l.b16 %v1520
    %v2736 = vunpack.c.h.b16 %v1520
    %v2737 = vunpack.c.l.b16 %v1521
    %v2738 = vunpack.c.h.b16 %v1521
    %v2739 = vunpack.c.l.b16 %v1522
    %v2740 = vunpack.c.h.b16 %v1522
    %v2741 = vunpack.c.l.b16 %v1523
    %v2742 = vunpack.c.h.b16 %v1523
    %v2743 = vunpack.c.l.b16 %v1524
    %v2744 = vunpack.c.h.b16 %v1524
    %v2745 = vunpack.c.l.b16 %v1525
    %v2746 = vunpack.c.h.b16 %v1525
    %v2747 = vunpack.c.l.b16 %v1526
    %v2748 = vunpack.c.h.b16 %v1526
    %v2749 = vunpack.c.l.b16 %v1527
    %v2750 = vunpack.c.h.b16 %v1527
    %v2751 = vunpack.c.l.b16 %v1528
    %v2752 = vunpack.c.h.b16 %v1528
    %v2753 = vunpack.c.l.b16 %v1529
    %v2754 = vunpack.c.h.b16 %v1529
    %v2755 = vunpack.c.l.b16 %v1530
    %v2756 = vunpack.c.h.b16 %v1530
    %v2757 = vunpack.c.l.b16 %v1531
    %v2758 = vunpack.c.h.b16 %v1531
    %v2759 = vunpack.c.l.b16 %v1532
    %v2760 = vunpack.c.h.b16 %v1532
    %v2761 = vunpack.c.l.b16 %v1533
    %v2762 = vunpack.c.h.b16 %v1533
    %v2763 = vunpack.c.l.b16 %v1534
    %v2764 = vunpack.c.h.b16 %v1534
    %v2765 = vunpack.c.l.b16 %v1535
    %v2766 = vunpack.c.h.b16 %v1535
    %v2767 = vunpack.c.l.b16 %v1536
    %v2768 = vunpack.c.h.b16 %v1536
    %v2769 = vunpack.c.l.b16 %v1537
    %v2770 = vunpack.c.h.b16 %v1537
    %v2771 = vunpack.c.l.b16 %v1538
    %v2772 = vunpack.c.h.b16 %v1538
    %v2773 = vunpack.c.l.b16 %v1539
    %v2774 = vunpack.c.h.b16 %v1539
    %v2775 = vunpack.c.l.b16 %v1540
    %v2776 = vunpack.c.h.b16 %v1540
    %v2777 = vunpack.c.l.b16 %v1541
    %v2778 = vunpack.c.h.b16 %v1541
    %v2779 = vunpack.c.l.b16 %v1542
    %v2780 = vunpack.c.h.b16 %v1542
    %v2781 = vunpack.c.l.b16 %v1543
    %v2782 = vunpack.c.h.b16 %v1543
    %v2783 = vunpack.c.l.b16 %v1544
    %v2784 = vunpack.c.h.b16 %v1544
    %v2785 = vunpack.c.l.b16 %v1545
    %v2786 = vunpack.c.h.b16 %v1545
    %v2787 = vunpack.c.l.b16 %v1546
    %v2788 = vunpack.c.h.b16 %v1546
    %v2789 = vunpack.c.l.b16 %v1547
    %v2790 = vunpack.c.h.b16 %v1547
    %v2791 = vunpack.c.l.b16 %v1548
    %v2792 = vunpack.c.h.b16 %v1548
    %v2793 = vunpack.c.l.b16 %v1549
    %v2794 = vunpack.c.h.b16 %v1549
    %v2795 = vunpack.c.l.b16 %v1550
    %v2796 = vunpack.c.h.b16 %v1550
    %v2797 = vunpack.c.l.b16 %v1551
    %v2798 = vunpack.c.h.b16 %v1551
    %v2799 = vunpack.c.l.b16 %v1552
    %v2800 = vunpack.c.h.b16 %v1552
    %v2801 = vunpack.c.l.b16 %v1553
    %v2802 = vunpack.c.h.b16 %v1553
    %v2803 = vunpack.c.l.b16 %v1554
    %v2804 = vunpack.c.h.b16 %v1554
    %v2805 = vunpack.c.l.b16 %v1555
    %v2806 = vunpack.c.h.b16 %v1555
    %v2807 = vunpack.c.l.b16 %v1556
    %v2808 = vunpack.c.h.b16 %v1556
    %v2809 = vunpack.c.l.b16 %v1557
    %v2810 = vunpack.c.h.b16 %v1557
    %v2811 = vunpack.c.l.b16 %v1558
    %v2812 = vunpack.c.h.b16 %v1558
    %v2813 = vunpack.c.l.b16 %v1559
    %v2814 = vunpack.c.h.b16 %v1559
    %v2815 = vunpack.c.l.b16 %v1560
    %v2816 = vunpack.c.h.b16 %v1560
    %v2817 = vunpack.c.l.b16 %v1561
    %v2818 = vunpack.c.h.b16 %v1561
    %v2819 = vunpack.c.l.b16 %v1562
    %v2820 = vunpack.c.h.b16 %v1562
    %v2821 = vunpack.c.l.b16 %v1563
    %v2822 = vunpack.c.h.b16 %v1563
    %v2823 = vunpack.c.l.b16 %v1564
    %v2824 = vunpack.c.h.b16 %v1564
    %v2825 = vunpack.c.l.b16 %v1565
    %v2826 = vunpack.c.h.b16 %v1565
    %v2827 = vunpack.c.l.b16 %v1566
    %v2828 = vunpack.c.h.b16 %v1566
    %v2829 = vunpack.c.l.b16 %v1567
    %v2830 = vunpack.c.h.b16 %v1567
    %v2831 = vunpack.c.l.b16 %v1568
    %v2832 = vunpack.c.h.b16 %v1568
    %v2833 = vunpack.c.l.b16 %v1569
    %v2834 = vunpack.c.h.b16 %v1569
    %v2835 = vunpack.c.l.b16 %v1570
    %v2836 = vunpack.c.h.b16 %v1570
    %v2837 = vunpack.c.l.b16 %v1571
    %v2838 = vunpack.c.h.b16 %v1571
    %v2839 = vunpack.c.l.b16 %v1572
    %v2840 = vunpack.c.h.b16 %v1572
    %v2841 = vunpack.c.l.b16 %v1573
    %v2842 = vunpack.c.h.b16 %v1573
    %v2843 = vunpack.c.l.b16 %v1574
    %v2844 = vunpack.c.h.b16 %v1574
    %v2845 = vunpack.c.l.b16 %v1575
    %v2846 = vunpack.c.h.b16 %v1575
    %v2847 = vunpack.c.l.b16 %v1576
    %v2848 = vunpack.c.h.b16 %v1576
    %v2849 = vunpack.c.l.b16 %v1577
    %v2850 = vunpack.c.h.b16 %v1577
    %v2851 = vunpack.c.l.b16 %v1578
    %v2852 = vunpack.c.h.b16 %v1578
    %v2853 = vunpack.c.l.b16 %v1579
    %v2854 = vunpack.c.h.b16 %v1579
    %v2855 = vunpack.c.l.b16 %v1580
    %v2856 = vunpack.c.h.b16 %v1580
    %v2857 = vunpack.c.l.b16 %v1581
    %v2858 = vunpack.c.h.b16 %v1581
    %v2859 = vunpack.c.l.b16 %v1582
    %v2860 = vunpack.c.h.b16 %v1582
    %v2861 = vunpack.c.l.b16 %v1583
    %v2862 = vunpack.c.h.b16 %v1583
    %v2863 = vunpack.c.l.b16 %v1584
    %v2864 = vunpack.c.h.b16 %v1584
    %v2865 = vunpack.c.l.b16 %v1585
    %v2866 = vunpack.c.h.b16 %v1585
    %v2867 = vunpack.c.l.b16 %v1586
    %v2868 = vunpack.c.h.b16 %v1586
    %v2869 = vunpack.c.l.b16 %v1587
    %v2870 = vunpack.c.h.b16 %v1587
    %v2871 = vunpack.c.l.b16 %v1588
    %v2872 = vunpack.c.h.b16 %v1588
    %v2873 = vunpack.c.l.b16 %v1589
    %v2874 = vunpack.c.h.b16 %v1589
    %v2875 = vunpack.c.l.b16 %v1590
    %v2876 = vunpack.c.h.b16 %v1590
    %v2877 = vunpack.c.l.b16 %v1591
    %v2878 = vunpack.c.h.b16 %v1591
    %v2879 = vunpack.c.l.b16 %v1592
    %v2880 = vunpack.c.h.b16 %v1592
    %v2881 = vunpack.c.l.b16 %v1593
    %v2882 = vunpack.c.h.b16 %v1593
    %v2883 = vunpack.c.l.b16 %v1594
    %v2884 = vunpack.c.h.b16 %v1594
    %v2885 = vunpack.c.l.b16 %v1595
    %v2886 = vunpack.c.h.b16 %v1595
    %v2887 = vunpack.c.l.b16 %v1596
    %v2888 = vunpack.c.h.b16 %v1596
    %v2889 = vunpack.c.l.b16 %v1597
    %v2890 = vunpack.c.h.b16 %v1597
    %v2891 = vunpack.c.l.b16 %v1598
    %v2892 = vunpack.c.h.b16 %v1598
    %v2893 = vunpack.c.l.b16 %v1599
    %v2894 = vunpack.c.h.b16 %v1599
    %v2895 = vunpack.c.l.b16 %v1600
    %v2896 = vunpack.c.h.b16 %v1600
    %v2897 = vunpack.c.l.b16 %v1601
    %v2898 = vunpack.c.h.b16 %v1601
    %v2899 = vunpack.c.l.b16 %v1602
    %v2900 = vunpack.c.h.b16 %v1602
    %v2901 = vunpack.c.l.b16 %v1603
    %v2902 = vunpack.c.h.b16 %v1603
    %v2903 = vunpack.c.l.b16 %v1604
    %v2904 = vunpack.c.h.b16 %v1604
    %v2905 = vunpack.c.l.b16 %v1605
    %v2906 = vunpack.c.h.b16 %v1605
    %v2907 = vunpack.c.l.b16 %v1606
    %v2908 = vunpack.c.h.b16 %v1606
    %v2909 = vunpack.c.l.b16 %v1607
    %v2910 = vunpack.c.h.b16 %v1607
    %v2911 = vunpack.c.l.b16 %v1608
    %v2912 = vunpack.c.h.b16 %v1608
    %v2913 = vunpack.c.l.b16 %v1609
    %v2914 = vunpack.c.h.b16 %v1609
    %v2915 = vunpack.c.l.b16 %v1610
    %v2916 = vunpack.c.h.b16 %v1610
    %v2917 = vunpack.c.l.b16 %v1611
    %v2918 = vunpack.c.h.b16 %v1611
    %v2919 = vunpack.c.l.b16 %v1612
    %v2920 = vunpack.c.h.b16 %v1612
    %v2921 = vunpack.c.l.b16 %v1613
    %v2922 = vunpack.c.h.b16 %v1613
    %v2923 = vunpack.c.l.b16 %v1614
    %v2924 = vunpack.c.h.b16 %v1614
    %v2925 = vunpack.c.l.b16 %v1615
    %v2926 = vunpack.c.h.b16 %v1615
    %v2927 = vunpack.c.l.b16 %v1616
    %v2928 = vunpack.c.h.b16 %v1616
    %v2929 = vunpack.c.l.b16 %v1617
    %v2930 = vunpack.c.h.b16 %v1617
    %v2931 = vunpack.c.l.b16 %v1618
    %v2932 = vunpack.c.h.b16 %v1618
    %v2933 = vunpack.c.l.b16 %v1619
    %v2934 = vunpack.c.h.b16 %v1619
    %v2935 = vunpack.c.l.b16 %v1620
    %v2936 = vunpack.c.h.b16 %v1620
    %v2937 = vunpack.c.l.b16 %v1621
    %v2938 = vunpack.c.h.b16 %v1621
    %v2939 = vunpack.c.l.b16 %v1622
    %v2940 = vunpack.c.h.b16 %v1622
    %v2941 = vunpack.c.l.b16 %v1623
    %v2942 = vunpack.c.h.b16 %v1623
    %v2943 = vunpack.c.l.b16 %v1624
    %v2944 = vunpack.c.h.b16 %v1624
    %v2945 = vunpack.c.l.b16 %v1625
    %v2946 = vunpack.c.h.b16 %v1625
    %v2947 = vunpack.c.l.b16 %v1626
    %v2948 = vunpack.c.h.b16 %v1626
    %v2949 = vunpack.c.l.b16 %v1627
    %v2950 = vunpack.c.h.b16 %v1627
    %v2951 = vunpack.c.l.b16 %v1628
    %v2952 = vunpack.c.h.b16 %v1628
    %v2953 = vunpack.c.l.b16 %v1629
    %v2954 = vunpack.c.h.b16 %v1629
    %v2955 = vunpack.c.l.b16 %v1630
    %v2956 = vunpack.c.h.b16 %v1630
    %v2957 = vunpack.c.l.b16 %v1631
    %v2958 = vunpack.c.h.b16 %v1631
    %v2959 = vunpack.c.l.b16 %v1632
    %v2960 = vunpack.c.h.b16 %v1632
    %v2961 = vunpack.c.l.b16 %v1633
    %v2962 = vunpack.c.h.b16 %v1633
    %v2963 = vunpack.c.l.b16 %v1634
    %v2964 = vunpack.c.h.b16 %v1634
    %v2965 = vunpack.c.l.b16 %v1635
    %v2966 = vunpack.c.h.b16 %v1635
    %v2967 = vunpack.c.l.b16 %v1636
    %v2968 = vunpack.c.h.b16 %v1636
    %v2969 = vunpack.c.l.b16 %v1637
    %v2970 = vunpack.c.h.b16 %v1637
    %v2971 = vunpack.c.l.b16 %v1638
    %v2972 = vunpack.c.h.b16 %v1638
    %v2973 = vunpack.c.l.b16 %v1639
    %v2974 = vunpack.c.h.b16 %v1639
    %v2975 = vunpack.c.l.b16 %v1640
    %v2976 = vunpack.c.h.b16 %v1640
    %v2977 = vunpack.c.l.b16 %v1641
    %v2978 = vunpack.c.h.b16 %v1641
    %v2979 = vunpack.c.l.b16 %v1642
    %v2980 = vunpack.c.h.b16 %v1642
    %v2981 = vunpack.c.l.b16 %v1643
    %v2982 = vunpack.c.h.b16 %v1643
    %v2983 = vunpack.c.l.b16 %v1644
    %v2984 = vunpack.c.h.b16 %v1644
    %v2985 = vunpack.c.l.b16 %v1645
    %v2986 = vunpack.c.h.b16 %v1645
    %v2987 = vunpack.c.l.b16 %v1646
    %v2988 = vunpack.c.h.b16 %v1646
    %v2989 = vunpack.c.l.b16 %v1647
    %v2990 = vunpack.c.h.b16 %v1647
    %v2991 = vunpack.c.l.b16 %v1648
    %v2992 = vunpack.c.h.b16 %v1648
    %v2993 = vunpack.c.l.b16 %v1649
    %v2994 = vunpack.c.h.b16 %v1649
    %v2995 = vunpack.c.l.b16 %v1650
    %v2996 = vunpack.c.h.b16 %v1650
    %v2997 = vunpack.c.l.b16 %v1651
    %v2998 = vunpack.c.h.b16 %v1651
    %v2999 = vunpack.c.l.b16 %v1652
    %v3000 = vunpack.c.h.b16 %v1652
    %v3001 = vunpack.c.l.b16 %v1653
    %v3002 = vunpack.c.h.b16 %v1653
    %v3003 = vunpack.c.l.b16 %v1654
    %v3004 = vunpack.c.h.b16 %v1654
    %v3005 = vunpack.c.l.b16 %v1655
    %v3006 = vunpack.c.h.b16 %v1655
    %v3007 = vunpack.c.l.b16 %v1656
    %v3008 = vunpack.c.h.b16 %v1656
    %v3009 = vunpack.c.l.b16 %v1657
    %v3010 = vunpack.c.h.b16 %v1657
    %v3011 = vunpack.c.l.b16 %v1658
    %v3012 = vunpack.c.h.b16 %v1658
    %v3013 = vunpack.c.l.b16 %v1659
    %v3014 = vunpack.c.h.b16 %v1659
    %v3015 = vunpack.c.l.b16 %v1660
    %v3016 = vunpack.c.h.b16 %v1660
    %v3017 = vunpack.c.l.b16 %v1661
    %v3018 = vunpack.c.h.b16 %v1661
    %v3019 = vunpack.c.l.b16 %v1662
    %v3020 = vunpack.c.h.b16 %v1662
    %v3021 = vunpack.c.l.b16 %v1663
    %v3022 = vunpack.c.h.b16 %v1663
    %v3023 = vunpack.c.l.b16 %v1664
    %v3024 = vunpack.c.h.b16 %v1664
    %v3025 = vunpack.c.l.b16 %v1665
    %v3026 = vunpack.c.h.b16 %v1665
    %v3027 = vunpack.c.l.b16 %v1666
    %v3028 = vunpack.c.h.b16 %v1666
    %v3029 = vunpack.c.l.b16 %v1667
    %v3030 = vunpack.c.h.b16 %v1667
    %v3031 = vunpack.c.l.b16 %v1668
    %v3032 = vunpack.c.h.b16 %v1668
    %v3033 = vunpack.c.l.b16 %v1669
    %v3034 = vunpack.c.h.b16 %v1669
    %v3035 = vunpack.c.l.b16 %v1670
    %v3036 = vunpack.c.h.b16 %v1670
    %v3037 = vunpack.c.l.b16 %v1671
    %v3038 = vunpack.c.h.b16 %v1671
    %v3039 = vunpack.c.l.b16 %v1672
    %v3040 = vunpack.c.h.b16 %v1672
    %v3041 = vunpack.c.l.b16 %v1673
    %v3042 = vunpack.c.h.b16 %v1673
    %v3043 = vunpack.c.l.b16 %v1674
    %v3044 = vunpack.c.h.b16 %v1674
    %v3045 = vunpack.c.l.b16 %v1675
    %v3046 = vunpack.c.h.b16 %v1675
    %v3047 = vunpack.c.l.b16 %v1676
    %v3048 = vunpack.c.h.b16 %v1676
    %v3049 = vunpack.c.l.b16 %v1677
    %v3050 = vunpack.c.h.b16 %v1677
    %v3051 = vunpack.c.l.b16 %v1678
    %v3052 = vunpack.c.h.b16 %v1678
    %v3053 = vunpack.c.l.b16 %v1679
    %v3054 = vunpack.c.h.b16 %v1679
    %v3055 = vunpack.c.l.b16 %v1680
    %v3056 = vunpack.c.h.b16 %v1680
    %v3057 = vunpack.c.l.b16 %v1681
    %v3058 = vunpack.c.h.b16 %v1681
    %v3059 = vunpack.c.l.b16 %v1682
    %v3060 = vunpack.c.h.b16 %v1682
    %v3061 = vunpack.c.l.b16 %v1683
    %v3062 = vunpack.c.h.b16 %v1683
    %v3063 = vunpack.c.l.b16 %v1684
    %v3064 = vunpack.c.h.b16 %v1684
    %v3065 = vunpack.c.l.b16 %v1685
    %v3066 = vunpack.c.h.b16 %v1685
    %v3067 = vunpack.c.l.b16 %v1686
    %v3068 = vunpack.c.h.b16 %v1686
    %v3069 = vunpack.c.l.b16 %v1687
    %v3070 = vunpack.c.h.b16 %v1687
    %v3071 = vunpack.c.l.b16 %v1688
    %v3072 = vunpack.c.h.b16 %v1688
    %v3073 = vunpack.c.l.b16 %v1689
    %v3074 = vunpack.c.h.b16 %v1689
    %v3075 = vunpack.c.l.b16 %v1690
    %v3076 = vunpack.c.h.b16 %v1690
    %v3077 = vunpack.c.l.b16 %v1691
    %v3078 = vunpack.c.h.b16 %v1691
    %v3079 = vunpack.c.l.b16 %v1692
    %v3080 = vunpack.c.h.b16 %v1692
    %v3081 = vunpack.c.l.b16 %v1693
    %v3082 = vunpack.c.h.b16 %v1693
    %v3083 = vunpack.c.l.b16 %v1694
    %v3084 = vunpack.c.h.b16 %v1694
    %v3085 = vunpack.c.l.b16 %v1695
    %v3086 = vunpack.c.h.b16 %v1695
    %v3087 = vunpack.c.l.b16 %v1696
    %v3088 = vunpack.c.h.b16 %v1696
    %v3089 = vunpack.c.l.b16 %v1697
    %v3090 = vunpack.c.h.b16 %v1697
    %v3091 = vunpack.c.l.b16 %v1698
    %v3092 = vunpack.c.h.b16 %v1698
    %v3093 = vunpack.c.l.b16 %v1699
    %v3094 = vunpack.c.h.b16 %v1699
    %v3095 = vunpack.c.l.b16 %v1700
    %v3096 = vunpack.c.h.b16 %v1700
    %v3097 = vunpack.c.l.b16 %v1701
    %v3098 = vunpack.c.h.b16 %v1701
    %v3099 = vunpack.c.l.b16 %v1702
    %v3100 = vunpack.c.h.b16 %v1702
    %v3101 = vunpack.c.l.b16 %v1703
    %v3102 = vunpack.c.h.b16 %v1703
    %v3103 = vunpack.c.l.b16 %v1704
    %v3104 = vunpack.c.h.b16 %v1704
    %v3105 = vunpack.c.l.b16 %v1705
    %v3106 = vunpack.c.h.b16 %v1705
    %v3107 = vunpack.c.l.b16 %v1706
    %v3108 = vunpack.c.h.b16 %v1706
    %v3109 = vunpack.c.l.b16 %v1707
    %v3110 = vunpack.c.h.b16 %v1707
    %v3111 = vunpack.c.l.b16 %v1708
    %v3112 = vunpack.c.h.b16 %v1708
    %v3113 = vunpack.c.l.b16 %v1709
    %v3114 = vunpack.c.h.b16 %v1709
    %v3115 = vunpack.c.l.b16 %v1710
    %v3116 = vunpack.c.h.b16 %v1710
    %v3117 = vunpack.c.l.b16 %v1711
    %v3118 = vunpack.c.h.b16 %v1711
    %v3119 = vunpack.c.l.b16 %v1712
    %v3120 = vunpack.c.h.b16 %v1712
    %v3121 = vunpack.c.l.b16 %v1713
    %v3122 = vunpack.c.h.b16 %v1713
    %v3123 = vunpack.c.l.b16 %v1714
    %v3124 = vunpack.c.h.b16 %v1714
    %v3125 = vunpack.c.l.b16 %v1715
    %v3126 = vunpack.c.h.b16 %v1715
    %v3127 = vunpack.c.l.b16 %v1716
    %v3128 = vunpack.c.h.b16 %v1716
    %v3129 = vunpack.c.l.b16 %v1717
    %v3130 = vunpack.c.h.b16 %v1717
    %v3131 = vunpack.c.l.b16 %v1718
    %v3132 = vunpack.c.h.b16 %v1718
    %v3133 = vunpack.c.l.b16 %v1719
    %v3134 = vunpack.c.h.b16 %v1719
    %v3135 = vunpack.c.l.b16 %v1720
    %v3136 = vunpack.c.h.b16 %v1720
    %v3137 = vunpack.c.l.b16 %v1721
    %v3138 = vunpack.c.h.b16 %v1721
    %v3139 = vunpack.c.l.b16 %v1722
    %v3140 = vunpack.c.h.b16 %v1722
    %v3141 = vunpack.c.l.b16 %v1723
    %v3142 = vunpack.c.h.b16 %v1723
    %v3143 = vunpack.c.l.b16 %v1724
    %v3144 = vunpack.c.h.b16 %v1724
    %v3145 = vunpack.c.l.b16 %v1725
    %v3146 = vunpack.c.h.b16 %v1725
    %v3147 = vunpack.c.l.b16 %v1726
    %v3148 = vunpack.c.h.b16 %v1726
    %v3149 = vunpack.c.l.b16 %v1727
    %v3150 = vunpack.c.h.b16 %v1727
    %v3151 = vunpack.c.l.b16 %v1728
    %v3152 = vunpack.c.h.b16 %v1728
    %v3153 = vunpack.c.l.b16 %v1729
    %v3154 = vunpack.c.h.b16 %v1729
    %v3155 = vunpack.c.l.b16 %v1730
    %v3156 = vunpack.c.h.b16 %v1730
    %v3157 = vunpack.c.l.b16 %v1731
    %v3158 = vunpack.c.h.b16 %v1731
    %v3159 = vunpack.c.l.b16 %v1732
    %v3160 = vunpack.c.h.b16 %v1732
    %v3161 = vunpack.c.l.b16 %v1733
    %v3162 = vunpack.c.h.b16 %v1733
    %v3163 = vunpack.c.l.b16 %v1734
    %v3164 = vunpack.c.h.b16 %v1734
    %v3165 = vunpack.c.l.b16 %v1735
    %v3166 = vunpack.c.h.b16 %v1735
    %v3167 = vunpack.c.l.b16 %v1736
    %v3168 = vunpack.c.h.b16 %v1736
    %v3169 = vunpack.c.l.b16 %v1737
    %v3170 = vunpack.c.h.b16 %v1737
    %v3171 = vunpack.c.l.b16 %v1738
    %v3172 = vunpack.c.h.b16 %v1738
    %v3173 = vunpack.c.l.b16 %v1739
    %v3174 = vunpack.c.h.b16 %v1739
    %v3175 = vunpack.c.l.b16 %v1740
    %v3176 = vunpack.c.h.b16 %v1740
    %v3177 = vunpack.c.l.b16 %v1741
    %v3178 = vunpack.c.h.b16 %v1741
    %v3179 = vunpack.c.l.b16 %v1742
    %v3180 = vunpack.c.h.b16 %v1742
    %v3181 = vunpack.c.l.b16 %v1743
    %v3182 = vunpack.c.h.b16 %v1743
    %v3183 = vunpack.c.l.b16 %v1744
    %v3184 = vunpack.c.h.b16 %v1744
    %v3185 = vunpack.c.l.b16 %v1745
    %v3186 = vunpack.c.h.b16 %v1745
    %v3187 = vunpack.c.l.b16 %v1746
    %v3188 = vunpack.c.h.b16 %v1746
    %v3189 = vunpack.c.l.b16 %v1747
    %v3190 = vunpack.c.h.b16 %v1747
    %v3191 = vunpack.c.l.b16 %v1748
    %v3192 = vunpack.c.h.b16 %v1748
    %v3193 = vunpack.c.l.b16 %v1749
    %v3194 = vunpack.c.h.b16 %v1749
    %v3195 = vunpack.c.l.b16 %v1750
    %v3196 = vunpack.c.h.b16 %v1750
    %v3197 = vunpack.c.l.b16 %v1751
    %v3198 = vunpack.c.h.b16 %v1751
    %v3199 = vunpack.c.l.b16 %v1752
    %v3200 = vunpack.c.h.b16 %v1752
    %v3201 = vunpack.c.l.b16 %v1753
    %v3202 = vunpack.c.h.b16 %v1753
    %v3203 = vunpack.c.l.b16 %v1754
    %v3204 = vunpack.c.h.b16 %v1754
    %v3205 = vunpack.c.l.b16 %v1755
    %v3206 = vunpack.c.h.b16 %v1755
    %v3207 = vunpack.c.l.b16 %v1756
    %v3208 = vunpack.c.h.b16 %v1756
    %v3209 = vunpack.c.l.b16 %v1757
    %v3210 = vunpack.c.h.b16 %v1757
    %v3211 = vunpack.c.l.b16 %v1758
    %v3212 = vunpack.c.h.b16 %v1758
    %v3213 = vunpack.c.l.b16 %v1759
    %v3214 = vunpack.c.h.b16 %v1759
    %v3215 = vunpack.c.l.b16 %v1760
    %v3216 = vunpack.c.h.b16 %v1760
    %v3217 = vunpack.c.l.b16 %v1761
    %v3218 = vunpack.c.h.b16 %v1761
    %v3219 = vunpack.c.l.b16 %v1762
    %v3220 = vunpack.c.h.b16 %v1762
    %v3221 = vunpack.c.l.b16 %v1763
    %v3222 = vunpack.c.h.b16 %v1763
    %v3223 = vunpack.c.l.b16 %v1764
    %v3224 = vunpack.c.h.b16 %v1764
    %v3225 = vunpack.c.l.b16 %v1765
    %v3226 = vunpack.c.h.b16 %v1765
    %v3227 = vunpack.c.l.b16 %v1766
    %v3228 = vunpack.c.h.b16 %v1766
    %v3229 = vunpack.c.l.b16 %v1767
    %v3230 = vunpack.c.h.b16 %v1767
    %v3231 = vunpack.c.l.b16 %v1768
    %v3232 = vunpack.c.h.b16 %v1768
    %v3233 = vunpack.c.l.b16 %v1769
    %v3234 = vunpack.c.h.b16 %v1769
    %v3235 = vunpack.c.l.b16 %v1770
    %v3236 = vunpack.c.h.b16 %v1770
    %v3237 = vunpack.c.l.b16 %v1771
    %v3238 = vunpack.c.h.b16 %v1771
    %v3239 = vunpack.c.l.b16 %v1772
    %v3240 = vunpack.c.h.b16 %v1772
    %v3241 = vunpack.c.l.b16 %v1773
    %v3242 = vunpack.c.h.b16 %v1773
    %v3243 = vunpack.c.l.b16 %v1774
    %v3244 = vunpack.c.h.b16 %v1774
    %v3245 = vunpack.c.l.b16 %v1775
    %v3246 = vunpack.c.h.b16 %v1775
    %v3247 = vunpack.c.l.b16 %v1776
    %v3248 = vunpack.c.h.b16 %v1776
    %v3249 = vunpack.c.l.b16 %v1777
    %v3250 = vunpack.c.h.b16 %v1777
    %v3251 = vunpack.c.l.b16 %v1778
    %v3252 = vunpack.c.h.b16 %v1778
    %v3253 = vunpack.c.l.b16 %v1779
    %v3254 = vunpack.c.h.b16 %v1779
    %v3255 = vunpack.c.l.b16 %v1780
    %v3256 = vunpack.c.h.b16 %v1780
    %v3257 = vunpack.c.l.b16 %v1781
    %v3258 = vunpack.c.h.b16 %v1781
    %v3259 = vunpack.c.l.b16 %v1782
    %v3260 = vunpack.c.h.b16 %v1782
    %v3261 = vunpack.c.l.b16 %v1783
    %v3262 = vunpack.c.h.b16 %v1783
    %v3263 = vunpack.c.l.b16 %v1784
    %v3264 = vunpack.c.h.b16 %v1784
    %v3265 = vunpack.c.l.b16 %v1785
    %v3266 = vunpack.c.h.b16 %v1785
    %v3267 = vunpack.c.l.b16 %v1786
    %v3268 = vunpack.c.h.b16 %v1786
    %v3269 = vunpack.c.l.b16 %v1787
    %v3270 = vunpack.c.h.b16 %v1787
    %v3271 = vunpack.c.l.b16 %v1788
    %v3272 = vunpack.c.h.b16 %v1788
    %v3273 = vunpack.c.l.b16 %v1789
    %v3274 = vunpack.c.h.b16 %v1789
    %v3275 = vunpack.c.l.b16 %v1790
    %v3276 = vunpack.c.h.b16 %v1790
    %v3277 = vunpack.c.l.b16 %v1791
    %v3278 = vunpack.c.h.b16 %v1791
    %v3279 = vunpack.c.l.b16 %v1792
    %v3280 = vunpack.c.h.b16 %v1792
    %v3281 = vunpack.c.l.b16 %v1793
    %v3282 = vunpack.c.h.b16 %v1793
    %v3283 = vunpack.c.l.b16 %v1794
    %v3284 = vunpack.c.h.b16 %v1794
    %v3285 = vunpack.c.l.b16 %v1795
    %v3286 = vunpack.c.h.b16 %v1795
    %v3287 = vunpack.c.l.b16 %v1796
    %v3288 = vunpack.c.h.b16 %v1796
    %v3289 = vunpack.c.l.b16 %v1797
    %v3290 = vunpack.c.h.b16 %v1797
    %v3291 = vunpack.c.l.b16 %v1798
    %v3292 = vunpack.c.h.b16 %v1798
    %v3293 = vunpack.c.l.b16 %v1799
    %v3294 = vunpack.c.h.b16 %v1799
    %v3295 = vunpack.c.l.b16 %v1800
    %v3296 = vunpack.c.h.b16 %v1800
    %v3297 = vunpack.c.l.b16 %v1801
    %v3298 = vunpack.c.h.b16 %v1801
    %v3299 = vunpack.c.l.b16 %v1802
    %v3300 = vunpack.c.h.b16 %v1802
    %v3301 = vunpack.c.l.b16 %v1803
    %v3302 = vunpack.c.h.b16 %v1803
    %v3303 = vunpack.c.l.b16 %v1804
    %v3304 = vunpack.c.h.b16 %v1804
    %v3305 = vunpack.c.l.b16 %v1805
    %v3306 = vunpack.c.h.b16 %v1805
    %v3307 = vunpack.c.l.b16 %v1806
    %v3308 = vunpack.c.h.b16 %v1806
    %v3309 = vunpack.c.l.b16 %v1807
    %v3310 = vunpack.c.h.b16 %v1807
    %v3311 = vunpack.c.l.b16 %v1808
    %v3312 = vunpack.c.h.b16 %v1808
    %v3313 = vunpack.c.l.b16 %v1809
    %v3314 = vunpack.c.h.b16 %v1809
    %v3315 = vunpack.c.l.b16 %v1810
    %v3316 = vunpack.c.h.b16 %v1810
    %v3317 = vunpack.c.l.b16 %v1811
    %v3318 = vunpack.c.h.b16 %v1811
    %v3319 = vunpack.c.l.b16 %v1812
    %v3320 = vunpack.c.h.b16 %v1812
    %v3321 = vunpack.c.l.b16 %v1813
    %v3322 = vunpack.c.h.b16 %v1813
    %v3323 = vunpack.c.l.b16 %v1814
    %v3324 = vunpack.c.h.b16 %v1814
    %v3325 = vunpack.c.l.b16 %v1815
    %v3326 = vunpack.c.h.b16 %v1815
    %v3327 = vunpack.c.l.b16 %v1816
    %v3328 = vunpack.c.h.b16 %v1816
    %v3329 = vunpack.c.l.b16 %v1817
    %v3330 = vunpack.c.h.b16 %v1817
    %v3331 = vunpack.c.l.b16 %v1818
    %v3332 = vunpack.c.h.b16 %v1818
    %v3333 = vunpack.c.l.b16 %v1819
    %v3334 = vunpack.c.h.b16 %v1819
    %v3335 = vunpack.c.l.b16 %v1820
    %v3336 = vunpack.c.h.b16 %v1820
    %v3337 = vunpack.c.l.b16 %v1821
    %v3338 = vunpack.c.h.b16 %v1821
    %v3339 = vunpack.c.l.b16 %v1822
    %v3340 = vunpack.c.h.b16 %v1822
    %v3341 = vunpack.c.l.b16 %v1823
    %v3342 = vunpack.c.h.b16 %v1823
    %v3343 = vunpack.c.l.b16 %v1824
    %v3344 = vunpack.c.h.b16 %v1824
    %v3345 = vunpack.c.l.b16 %v1825
    %v3346 = vunpack.c.h.b16 %v1825
    %v3347 = vunpack.c.l.b16 %v1826
    %v3348 = vunpack.c.h.b16 %v1826
    %v3349 = vunpack.c.l.b16 %v1827
    %v3350 = vunpack.c.h.b16 %v1827
    %v3351 = vunpack.c.l.b16 %v1828
    %v3352 = vunpack.c.h.b16 %v1828
    %v3353 = vunpack.c.l.b16 %v1829
    %v3354 = vunpack.c.h.b16 %v1829
    %v3355 = vunpack.c.l.b16 %v1830
    %v3356 = vunpack.c.h.b16 %v1830
    %v3357 = vunpack.c.l.b16 %v1831
    %v3358 = vunpack.c.h.b16 %v1831
    %v3359 = vunpack.c.l.b16 %v1832
    %v3360 = vunpack.c.h.b16 %v1832
    %v3361 = vunpack.c.l.b16 %v1833
    %v3362 = vunpack.c.h.b16 %v1833
    %v3363 = vunpack.c.l.b16 %v1834
    %v3364 = vunpack.c.h.b16 %v1834
    %v3365 = vunpack.c.l.b16 %v1835
    %v3366 = vunpack.c.h.b16 %v1835
    %v3367 = vunpack.c.l.b16 %v1836
    %v3368 = vunpack.c.h.b16 %v1836
    %v3369 = vunpack.c.l.b16 %v1837
    %v3370 = vunpack.c.h.b16 %v1837
    %v3371 = vunpack.c.l.b16 %v1838
    %v3372 = vunpack.c.h.b16 %v1838
    %v3373 = vunpack.c.l.b16 %v1839
    %v3374 = vunpack.c.h.b16 %v1839
    %v3375 = vunpack.c.l.b16 %v1840
    %v3376 = vunpack.c.h.b16 %v1840
    %v3377 = vunpack.c.l.b16 %v1841
    %v3378 = vunpack.c.h.b16 %v1841
    %v3379 = vunpack.c.l.b16 %v1842
    %v3380 = vunpack.c.h.b16 %v1842
    %v3381 = vunpack.c.l.b16 %v1843
    %v3382 = vunpack.c.h.b16 %v1843
    %v3383 = vunpack.c.l.b16 %v1844
    %v3384 = vunpack.c.h.b16 %v1844
    %v3385 = vunpack.c.l.b16 %v1845
    %v3386 = vunpack.c.h.b16 %v1845
    %v3387 = vunpack.c.l.b16 %v1846
    %v3388 = vunpack.c.h.b16 %v1846
    %v3389 = vunpack.c.l.b16 %v1847
    %v3390 = vunpack.c.h.b16 %v1847
    %v3391 = vunpack.c.l.b16 %v1848
    %v3392 = vunpack.c.h.b16 %v1848
    %v3393 = vunpack.c.l.b16 %v1849
    %v3394 = vunpack.c.h.b16 %v1849
    %v3395 = vunpack.c.l.b16 %v1850
    %v3396 = vunpack.c.h.b16 %v1850
    %v3397 = vunpack.c.l.b16 %v1851
    %v3398 = vunpack.c.h.b16 %v1851
    %v3399 = vunpack.c.l.b16 %v1852
    %v3400 = vunpack.c.h.b16 %v1852
    %v3401 = vunpack.c.l.b16 %v1853
    %v3402 = vunpack.c.h.b16 %v1853
    %v3403 = vunpack.c.l.b16 %v1854
    %v3404 = vunpack.c.h.b16 %v1854
    %v3405 = vunpack.c.l.b16 %v1855
    %v3406 = vunpack.c.h.b16 %v1855
    %v3407 = vunpack.c.l.b16 %v1856
    %v3408 = vunpack.c.h.b16 %v1856
    %v3409 = vunpack.c.l.b16 %v1857
    %v3410 = vunpack.c.h.b16 %v1857
    %v3411 = vunpack.c.l.b16 %v1858
    %v3412 = vunpack.c.h.b16 %v1858
    %v3413 = vunpack.c.l.b16 %v1859
    %v3414 = vunpack.c.h.b16 %v1859
    %v3415 = vunpack.c.l.b16 %v1860
    %v3416 = vunpack.c.h.b16 %v1860
    %v3417 = vunpack.c.l.b16 %v1861
    %v3418 = vunpack.c.h.b16 %v1861
    %v3419 = vunpack.c.l.b16 %v1862
    %v3420 = vunpack.c.h.b16 %v1862
    %v3421 = vpack.c.b16 %v2401, %v2397
    %v3422 = vpack.c.b16 %v2402, %v2398
    %v3423 = vpack.c.b16 %v2403, %v2399
    %v3424 = vpack.c.b16 %v2404, %v2400
    %v3425 = vpack.c.b16 %v2409, %v2405
    %v3426 = vpack.c.b16 %v2410, %v2406
    %v3427 = vpack.c.b16 %v2411, %v2407
    %v3428 = vpack.c.b16 %v2412, %v2408
    %v3429 = vpack.c.b16 %v2417, %v2413
    %v3430 = vpack.c.b16 %v2418, %v2414
    %v3431 = vpack.c.b16 %v2419, %v2415
    %v3432 = vpack.c.b16 %v2420, %v2416
    %v3433 = vpack.c.b16 %v2425, %v2421
    %v3434 = vpack.c.b16 %v2426, %v2422
    %v3435 = vpack.c.b16 %v2427, %v2423
    %v3436 = vpack.c.b16 %v2428, %v2424
    %v3437 = vpack.c.b16 %v2433, %v2429
    %v3438 = vpack.c.b16 %v2434, %v2430
    %v3439 = vpack.c.b16 %v2435, %v2431
    %v3440 = vpack.c.b16 %v2436, %v2432
    %v3441 = vpack.c.b16 %v2441, %v2437
    %v3442 = vpack.c.b16 %v2442, %v2438
    %v3443 = vpack.c.b16 %v2443, %v2439
    %v3444 = vpack.c.b16 %v2444, %v2440
    %v3445 = vpack.c.b16 %v2449, %v2445
    %v3446 = vpack.c.b16 %v2450, %v2446
    %v3447 = vpack.c.b16 %v2451, %v2447
    %v3448 = vpack.c.b16 %v2452, %v2448
    %v3449 = vpack.c.b16 %v2457, %v2453
    %v3450 = vpack.c.b16 %v2458, %v2454
    %v3451 = vpack.c.b16 %v2459, %v2455
    %v3452 = vpack.c.b16 %v2460, %v2456
    %v3453 = vpack.c.b16 %v2465, %v2461
    %v3454 = vpack.c.b16 %v2466, %v2462
    %v3455 = vpack.c.b16 %v2467, %v2463
    %v3456 = vpack.c.b16 %v2468, %v2464
    %v3457 = vpack.c.b16 %v2473, %v2469
    %v3458 = vpack.c.b16 %v2474, %v2470
    %v3459 = vpack.c.b16 %v2475, %v2471
    %v3460 = vpack.c.b16 %v2476, %v2472
    %v3461 = vpack.c.b16 %v2481, %v2477
    %v3462 = vpack.c.b16 %v2482, %v2478
    %v3463 = vpack.c.b16 %v2483, %v2479
    %v3464 = vpack.c.b16 %v2484, %v2480
    %v3465 = vpack.c.b16 %v2489, %v2485
    %v3466 = vpack.c.b16 %v2490, %v2486
    %v3467 = vpack.c.b16 %v2491, %v2487
    %v3468 = vpack.c.b16 %v2492, %v2488
    %v3469 = vpack.c.b16 %v2497, %v2493
    %v3470 = vpack.c.b16 %v2498, %v2494
    %v3471 = vpack.c.b16 %v2499, %v2495
    %v3472 = vpack.c.b16 %v2500, %v2496
    %v3473 = vpack.c.b16 %v2505, %v2501
    %v3474 = vpack.c.b16 %v2506, %v2502
    %v3475 = vpack.c.b16 %v2507, %v2503
    %v3476 = vpack.c.b16 %v2508, %v2504
    %v3477 = vpack.c.b16 %v2513, %v2509
    %v3478 = vpack.c.b16 %v2514, %v2510
    %v3479 = vpack.c.b16 %v2515, %v2511
    %v3480 = vpack.c.b16 %v2516, %v2512
    %v3481 = vpack.c.b16 %v2521, %v2517
    %v3482 = vpack.c.b16 %v2522, %v2518
    %v3483 = vpack.c.b16 %v2523, %v2519
    %v3484 = vpack.c.b16 %v2524, %v2520
    %v3485 = vpack.c.b16 %v2529, %v2525
    %v3486 = vpack.c.b16 %v2530, %v2526
    %v3487 = vpack.c.b16 %v2531, %v2527
    %v3488 = vpack.c.b16 %v2532, %v2528
    %v3489 = vpack.c.b16 %v2537, %v2533
    %v3490 = vpack.c.b16 %v2538, %v2534
    %v3491 = vpack.c.b16 %v2539, %v2535
    %v3492 = vpack.c.b16 %v2540, %v2536
    %v3493 = vpack.c.b16 %v2545, %v2541
    %v3494 = vpack.c.b16 %v2546, %v2542
    %v3495 = vpack.c.b16 %v2547, %v2543
    %v3496 = vpack.c.b16 %v2548, %v2544
    %v3497 = vpack.c.b16 %v2553, %v2549
    %v3498 = vpack.c.b16 %v2554, %v2550
    %v3499 = vpack.c.b16 %v2555, %v2551
    %v3500 = vpack.c.b16 %v2556, %v2552
    %v3501 = vpack.c.b16 %v2561, %v2557
    %v3502 = vpack.c.b16 %v2562, %v2558
    %v3503 = vpack.c.b16 %v2563, %v2559
    %v3504 = vpack.c.b16 %v2564, %v2560
    %v3505 = vpack.c.b16 %v2569, %v2565
    %v3506 = vpack.c.b16 %v2570, %v2566
    %v3507 = vpack.c.b16 %v2571, %v2567
    %v3508 = vpack.c.b16 %v2572, %v2568
    %v3509 = vpack.c.b16 %v2577, %v2573
    %v3510 = vpack.c.b16 %v2578, %v2574
    %v3511 = vpack.c.b16 %v2579, %v2575
    %v3512 = vpack.c.b16 %v2580, %v2576
    %v3513 = vpack.c.b16 %v2585, %v2581
    %v3514 = vpack.c.b16 %v2586, %v2582
    %v3515 = vpack.c.b16 %v2587, %v2583
    %v3516 = vpack.c.b16 %v2588, %v2584
    %v3517 = vpack.c.b16 %v2593, %v2589
    %v3518 = vpack.c.b16 %v2594, %v2590
    %v3519 = vpack.c.b16 %v2595, %v2591
    %v3520 = vpack.c.b16 %v2596, %v2592
    %v3521 = vpack.c.b16 %v2601, %v2597
    %v3522 = vpack.c.b16 %v2602, %v2598
    %v3523 = vpack.c.b16 %v2603, %v2599
    %v3524 = vpack.c.b16 %v2604, %v2600
    %v3525 = vpack.c.b16 %v2609, %v2605
    %v3526 = vpack.c.b16 %v2610, %v2606
    %v3527 = vpack.c.b16 %v2611, %v2607
    %v3528 = vpack.c.b16 %v2612, %v2608
    %v3529 = vpack.c.b16 %v2617, %v2613
    %v3530 = vpack.c.b16 %v2618, %v2614
    %v3531 = vpack.c.b16 %v2619, %v2615
    %v3532 = vpack.c.b16 %v2620, %v2616
    %v3533 = vpack.c.b16 %v2625, %v2621
    %v3534 = vpack.c.b16 %v2626, %v2622
    %v3535 = vpack.c.b16 %v2627, %v2623
    %v3536 = vpack.c.b16 %v2628, %v2624
    %v3537 = vpack.c.b16 %v2633, %v2629
    %v3538 = vpack.c.b16 %v2634, %v2630
    %v3539 = vpack.c.b16 %v2635, %v2631
    %v3540 = vpack.c.b16 %v2636, %v2632
    %v3541 = vpack.c.b16 %v2641, %v2637
    %v3542 = vpack.c.b16 %v2642, %v2638
    %v3543 = vpack.c.b16 %v2643, %v2639
    %v3544 = vpack.c.b16 %v2644, %v2640
    %v3545 = vpack.c.b16 %v2649, %v2645
    %v3546 = vpack.c.b16 %v2650, %v2646
    %v3547 = vpack.c.b16 %v2651, %v2647
    %v3548 = vpack.c.b16 %v2652, %v2648
    %v3549 = vpack.c.b16 %v2657, %v2653
    %v3550 = vpack.c.b16 %v2658, %v2654
    %v3551 = vpack.c.b16 %v2659, %v2655
    %v3552 = vpack.c.b16 %v2660, %v2656
    %v3553 = vpack.c.b16 %v2665, %v2661
    %v3554 = vpack.c.b16 %v2666, %v2662
    %v3555 = vpack.c.b16 %v2667, %v2663
    %v3556 = vpack.c.b16 %v2668, %v2664
    %v3557 = vpack.c.b16 %v2673, %v2669
    %v3558 = vpack.c.b16 %v2674, %v2670
    %v3559 = vpack.c.b16 %v2675, %v2671
    %v3560 = vpack.c.b16 %v2676, %v2672
    %v3561 = vpack.c.b16 %v2681, %v2677
    %v3562 = vpack.c.b16 %v2682, %v2678
    %v3563 = vpack.c.b16 %v2683, %v2679
    %v3564 = vpack.c.b16 %v2684, %v2680
    %v3565 = vpack.c.b16 %v2689, %v2685
    %v3566 = vpack.c.b16 %v2690, %v2686
    %v3567 = vpack.c.b16 %v2691, %v2687
    %v3568 = vpack.c.b16 %v2692, %v2688
    %v3569 = vpack.c.b16 %v2697, %v2693
    %v3570 = vpack.c.b16 %v2698, %v2694
    %v3571 = vpack.c.b16 %v2699, %v2695
    %v3572 = vpack.c.b16 %v2700, %v2696
    %v3573 = vpack.c.b16 %v2705, %v2701
    %v3574 = vpack.c.b16 %v2706, %v2702
    %v3575 = vpack.c.b16 %v2707, %v2703
    %v3576 = vpack.c.b16 %v2708, %v2704
    %v3577 = vpack.c.b16 %v2713, %v2709
    %v3578 = vpack.c.b16 %v2714, %v2710
    %v3579 = vpack.c.b16 %v2715, %v2711
    %v3580 = vpack.c.b16 %v2716, %v2712
    %v3581 = vpack.c.b16 %v2721, %v2717
    %v3582 = vpack.c.b16 %v2722, %v2718
    %v3583 = vpack.c.b16 %v2723, %v2719
    %v3584 = vpack.c.b16 %v2724, %v2720
    %v3585 = vpack.c.b16 %v2729, %v2725
    %v3586 = vpack.c.b16 %v2730, %v2726
    %v3587 = vpack.c.b16 %v2731, %v2727
    %v3588 = vpack.c.b16 %v2732, %v2728
    %v3589 = vpack.c.b16 %v2737, %v2733
    %v3590 = vpack.c.b16 %v2738, %v2734
    %v3591 = vpack.c.b16 %v2739, %v2735
    %v3592 = vpack.c.b16 %v2740, %v2736
    %v3593 = vpack.c.b16 %v2745, %v2741
    %v3594 = vpack.c.b16 %v2746, %v2742
    %v3595 = vpack.c.b16 %v2747, %v2743
    %v3596 = vpack.c.b16 %v2748, %v2744
    %v3597 = vpack.c.b16 %v2753, %v2749
    %v3598 = vpack.c.b16 %v2754, %v2750
    %v3599 = vpack.c.b16 %v2755, %v2751
    %v3600 = vpack.c.b16 %v2756, %v2752
    %v3601 = vpack.c.b16 %v2761, %v2757
    %v3602 = vpack.c.b16 %v2762, %v2758
    %v3603 = vpack.c.b16 %v2763, %v2759
    %v3604 = vpack.c.b16 %v2764, %v2760
    %v3605 = vpack.c.b16 %v2769, %v2765
    %v3606 = vpack.c.b16 %v2770, %v2766
    %v3607 = vpack.c.b16 %v2771, %v2767
    %v3608 = vpack.c.b16 %v2772, %v2768
    %v3609 = vpack.c.b16 %v2777, %v2773
    %v3610 = vpack.c.b16 %v2778, %v2774
    %v3611 = vpack.c.b16 %v2779, %v2775
    %v3612 = vpack.c.b16 %v2780, %v2776
    %v3613 = vpack.c.b16 %v2785, %v2781
    %v3614 = vpack.c.b16 %v2786, %v2782
    %v3615 = vpack.c.b16 %v2787, %v2783
    %v3616 = vpack.c.b16 %v2788, %v2784
    %v3617 = vpack.c.b16 %v2793, %v2789
    %v3618 = vpack.c.b16 %v2794, %v2790
    %v3619 = vpack.c.b16 %v2795, %v2791
    %v3620 = vpack.c.b16 %v2796, %v2792
    %v3621 = vpack.c.b16 %v2801, %v2797
    %v3622 = vpack.c.b16 %v2802, %v2798
    %v3623 = vpack.c.b16 %v2803, %v2799
    %v3624 = vpack.c.b16 %v2804, %v2800
    %v3625 = vpack.c.b16 %v2809, %v2805
    %v3626 = vpack.c.b16 %v2810, %v2806
    %v3627 = vpack.c.b16 %v2811, %v2807
    %v3628 = vpack.c.b16 %v2812, %v2808
    %v3629 = vpack.c.b16 %v2817, %v2813
    %v3630 = vpack.c.b16 %v2818, %v2814
    %v3631 = vpack.c.b16 %v2819, %v2815
    %v3632 = vpack.c.b16 %v2820, %v2816
    %v3633 = vpack.c.b16 %v2825, %v2821
    %v3634 = vpack.c.b16 %v2826, %v2822
    %v3635 = vpack.c.b16 %v2827, %v2823
    %v3636 = vpack.c.b16 %v2828, %v2824
    %v3637 = vpack.c.b16 %v2833, %v2829
    %v3638 = vpack.c.b16 %v2834, %v2830
    %v3639 = vpack.c.b16 %v2835, %v2831
    %v3640 = vpack.c.b16 %v2836, %v2832
    %v3641 = vpack.c.b16 %v2841, %v2837
    %v3642 = vpack.c.b16 %v2842, %v2838
    %v3643 = vpack.c.b16 %v2843, %v2839
    %v3644 = vpack.c.b16 %v2844, %v2840
    %v3645 = vpack.c.b16 %v2849, %v2845
    %v3646 = vpack.c.b16 %v2850, %v2846
    %v3647 = vpack.c.b16 %v2851, %v2847
    %v3648 = vpack.c.b16 %v2852, %v2848
    %v3649 = vpack.c.b16 %v2857, %v2853
    %v3650 = vpack.c.b16 %v2858, %v2854
    %v3651 = vpack.c.b16 %v2859, %v2855
    %v3652 = vpack.c.b16 %v2860, %v2856
    %v3653 = vpack.c.b16 %v2865, %v2861
    %v3654 = vpack.c.b16 %v2866, %v2862
    %v3655 = vpack.c.b16 %v2867, %v2863
    %v3656 = vpack.c.b16 %v2868, %v2864
    %v3657 = vpack.c.b16 %v2873, %v2869
    %v3658 = vpack.c.b16 %v2874, %v2870
    %v3659 = vpack.c.b16 %v2875, %v2871
    %v3660 = vpack.c.b16 %v2876, %v2872
    %v3661 = vpack.c.b16 %v2881, %v2877
    %v3662 = vpack.c.b16 %v2882, %v2878
    %v3663 = vpack.c.b16 %v2883, %v2879
    %v3664 = vpack.c.b16 %v2884, %v2880
    %v3665 = vpack.c.b16 %v2889, %v2885
    %v3666 = vpack.c.b16 %v2890, %v2886
    %v3667 = vpack.c.b16 %v2891, %v2887
    %v3668 = vpack.c.b16 %v2892, %v2888
    %v3669 = vpack.c.b16 %v2897, %v2893
    %v3670 = vpack.c.b16 %v2898, %v2894
    %v3671 = vpack.c.b16 %v2899, %v2895
    %v3672 = vpack.c.b16 %v2900, %v2896
    %v3673 = vpack.c.b16 %v2905, %v2901
    %v3674 = vpack.c.b16 %v2906, %v2902
    %v3675 = vpack.c.b16 %v2907, %v2903
    %v3676 = vpack.c.b16 %v2908, %v2904
    %v3677 = vpack.c.b16 %v2913, %v2909
    %v3678 = vpack.c.b16 %v2914, %v2910
    %v3679 = vpack.c.b16 %v2915, %v2911
    %v3680 = vpack.c.b16 %v2916, %v2912
    %v3681 = vpack.c.b16 %v2921, %v2917
    %v3682 = vpack.c.b16 %v2922, %v2918
    %v3683 = vpack.c.b16 %v2923, %v2919
    %v3684 = vpack.c.b16 %v2924, %v2920
    %v3685 = vpack.c.b16 %v2929, %v2925
    %v3686 = vpack.c.b16 %v2930, %v2926
    %v3687 = vpack.c.b16 %v2931, %v2927
    %v3688 = vpack.c.b16 %v2932, %v2928
    %v3689 = vpack.c.b16 %v2937, %v2933
    %v3690 = vpack.c.b16 %v2938, %v2934
    %v3691 = vpack.c.b16 %v2939, %v2935
    %v3692 = vpack.c.b16 %v2940, %v2936
    %v3693 = vpack.c.b16 %v2945, %v2941
    %v3694 = vpack.c.b16 %v2946, %v2942
    %v3695 = vpack.c.b16 %v2947, %v2943
    %v3696 = vpack.c.b16 %v2948, %v2944
    %v3697 = vpack.c.b16 %v2953, %v2949
    %v3698 = vpack.c.b16 %v2954, %v2950
    %v3699 = vpack.c.b16 %v2955, %v2951
    %v3700 = vpack.c.b16 %v2956, %v2952
    %v3701 = vpack.c.b16 %v2961, %v2957
    %v3702 = vpack.c.b16 %v2962, %v2958
    %v3703 = vpack.c.b16 %v2963, %v2959
    %v3704 = vpack.c.b16 %v2964, %v2960
    %v3705 = vpack.c.b16 %v2969, %v2965
    %v3706 = vpack.c.b16 %v2970, %v2966
    %v3707 = vpack.c.b16 %v2971, %v2967
    %v3708 = vpack.c.b16 %v2972, %v2968
    %v3709 = vpack.c.b16 %v2977, %v2973
    %v3710 = vpack.c.b16 %v2978, %v2974
    %v3711 = vpack.c.b16 %v2979, %v2975
    %v3712 = vpack.c.b16 %v2980, %v2976
    %v3713 = vpack.c.b16 %v2985, %v2981
    %v3714 = vpack.c.b16 %v2986, %v2982
    %v3715 = vpack.c.b16 %v2987, %v2983
    %v3716 = vpack.c.b16 %v2988, %v2984
    %v3717 = vpack.c.b16 %v2993, %v2989
    %v3718 = vpack.c.b16 %v2994, %v2990
    %v3719 = vpack.c.b16 %v2995, %v2991
    %v3720 = vpack.c.b16 %v2996, %v2992
    %v3721 = vpack.c.b16 %v3001, %v2997
    %v3722 = vpack.c.b16 %v3002, %v2998
    %v3723 = vpack.c.b16 %v3003, %v2999
    %v3724 = vpack.c.b16 %v3004, %v3000
    %v3725 = vpack.c.b16 %v3009, %v3005
    %v3726 = vpack.c.b16 %v3010, %v3006
    %v3727 = vpack.c.b16 %v3011, %v3007
    %v3728 = vpack.c.b16 %v3012, %v3008
    %v3729 = vpack.c.b16 %v3017, %v3013
    %v3730 = vpack.c.b16 %v3018, %v3014
    %v3731 = vpack.c.b16 %v3019, %v3015
    %v3732 = vpack.c.b16 %v3020, %v3016
    %v3733 = vpack.c.b16 %v3025, %v3021
    %v3734 = vpack.c.b16 %v3026, %v3022
    %v3735 = vpack.c.b16 %v3027, %v3023
    %v3736 = vpack.c.b16 %v3028, %v3024
    %v3737 = vpack.c.b16 %v3033, %v3029
    %v3738 = vpack.c.b16 %v3034, %v3030
    %v3739 = vpack.c.b16 %v3035, %v3031
    %v3740 = vpack.c.b16 %v3036, %v3032
    %v3741 = vpack.c.b16 %v3041, %v3037
    %v3742 = vpack.c.b16 %v3042, %v3038
    %v3743 = vpack.c.b16 %v3043, %v3039
    %v3744 = vpack.c.b16 %v3044, %v3040
    %v3745 = vpack.c.b16 %v3049, %v3045
    %v3746 = vpack.c.b16 %v3050, %v3046
    %v3747 = vpack.c.b16 %v3051, %v3047
    %v3748 = vpack.c.b16 %v3052, %v3048
    %v3749 = vpack.c.b16 %v3057, %v3053
    %v3750 = vpack.c.b16 %v3058, %v3054
    %v3751 = vpack.c.b16 %v3059, %v3055
    %v3752 = vpack.c.b16 %v3060, %v3056
    %v3753 = vpack.c.b16 %v3065, %v3061
    %v3754 = vpack.c.b16 %v3066, %v3062
    %v3755 = vpack.c.b16 %v3067, %v3063
    %v3756 = vpack.c.b16 %v3068, %v3064
    %v3757 = vpack.c.b16 %v3073, %v3069
    %v3758 = vpack.c.b16 %v3074, %v3070
    %v3759 = vpack.c.b16 %v3075, %v3071
    %v3760 = vpack.c.b16 %v3076, %v3072
    %v3761 = vpack.c.b16 %v3081, %v3077
    %v3762 = vpack.c.b16 %v3082, %v3078
    %v3763 = vpack.c.b16 %v3083, %v3079
    %v3764 = vpack.c.b16 %v3084, %v3080
    %v3765 = vpack.c.b16 %v3089, %v3085
    %v3766 = vpack.c.b16 %v3090, %v3086
    %v3767 = vpack.c.b16 %v3091, %v3087
    %v3768 = vpack.c.b16 %v3092, %v3088
    %v3769 = vpack.c.b16 %v3097, %v3093
    %v3770 = vpack.c.b16 %v3098, %v3094
    %v3771 = vpack.c.b16 %v3099, %v3095
    %v3772 = vpack.c.b16 %v3100, %v3096
    %v3773 = vpack.c.b16 %v3105, %v3101
    %v3774 = vpack.c.b16 %v3106, %v3102
    %v3775 = vpack.c.b16 %v3107, %v3103
    %v3776 = vpack.c.b16 %v3108, %v3104
    %v3777 = vpack.c.b16 %v3113, %v3109
    %v3778 = vpack.c.b16 %v3114, %v3110
    %v3779 = vpack.c.b16 %v3115, %v3111
    %v3780 = vpack.c.b16 %v3116, %v3112
    %v3781 = vpack.c.b16 %v3121, %v3117
    %v3782 = vpack.c.b16 %v3122, %v3118
    %v3783 = vpack.c.b16 %v3123, %v3119
    %v3784 = vpack.c.b16 %v3124, %v3120
    %v3785 = vpack.c.b16 %v3129, %v3125
    %v3786 = vpack.c.b16 %v3130, %v3126
    %v3787 = vpack.c.b16 %v3131, %v3127
    %v3788 = vpack.c.b16 %v3132, %v3128
    %v3789 = vpack.c.b16 %v3137, %v3133
    %v3790 = vpack.c.b16 %v3138, %v3134
    %v3791 = vpack.c.b16 %v3139, %v3135
    %v3792 = vpack.c.b16 %v3140, %v3136
    %v3793 = vpack.c.b16 %v3145, %v3141
    %v3794 = vpack.c.b16 %v3146, %v3142
    %v3795 = vpack.c.b16 %v3147, %v3143
    %v3796 = vpack.c.b16 %v3148, %v3144
    %v3797 = vpack.c.b16 %v3153, %v3149
    %v3798 = vpack.c.b16 %v3154, %v3150
    %v3799 = vpack.c.b16 %v3155, %v3151
    %v3800 = vpack.c.b16 %v3156, %v3152
    %v3801 = vpack.c.b16 %v3161, %v3157
    %v3802 = vpack.c.b16 %v3162, %v3158
    %v3803 = vpack.c.b16 %v3163, %v3159
    %v3804 = vpack.c.b16 %v3164, %v3160
    %v3805 = vpack.c.b16 %v3169, %v3165
    %v3806 = vpack.c.b16 %v3170, %v3166
    %v3807 = vpack.c.b16 %v3171, %v3167
    %v3808 = vpack.c.b16 %v3172, %v3168
    %v3809 = vpack.c.b16 %v3177, %v3173
    %v3810 = vpack.c.b16 %v3178, %v3174
    %v3811 = vpack.c.b16 %v3179, %v3175
    %v3812 = vpack.c.b16 %v3180, %v3176
    %v3813 = vpack.c.b16 %v3185, %v3181
    %v3814 = vpack.c.b16 %v3186, %v3182
    %v3815 = vpack.c.b16 %v3187, %v3183
    %v3816 = vpack.c.b16 %v3188, %v3184
    %v3817 = vpack.c.b16 %v3193, %v3189
    %v3818 = vpack.c.b16 %v3194, %v3190
    %v3819 = vpack.c.b16 %v3195, %v3191
    %v3820 = vpack.c.b16 %v3196, %v3192
    %v3821 = vpack.c.b16 %v3201, %v3197
    %v3822 = vpack.c.b16 %v3202, %v3198
    %v3823 = vpack.c.b16 %v3203, %v3199
    %v3824 = vpack.c.b16 %v3204, %v3200
    %v3825 = vpack.c.b16 %v3209, %v3205
    %v3826 = vpack.c.b16 %v3210, %v3206
    %v3827 = vpack.c.b16 %v3211, %v3207
    %v3828 = vpack.c.b16 %v3212, %v3208
    %v3829 = vpack.c.b16 %v3217, %v3213
    %v3830 = vpack.c.b16 %v3218, %v3214
    %v3831 = vpack.c.b16 %v3219, %v3215
    %v3832 = vpack.c.b16 %v3220, %v3216
    %v3833 = vpack.c.b16 %v3225, %v3221
    %v3834 = vpack.c.b16 %v3226, %v3222
    %v3835 = vpack.c.b16 %v3227, %v3223
    %v3836 = vpack.c.b16 %v3228, %v3224
    %v3837 = vpack.c.b16 %v3233, %v3229
    %v3838 = vpack.c.b16 %v3234, %v3230
    %v3839 = vpack.c.b16 %v3235, %v3231
    %v3840 = vpack.c.b16 %v3236, %v3232
    %v3841 = vpack.c.b16 %v3241, %v3237
    %v3842 = vpack.c.b16 %v3242, %v3238
    %v3843 = vpack.c.b16 %v3243, %v3239
    %v3844 = vpack.c.b16 %v3244, %v3240
    %v3845 = vpack.c.b16 %v3249, %v3245
    %v3846 = vpack.c.b16 %v3250, %v3246
    %v3847 = vpack.c.b16 %v3251, %v3247
    %v3848 = vpack.c.b16 %v3252, %v3248
    %v3849 = vpack.c.b16 %v3257, %v3253
    %v3850 = vpack.c.b16 %v3258, %v3254
    %v3851 = vpack.c.b16 %v3259, %v3255
    %v3852 = vpack.c.b16 %v3260, %v3256
    %v3853 = vpack.c.b16 %v3265, %v3261
    %v3854 = vpack.c.b16 %v3266, %v3262
    %v3855 = vpack.c.b16 %v3267, %v3263
    %v3856 = vpack.c.b16 %v3268, %v3264
    %v3857 = vpack.c.b16 %v3273, %v3269
    %v3858 = vpack.c.b16 %v3274, %v3270
    %v3859 = vpack.c.b16 %v3275, %v3271
    %v3860 = vpack.c.b16 %v3276, %v3272
    %v3861 = vpack.c.b16 %v3281, %v3277
    %v3862 = vpack.c.b16 %v3282, %v3278
    %v3863 = vpack.c.b16 %v3283, %v3279
    %v3864 = vpack.c.b16 %v3284, %v3280
    %v3865 = vpack.c.b16 %v3289, %v3285
    %v3866 = vpack.c.b16 %v3290, %v3286
    %v3867 = vpack.c.b16 %v3291, %v3287
    %v3868 = vpack.c.b16 %v3292, %v3288
    %v3869 = vpack.c.b16 %v3297, %v3293
    %v3870 = vpack.c.b16 %v3298, %v3294
    %v3871 = vpack.c.b16 %v3299, %v3295
    %v3872 = vpack.c.b16 %v3300, %v3296
    %v3873 = vpack.c.b16 %v3305, %v3301
    %v3874 = vpack.c.b16 %v3306, %v3302
    %v3875 = vpack.c.b16 %v3307, %v3303
    %v3876 = vpack.c.b16 %v3308, %v3304
    %v3877 = vpack.c.b16 %v3313, %v3309
    %v3878 = vpack.c.b16 %v3314, %v3310
    %v3879 = vpack.c.b16 %v3315, %v3311
    %v3880 = vpack.c.b16 %v3316, %v3312
    %v3881 = vpack.c.b16 %v3321, %v3317
    %v3882 = vpack.c.b16 %v3322, %v3318
    %v3883 = vpack.c.b16 %v3323, %v3319
    %v3884 = vpack.c.b16 %v3324, %v3320
    %v3885 = vpack.c.b16 %v3329, %v3325
    %v3886 = vpack.c.b16 %v3330, %v3326
    %v3887 = vpack.c.b16 %v3331, %v3327
    %v3888 = vpack.c.b16 %v3332, %v3328
    %v3889 = vpack.c.b16 %v3337, %v3333
    %v3890 = vpack.c.b16 %v3338, %v3334
    %v3891 = vpack.c.b16 %v3339, %v3335
    %v3892 = vpack.c.b16 %v3340, %v3336
    %v3893 = vpack.c.b16 %v3345, %v3341
    %v3894 = vpack.c.b16 %v3346, %v3342
    %v3895 = vpack.c.b16 %v3347, %v3343
    %v3896 = vpack.c.b16 %v3348, %v3344
    %v3897 = vpack.c.b16 %v3353, %v3349
    %v3898 = vpack.c.b16 %v3354, %v3350
    %v3899 = vpack.c.b16 %v3355, %v3351
    %v3900 = vpack.c.b16 %v3356, %v3352
    %v3901 = vpack.c.b16 %v3361, %v3357
    %v3902 = vpack.c.b16 %v3362, %v3358
    %v3903 = vpack.c.b16 %v3363, %v3359
    %v3904 = vpack.c.b16 %v3364, %v3360
    %v3905 = vpack.c.b16 %v3369, %v3365
    %v3906 = vpack.c.b16 %v3370, %v3366
    %v3907 = vpack.c.b16 %v3371, %v3367
    %v3908 = vpack.c.b16 %v3372, %v3368
    %v3909 = vpack.c.b16 %v3377, %v3373
    %v3910 = vpack.c.b16 %v3378, %v3374
    %v3911 = vpack.c.b16 %v3379, %v3375
    %v3912 = vpack.c.b16 %v3380, %v3376
    %v3913 = vpack.c.b16 %v3385, %v3381
    %v3914 = vpack.c.b16 %v3386, %v3382
    %v3915 = vpack.c.b16 %v3387, %v3383
    %v3916 = vpack.c.b16 %v3388, %v3384
    %v3917 = vpack.c.b16 %v3393, %v3389
    %v3918 = vpack.c.b16 %v3394, %v3390
    %v3919 = vpack.c.b16 %v3395, %v3391
    %v3920 = vpack.c.b16 %v3396, %v3392
    %v3921 = vpack.c.b16 %v3401, %v3397
    %v3922 = vpack.c.b16 %v3402, %v3398
    %v3923 = vpack.c.b16 %v3403, %v3399
    %v3924 = vpack.c.b16 %v3404, %v3400
    %v3925 = vpack.c.b16 %v3409, %v3405
    %v3926 = vpack.c.b16 %v3410, %v3406
    %v3927 = vpack.c.b16 %v3411, %v3407
    %v3928 = vpack.c.b16 %v3412, %v3408
    %v3929 = vpack.c.b16 %v3417, %v3413
    %v3930 = vpack.c.b16 %v3418, %v3414
    %v3931 = vpack.c.b16 %v3419, %v3415
    %v3932 = vpack.c.b16 %v3420, %v3416
    %4445 = vmatprep.subr.bf16.mxu0 %v3422
    %4446 = vmatpush1.bf16.msra.mxu0 %v3421
    %4447 = vmatprep.subr.bf16.mxu0 %v3426
    %4448 = vmatpush1.bf16.msra.mxu0 %v3425
    %4449 = vmatprep.subr.bf16.mxu0 %v3430
    %4450 = vmatpush1.bf16.msra.mxu0 %v3429
    %4451 = vmatprep.subr.bf16.mxu0 %v3434
    %4452 = vmatpush1.bf16.msra.mxu0 %v3433
    %4453 = vmatprep.subr.bf16.mxu0 %v3438
    %4454 = vmatpush1.bf16.msra.mxu0 %v3437
    %4455 = vmatprep.subr.bf16.mxu0 %v3442
    %4456 = vmatpush1.bf16.msra.mxu0 %v3441
    %4457 = vmatprep.subr.bf16.mxu0 %v3446
    %4458 = vmatpush1.bf16.msra.mxu0 %v3445
    %4459 = vmatprep.subr.bf16.mxu0 %v3450
    %4460 = vmatpush1.bf16.msra.mxu0 %v3449
    %4461 = vmatprep.subr.bf16.mxu0 %v3454
    %4462 = vmatpush1.bf16.msra.mxu0 %v3453
    %4463 = vmatprep.subr.bf16.mxu0 %v3458
    %4464 = vmatpush1.bf16.msra.mxu0 %v3457
    %4465 = vmatprep.subr.bf16.mxu0 %v3462
    %4466 = vmatpush1.bf16.msra.mxu0 %v3461
    %4467 = vmatprep.subr.bf16.mxu0 %v3466
    %4468 = vmatpush1.bf16.msra.mxu0 %v3465
    %4469 = vmatprep.subr.bf16.mxu0 %v3470
    %4470 = vmatpush1.bf16.msra.mxu0 %v3469
    %4471 = vmatprep.subr.bf16.mxu0 %v3474
    %4472 = vmatpush1.bf16.msra.mxu0 %v3473
    %4473 = vmatprep.subr.bf16.mxu0 %v3478
    %4474 = vmatpush1.bf16.msra.mxu0 %v3477
    %4475 = vmatprep.subr.bf16.mxu0 %v3482
    %4476 = vmatpush1.bf16.msra.mxu0 %v3481
    %4477 = vmatprep.mubr.bf16.mxu0 %v1336
    %4478 = vmatmul.mubr.bf16.gmra.mrb[0].mxu0 %v1335
    %v4479 = vpop.f32.mrb[0].mxu0
    %v4480 = vadd.f32 %v1868, %v4479
    %v4481 = vpop.f32.mrb[0].mxu0
    %v4482 = vadd.f32 %v1872, %v4481
    %v4483 = vpop.f32.mrb[0].mxu0
    %v4484 = vpop.f32.mrb[0].mxu0
    %4485 = vdwg.mxu0
    %4486 = vmatprep.subr.bf16.mxu0 %v3486
    %4487 = vmatpush1.bf16.msra.mxu0 %v3485
    %4488 = vmatprep.subr.bf16.mxu0 %v3490
    %4489 = vmatpush1.bf16.msra.mxu0 %v3489
    %4490 = vmatprep.subr.bf16.mxu0 %v3494
    %4491 = vmatpush1.bf16.msra.mxu0 %v3493
    %4492 = vmatprep.subr.bf16.mxu0 %v3498
    %4493 = vmatpush1.bf16.msra.mxu0 %v3497
    %4494 = vmatprep.subr.bf16.mxu0 %v3502
    %4495 = vmatpush1.bf16.msra.mxu0 %v3501
    %4496 = vmatprep.subr.bf16.mxu0 %v3506
    %4497 = vmatpush1.bf16.msra.mxu0 %v3505
    %4498 = vmatprep.subr.bf16.mxu0 %v3510
    %4499 = vmatpush1.bf16.msra.mxu0 %v3509
    %4500 = vmatprep.subr.bf16.mxu0 %v3514
    %4501 = vmatpush1.bf16.msra.mxu0 %v3513
    %4502 = vmatprep.subr.bf16.mxu0 %v3518
    %4503 = vmatpush1.bf16.msra.mxu0 %v3517
    %4504 = vmatprep.subr.bf16.mxu0 %v3522
    %4505 = vmatpush1.bf16.msra.mxu0 %v3521
    %4506 = vmatprep.subr.bf16.mxu0 %v3526
    %4507 = vmatpush1.bf16.msra.mxu0 %v3525
    %4508 = vmatprep.subr.bf16.mxu0 %v3530
    %4509 = vmatpush1.bf16.msra.mxu0 %v3529
    %4510 = vmatprep.subr.bf16.mxu0 %v3534
    %4511 = vmatpush1.bf16.msra.mxu0 %v3533
    %4512 = vmatprep.subr.bf16.mxu0 %v3538
    %4513 = vmatpush1.bf16.msra.mxu0 %v3537
    %4514 = vmatprep.subr.bf16.mxu0 %v3542
    %4515 = vmatpush1.bf16.msra.mxu0 %v3541
    %4516 = vmatprep.subr.bf16.mxu0 %v3546
    %4517 = vmatpush1.bf16.msra.mxu0 %v3545
    %4518 = vmatprep.mubr.bf16.mxu0 %v1338
    %4519 = vmatmul.mubr.bf16.gmra.mrb[0].mxu0 %v1337
    %v4520 = vpop.f32.mrb[0].mxu0
    %v4521 = vadd.f32 %v4480, %v4520
    %v4522 = vpop.f32.mrb[0].mxu0
    %v4523 = vadd.f32 %v4482, %v4522
    %v4524 = vpop.f32.mrb[0].mxu0
    %v4525 = vpop.f32.mrb[0].mxu0
    %4526 = vdwg.mxu0
    %4527 = vmatprep.subr.bf16.mxu0 %v3550
    %4528 = vmatpush1.bf16.msra.mxu0 %v3549
    %4529 = vmatprep.subr.bf16.mxu0 %v3554
    %4530 = vmatpush1.bf16.msra.mxu0 %v3553
    %4531 = vmatprep.subr.bf16.mxu0 %v3558
    %4532 = vmatpush1.bf16.msra.mxu0 %v3557
    %4533 = vmatprep.subr.bf16.mxu0 %v3562
    %4534 = vmatpush1.bf16.msra.mxu0 %v3561
    %4535 = vmatprep.subr.bf16.mxu0 %v3566
    %4536 = vmatpush1.bf16.msra.mxu0 %v3565
    %4537 = vmatprep.subr.bf16.mxu0 %v3570
    %4538 = vmatpush1.bf16.msra.mxu0 %v3569
    %4539 = vmatprep.subr.bf16.mxu0 %v3574
    %4540 = vmatpush1.bf16.msra.mxu0 %v3573
    %4541 = vmatprep.subr.bf16.mxu0 %v3578
    %4542 = vmatpush1.bf16.msra.mxu0 %v3577
    %4543 = vmatprep.subr.bf16.mxu0 %v3582
    %4544 = vmatpush1.bf16.msra.mxu0 %v3581
    %4545 = vmatprep.subr.bf16.mxu0 %v3586
    %4546 = vmatpush1.bf16.msra.mxu0 %v3585
    %4547 = vmatprep.subr.bf16.mxu0 %v3590
    %4548 = vmatpush1.bf16.msra.mxu0 %v3589
    %4549 = vmatprep.subr.bf16.mxu0 %v3594
    %4550 = vmatpush1.bf16.msra.mxu0 %v3593
    %4551 = vmatprep.subr.bf16.mxu0 %v3598
    %4552 = vmatpush1.bf16.msra.mxu0 %v3597
    %4553 = vmatprep.subr.bf16.mxu0 %v3602
    %4554 = vmatpush1.bf16.msra.mxu0 %v3601
    %4555 = vmatprep.subr.bf16.mxu0 %v3606
    %4556 = vmatpush1.bf16.msra.mxu0 %v3605
    %4557 = vmatprep.subr.bf16.mxu0 %v3610
    %4558 = vmatpush1.bf16.msra.mxu0 %v3609
    %4559 = vmatprep.mubr.bf16.mxu0 %v1340
    %4560 = vmatmul.mubr.bf16.gmra.mrb[0].mxu0 %v1339
    %v4561 = vpop.f32.mrb[0].mxu0
    %v4562 = vadd.f32 %v4521, %v4561
    %v4563 = vpop.f32.mrb[0].mxu0
    %v4564 = vadd.f32 %v4523, %v4563
    %v4565 = vpop.f32.mrb[0].mxu0
    %v4566 = vpop.f32.mrb[0].mxu0
    %4567 = vdwg.mxu0
    %4568 = vmatprep.subr.bf16.mxu0 %v3614
    %4569 = vmatpush1.bf16.msra.mxu0 %v3613
    %4570 = vmatprep.subr.bf16.mxu0 %v3618
    %4571 = vmatpush1.bf16.msra.mxu0 %v3617
    %4572 = vmatprep.subr.bf16.mxu0 %v3622
    %4573 = vmatpush1.bf16.msra.mxu0 %v3621
    %4574 = vmatprep.subr.bf16.mxu0 %v3626
    %4575 = vmatpush1.bf16.msra.mxu0 %v3625
    %4576 = vmatprep.subr.bf16.mxu0 %v3630
    %4577 = vmatpush1.bf16.msra.mxu0 %v3629
    %4578 = vmatprep.subr.bf16.mxu0 %v3634
    %4579 = vmatpush1.bf16.msra.mxu0 %v3633
    %4580 = vmatprep.subr.bf16.mxu0 %v3638
    %4581 = vmatpush1.bf16.msra.mxu0 %v3637
    %4582 = vmatprep.subr.bf16.mxu0 %v3642
    %4583 = vmatpush1.bf16.msra.mxu0 %v3641
    %4584 = vmatprep.subr.bf16.mxu0 %v3646
    %4585 = vmatpush1.bf16.msra.mxu0 %v3645
    %4586 = vmatprep.subr.bf16.mxu0 %v3650
    %4587 = vmatpush1.bf16.msra.mxu0 %v3649
    %4588 = vmatprep.subr.bf16.mxu0 %v3654
    %4589 = vmatpush1.bf16.msra.mxu0 %v3653
    %4590 = vmatprep.subr.bf16.mxu0 %v3658
    %4591 = vmatpush1.bf16.msra.mxu0 %v3657
    %4592 = vmatprep.subr.bf16.mxu0 %v3662
    %4593 = vmatpush1.bf16.msra.mxu0 %v3661
    %4594 = vmatprep.subr.bf16.mxu0 %v3666
    %4595 = vmatpush1.bf16.msra.mxu0 %v3665
    %4596 = vmatprep.subr.bf16.mxu0 %v3670
    %4597 = vmatpush1.bf16.msra.mxu0 %v3669
    %4598 = vmatprep.subr.bf16.mxu0 %v3674
    %4599 = vmatpush1.bf16.msra.mxu0 %v3673
    %4600 = vmatprep.mubr.bf16.mxu0 %v1342
    %4601 = vmatmul.mubr.bf16.gmra.mrb[0].mxu0 %v1341
    %v4602 = vpop.f32.mrb[0].mxu0
    %v4603 = vadd.f32 %v4562, %v4602
    %v4604 = vpop.f32.mrb[0].mxu0
    %v4605 = vadd.f32 %v4564, %v4604
    %v4606 = vpop.f32.mrb[0].mxu0
    %v4607 = vpop.f32.mrb[0].mxu0
    %4608 = vdwg.mxu0
    %4609 = vmatprep.subr.bf16.mxu0 %v3678
    %4610 = vmatpush1.bf16.msra.mxu0 %v3677
    %4611 = vmatprep.subr.bf16.mxu0 %v3682
    %4612 = vmatpush1.bf16.msra.mxu0 %v3681
    %4613 = vmatprep.subr.bf16.mxu0 %v3686
    %4614 = vmatpush1.bf16.msra.mxu0 %v3685
    %4615 = vmatprep.subr.bf16.mxu0 %v3690
    %4616 = vmatpush1.bf16.msra.mxu0 %v3689
    %4617 = vmatprep.subr.bf16.mxu0 %v3694
    %4618 = vmatpush1.bf16.msra.mxu0 %v3693
    %4619 = vmatprep.subr.bf16.mxu0 %v3698
    %4620 = vmatpush1.bf16.msra.mxu0 %v3697
    %4621 = vmatprep.subr.bf16.mxu0 %v3702
    %4622 = vmatpush1.bf16.msra.mxu0 %v3701
    %4623 = vmatprep.subr.bf16.mxu0 %v3706
    %4624 = vmatpush1.bf16.msra.mxu0 %v3705
    %4625 = vmatprep.subr.bf16.mxu0 %v3710
    %4626 = vmatpush1.bf16.msra.mxu0 %v3709
    %4627 = vmatprep.subr.bf16.mxu0 %v3714
    %4628 = vmatpush1.bf16.msra.mxu0 %v3713
    %4629 = vmatprep.subr.bf16.mxu0 %v3718
    %4630 = vmatpush1.bf16.msra.mxu0 %v3717
    %4631 = vmatprep.subr.bf16.mxu0 %v3722
    %4632 = vmatpush1.bf16.msra.mxu0 %v3721
    %4633 = vmatprep.subr.bf16.mxu0 %v3726
    %4634 = vmatpush1.bf16.msra.mxu0 %v3725
    %4635 = vmatprep.subr.bf16.mxu0 %v3730
    %4636 = vmatpush1.bf16.msra.mxu0 %v3729
    %4637 = vmatprep.subr.bf16.mxu0 %v3734
    %4638 = vmatpush1.bf16.msra.mxu0 %v3733
    %4639 = vmatprep.subr.bf16.mxu0 %v3738
    %4640 = vmatpush1.bf16.msra.mxu0 %v3737
    %4641 = vmatprep.mubr.bf16.mxu0 %v1344
    %4642 = vmatmul.mubr.bf16.gmra.mrb[0].mxu0 %v1343
    %v4643 = vpop.f32.mrb[0].mxu0
    %v4644 = vadd.f32 %v4603, %v4643
    %v4645 = vpop.f32.mrb[0].mxu0
    %v4646 = vadd.f32 %v4605, %v4645
    %v4647 = vpop.f32.mrb[0].mxu0
    %v4648 = vpop.f32.mrb[0].mxu0
    %4649 = vdwg.mxu0
    %4650 = vmatprep.subr.bf16.mxu0 %v3742
    %4651 = vmatpush1.bf16.msra.mxu0 %v3741
    %4652 = vmatprep.subr.bf16.mxu0 %v3746
    %4653 = vmatpush1.bf16.msra.mxu0 %v3745
    %4654 = vmatprep.subr.bf16.mxu0 %v3750
    %4655 = vmatpush1.bf16.msra.mxu0 %v3749
    %4656 = vmatprep.subr.bf16.mxu0 %v3754
    %4657 = vmatpush1.bf16.msra.mxu0 %v3753
    %4658 = vmatprep.subr.bf16.mxu0 %v3758
    %4659 = vmatpush1.bf16.msra.mxu0 %v3757
    %4660 = vmatprep.subr.bf16.mxu0 %v3762
    %4661 = vmatpush1.bf16.msra.mxu0 %v3761
    %4662 = vmatprep.subr.bf16.mxu0 %v3766
    %4663 = vmatpush1.bf16.msra.mxu0 %v3765
    %4664 = vmatprep.subr.bf16.mxu0 %v3770
    %4665 = vmatpush1.bf16.msra.mxu0 %v3769
    %4666 = vmatprep.subr.bf16.mxu0 %v3774
    %4667 = vmatpush1.bf16.msra.mxu0 %v3773
    %4668 = vmatprep.subr.bf16.mxu0 %v3778
    %4669 = vmatpush1.bf16.msra.mxu0 %v3777
    %4670 = vmatprep.subr.bf16.mxu0 %v3782
    %4671 = vmatpush1.bf16.msra.mxu0 %v3781
    %4672 = vmatprep.subr.bf16.mxu0 %v3786
    %4673 = vmatpush1.bf16.msra.mxu0 %v3785
    %4674 = vmatprep.subr.bf16.mxu0 %v3790
    %4675 = vmatpush1.bf16.msra.mxu0 %v3789
    %4676 = vmatprep.subr.bf16.mxu0 %v3794
    %4677 = vmatpush1.bf16.msra.mxu0 %v3793
    %4678 = vmatprep.subr.bf16.mxu0 %v3798
    %4679 = vmatpush1.bf16.msra.mxu0 %v3797
    %4680 = vmatprep.subr.bf16.mxu0 %v3802
    %4681 = vmatpush1.bf16.msra.mxu0 %v3801
    %4682 = vmatprep.mubr.bf16.mxu0 %v1346
    %4683 = vmatmul.mubr.bf16.gmra.mrb[0].mxu0 %v1345
    %v4684 = vpop.f32.mrb[0].mxu0
    %v4685 = vadd.f32 %v4644, %v4684
    %v4686 = vpop.f32.mrb[0].mxu0
    %v4687 = vadd.f32 %v4646, %v4686
    %v4688 = vpop.f32.mrb[0].mxu0
    %v4689 = vpop.f32.mrb[0].mxu0
    %4690 = vdwg.mxu0
    %4691 = vmatprep.subr.bf16.mxu0 %v3806
    %4692 = vmatpush1.bf16.msra.mxu0 %v3805
    %4693 = vmatprep.subr.bf16.mxu0 %v3810
    %4694 = vmatpush1.bf16.msra.mxu0 %v3809
    %4695 = vmatprep.subr.bf16.mxu0 %v3814
    %4696 = vmatpush1.bf16.msra.mxu0 %v3813
    %4697 = vmatprep.subr.bf16.mxu0 %v3818
    %4698 = vmatpush1.bf16.msra.mxu0 %v3817
    %4699 = vmatprep.subr.bf16.mxu0 %v3822
    %4700 = vmatpush1.bf16.msra.mxu0 %v3821
    %4701 = vmatprep.subr.bf16.mxu0 %v3826
    %4702 = vmatpush1.bf16.msra.mxu0 %v3825
    %4703 = vmatprep.subr.bf16.mxu0 %v3830
    %4704 = vmatpush1.bf16.msra.mxu0 %v3829
    %4705 = vmatprep.subr.bf16.mxu0 %v3834
    %4706 = vmatpush1.bf16.msra.mxu0 %v3833
    %4707 = vmatprep.subr.bf16.mxu0 %v3838
    %4708 = vmatpush1.bf16.msra.mxu0 %v3837
    %4709 = vmatprep.subr.bf16.mxu0 %v3842
    %4710 = vmatpush1.bf16.msra.mxu0 %v3841
    %4711 = vmatprep.subr.bf16.mxu0 %v3846
    %4712 = vmatpush1.bf16.msra.mxu0 %v3845
    %4713 = vmatprep.subr.bf16.mxu0 %v3850
    %4714 = vmatpush1.bf16.msra.mxu0 %v3849
    %4715 = vmatprep.subr.bf16.mxu0 %v3854
    %4716 = vmatpush1.bf16.msra.mxu0 %v3853
    %4717 = vmatprep.subr.bf16.mxu0 %v3858
    %4718 = vmatpush1.bf16.msra.mxu0 %v3857
    %4719 = vmatprep.subr.bf16.mxu0 %v3862
    %4720 = vmatpush1.bf16.msra.mxu0 %v3861
    %4721 = vmatprep.subr.bf16.mxu0 %v3866
    %4722 = vmatpush1.bf16.msra.mxu0 %v3865
    %4723 = vmatprep.mubr.bf16.mxu0 %v1348
    %4724 = vmatmul.mubr.bf16.gmra.mrb[0].mxu0 %v1347
    %v4725 = vpop.f32.mrb[0].mxu0
    %v4726 = vadd.f32 %v4685, %v4725
    %v4727 = vpop.f32.mrb[0].mxu0
    %v4728 = vadd.f32 %v4687, %v4727
    %v4729 = vpop.f32.mrb[0].mxu0
    %v4730 = vpop.f32.mrb[0].mxu0
    %4731 = vdwg.mxu0
    %4732 = vmatprep.subr.bf16.mxu0 %v3870
    %4733 = vmatpush1.bf16.msra.mxu0 %v3869
    %4734 = vmatprep.subr.bf16.mxu0 %v3874
    %4735 = vmatpush1.bf16.msra.mxu0 %v3873
    %4736 = vmatprep.subr.bf16.mxu0 %v3878
    %4737 = vmatpush1.bf16.msra.mxu0 %v3877
    %4738 = vmatprep.subr.bf16.mxu0 %v3882
    %4739 = vmatpush1.bf16.msra.mxu0 %v3881
    %4740 = vmatprep.subr.bf16.mxu0 %v3886
    %4741 = vmatpush1.bf16.msra.mxu0 %v3885
    %4742 = vmatprep.subr.bf16.mxu0 %v3890
    %4743 = vmatpush1.bf16.msra.mxu0 %v3889
    %4744 = vmatprep.subr.bf16.mxu0 %v3894
    %4745 = vmatpush1.bf16.msra.mxu0 %v3893
    %4746 = vmatprep.subr.bf16.mxu0 %v3898
    %4747 = vmatpush1.bf16.msra.mxu0 %v3897
    %4748 = vmatprep.subr.bf16.mxu0 %v3902
    %4749 = vmatpush1.bf16.msra.mxu0 %v3901
    %4750 = vmatprep.subr.bf16.mxu0 %v3906
    %4751 = vmatpush1.bf16.msra.mxu0 %v3905
    %4752 = vmatprep.subr.bf16.mxu0 %v3910
    %4753 = vmatpush1.bf16.msra.mxu0 %v3909
    %4754 = vmatprep.subr.bf16.mxu0 %v3914
    %4755 = vmatpush1.bf16.msra.mxu0 %v3913
    %4756 = vmatprep.subr.bf16.mxu0 %v3918
    %4757 = vmatpush1.bf16.msra.mxu0 %v3917
    %4758 = vmatprep.subr.bf16.mxu0 %v3922
    %4759 = vmatpush1.bf16.msra.mxu0 %v3921
    %4760 = vmatprep.subr.bf16.mxu0 %v3926
    %4761 = vmatpush1.bf16.msra.mxu0 %v3925
    %4762 = vmatprep.subr.bf16.mxu0 %v3930
    %4763 = vmatpush1.bf16.msra.mxu0 %v3929
    %4764 = vmatprep.mubr.bf16.mxu0 %v1350
    %4765 = vmatmul.mubr.bf16.gmra.mrb[0].mxu0 %v1349
    %v4766 = vpop.f32.mrb[0].mxu0
    %v4767 = vadd.f32 %v4726, %v4766
    %v4768 = vpop.f32.mrb[0].mxu0
    %v4769 = vadd.f32 %v4728, %v4768
    %v4770 = vpop.f32.mrb[0].mxu0
    %v4771 = vpop.f32.mrb[0].mxu0
    %4772 = vdwg.mxu0
    %4773 = vmatprep.subr.bf16.mxu0 %v3424
    %4774 = vmatpush1.bf16.msra.mxu0 %v3423
    %4775 = vmatprep.subr.bf16.mxu0 %v3428
    %4776 = vmatpush1.bf16.msra.mxu0 %v3427
    %4777 = vmatprep.subr.bf16.mxu0 %v3432
    %4778 = vmatpush1.bf16.msra.mxu0 %v3431
    %4779 = vmatprep.subr.bf16.mxu0 %v3436
    %4780 = vmatpush1.bf16.msra.mxu0 %v3435
    %4781 = vmatprep.subr.bf16.mxu0 %v3440
    %4782 = vmatpush1.bf16.msra.mxu0 %v3439
    %4783 = vmatprep.subr.bf16.mxu0 %v3444
    %4784 = vmatpush1.bf16.msra.mxu0 %v3443
    %4785 = vmatprep.subr.bf16.mxu0 %v3448
    %4786 = vmatpush1.bf16.msra.mxu0 %v3447
    %4787 = vmatprep.subr.bf16.mxu0 %v3452
    %4788 = vmatpush1.bf16.msra.mxu0 %v3451
    %4789 = vmatprep.subr.bf16.mxu0 %v3456
    %4790 = vmatpush1.bf16.msra.mxu0 %v3455
    %4791 = vmatprep.subr.bf16.mxu0 %v3460
    %4792 = vmatpush1.bf16.msra.mxu0 %v3459
    %4793 = vmatprep.subr.bf16.mxu0 %v3464
    %4794 = vmatpush1.bf16.msra.mxu0 %v3463
    %4795 = vmatprep.subr.bf16.mxu0 %v3468
    %4796 = vmatpush1.bf16.msra.mxu0 %v3467
    %4797 = vmatprep.subr.bf16.mxu0 %v3472
    %4798 = vmatpush1.bf16.msra.mxu0 %v3471
    %4799 = vmatprep.subr.bf16.mxu0 %v3476
    %4800 = vmatpush1.bf16.msra.mxu0 %v3475
    %4801 = vmatprep.subr.bf16.mxu0 %v3480
    %4802 = vmatpush1.bf16.msra.mxu0 %v3479
    %4803 = vmatprep.subr.bf16.mxu0 %v3484
    %4804 = vmatpush1.bf16.msra.mxu0 %v3483
    %4805 = vmatprep.mubr.bf16.mxu0 %v1336
    %4806 = vmatmul.mubr.bf16.gmra.mrb[0].mxu0 %v1335
    %v4807 = vpop.f32.mrb[0].mxu0
    %v4808 = vadd.f32 %v1876, %v4807
    %v4809 = vpop.f32.mrb[0].mxu0
    %v4810 = vadd.f32 %v1880, %v4809
    %v4811 = vpop.f32.mrb[0].mxu0
    %v4812 = vpop.f32.mrb[0].mxu0
    %4813 = vdwg.mxu0
    %4814 = vmatprep.subr.bf16.mxu0 %v3488
    %4815 = vmatpush1.bf16.msra.mxu0 %v3487
    %4816 = vmatprep.subr.bf16.mxu0 %v3492
    %4817 = vmatpush1.bf16.msra.mxu0 %v3491
    %4818 = vmatprep.subr.bf16.mxu0 %v3496
    %4819 = vmatpush1.bf16.msra.mxu0 %v3495
    %4820 = vmatprep.subr.bf16.mxu0 %v3500
    %4821 = vmatpush1.bf16.msra.mxu0 %v3499
    %4822 = vmatprep.subr.bf16.mxu0 %v3504
    %4823 = vmatpush1.bf16.msra.mxu0 %v3503
    %4824 = vmatprep.subr.bf16.mxu0 %v3508
    %4825 = vmatpush1.bf16.msra.mxu0 %v3507
    %4826 = vmatprep.subr.bf16.mxu0 %v3512
    %4827 = vmatpush1.bf16.msra.mxu0 %v3511
    %4828 = vmatprep.subr.bf16.mxu0 %v3516
    %4829 = vmatpush1.bf16.msra.mxu0 %v3515
    %4830 = vmatprep.subr.bf16.mxu0 %v3520
    %4831 = vmatpush1.bf16.msra.mxu0 %v3519
    %4832 = vmatprep.subr.bf16.mxu0 %v3524
    %4833 = vmatpush1.bf16.msra.mxu0 %v3523
    %4834 = vmatprep.subr.bf16.mxu0 %v3528
    %4835 = vmatpush1.bf16.msra.mxu0 %v3527
    %4836 = vmatprep.subr.bf16.mxu0 %v3532
    %4837 = vmatpush1.bf16.msra.mxu0 %v3531
    %4838 = vmatprep.subr.bf16.mxu0 %v3536
    %4839 = vmatpush1.bf16.msra.mxu0 %v3535
    %4840 = vmatprep.subr.bf16.mxu0 %v3540
    %4841 = vmatpush1.bf16.msra.mxu0 %v3539
    %4842 = vmatprep.subr.bf16.mxu0 %v3544
    %4843 = vmatpush1.bf16.msra.mxu0 %v3543
    %4844 = vmatprep.subr.bf16.mxu0 %v3548
    %4845 = vmatpush1.bf16.msra.mxu0 %v3547
    %4846 = vmatprep.mubr.bf16.mxu0 %v1338
    %4847 = vmatmul.mubr.bf16.gmra.mrb[0].mxu0 %v1337
    %v4848 = vpop.f32.mrb[0].mxu0
    %v4849 = vadd.f32 %v4808, %v4848
    %v4850 = vpop.f32.mrb[0].mxu0
    %v4851 = vadd.f32 %v4810, %v4850
    %v4852 = vpop.f32.mrb[0].mxu0
    %v4853 = vpop.f32.mrb[0].mxu0
    %4854 = vdwg.mxu0
    %4855 = vmatprep.subr.bf16.mxu0 %v3552
    %4856 = vmatpush1.bf16.msra.mxu0 %v3551
    %4857 = vmatprep.subr.bf16.mxu0 %v3556
    %4858 = vmatpush1.bf16.msra.mxu0 %v3555
    %4859 = vmatprep.subr.bf16.mxu0 %v3560
    %4860 = vmatpush1.bf16.msra.mxu0 %v3559
    %4861 = vmatprep.subr.bf16.mxu0 %v3564
    %4862 = vmatpush1.bf16.msra.mxu0 %v3563
    %4863 = vmatprep.subr.bf16.mxu0 %v3568
    %4864 = vmatpush1.bf16.msra.mxu0 %v3567
    %4865 = vmatprep.subr.bf16.mxu0 %v3572
    %4866 = vmatpush1.bf16.msra.mxu0 %v3571
    %4867 = vmatprep.subr.bf16.mxu0 %v3576
    %4868 = vmatpush1.bf16.msra.mxu0 %v3575
    %4869 = vmatprep.subr.bf16.mxu0 %v3580
    %4870 = vmatpush1.bf16.msra.mxu0 %v3579
    %4871 = vmatprep.subr.bf16.mxu0 %v3584
    %4872 = vmatpush1.bf16.msra.mxu0 %v3583
    %4873 = vmatprep.subr.bf16.mxu0 %v3588
    %4874 = vmatpush1.bf16.msra.mxu0 %v3587
    %4875 = vmatprep.subr.bf16.mxu0 %v3592
    %4876 = vmatpush1.bf16.msra.mxu0 %v3591
    %4877 = vmatprep.subr.bf16.mxu0 %v3596
    %4878 = vmatpush1.bf16.msra.mxu0 %v3595
    %4879 = vmatprep.subr.bf16.mxu0 %v3600
    %4880 = vmatpush1.bf16.msra.mxu0 %v3599
    %4881 = vmatprep.subr.bf16.mxu0 %v3604
    %4882 = vmatpush1.bf16.msra.mxu0 %v3603
    %4883 = vmatprep.subr.bf16.mxu0 %v3608
    %4884 = vmatpush1.bf16.msra.mxu0 %v3607
    %4885 = vmatprep.subr.bf16.mxu0 %v3612
    %4886 = vmatpush1.bf16.msra.mxu0 %v3611
    %4887 = vmatprep.mubr.bf16.mxu0 %v1340
    %4888 = vmatmul.mubr.bf16.gmra.mrb[0].mxu0 %v1339
    %v4889 = vpop.f32.mrb[0].mxu0
    %v4890 = vadd.f32 %v4849, %v4889
    %v4891 = vpop.f32.mrb[0].mxu0
    %v4892 = vadd.f32 %v4851, %v4891
    %v4893 = vpop.f32.mrb[0].mxu0
    %v4894 = vpop.f32.mrb[0].mxu0
    %4895 = vdwg.mxu0
    %4896 = vmatprep.subr.bf16.mxu0 %v3616
    %4897 = vmatpush1.bf16.msra.mxu0 %v3615
    %4898 = vmatprep.subr.bf16.mxu0 %v3620
    %4899 = vmatpush1.bf16.msra.mxu0 %v3619
    %4900 = vmatprep.subr.bf16.mxu0 %v3624
    %4901 = vmatpush1.bf16.msra.mxu0 %v3623
    %4902 = vmatprep.subr.bf16.mxu0 %v3628
    %4903 = vmatpush1.bf16.msra.mxu0 %v3627
    %4904 = vmatprep.subr.bf16.mxu0 %v3632
    %4905 = vmatpush1.bf16.msra.mxu0 %v3631
    %4906 = vmatprep.subr.bf16.mxu0 %v3636
    %4907 = vmatpush1.bf16.msra.mxu0 %v3635
    %4908 = vmatprep.subr.bf16.mxu0 %v3640
    %4909 = vmatpush1.bf16.msra.mxu0 %v3639
    %4910 = vmatprep.subr.bf16.mxu0 %v3644
    %4911 = vmatpush1.bf16.msra.mxu0 %v3643
    %4912 = vmatprep.subr.bf16.mxu0 %v3648
    %4913 = vmatpush1.bf16.msra.mxu0 %v3647
    %4914 = vmatprep.subr.bf16.mxu0 %v3652
    %4915 = vmatpush1.bf16.msra.mxu0 %v3651
    %4916 = vmatprep.subr.bf16.mxu0 %v3656
    %4917 = vmatpush1.bf16.msra.mxu0 %v3655
    %4918 = vmatprep.subr.bf16.mxu0 %v3660
    %4919 = vmatpush1.bf16.msra.mxu0 %v3659
    %4920 = vmatprep.subr.bf16.mxu0 %v3664
    %4921 = vmatpush1.bf16.msra.mxu0 %v3663
    %4922 = vmatprep.subr.bf16.mxu0 %v3668
    %4923 = vmatpush1.bf16.msra.mxu0 %v3667
    %4924 = vmatprep.subr.bf16.mxu0 %v3672
    %4925 = vmatpush1.bf16.msra.mxu0 %v3671
    %4926 = vmatprep.subr.bf16.mxu0 %v3676
    %4927 = vmatpush1.bf16.msra.mxu0 %v3675
    %4928 = vmatprep.mubr.bf16.mxu0 %v1342
    %4929 = vmatmul.mubr.bf16.gmra.mrb[0].mxu0 %v1341
    %v4930 = vpop.f32.mrb[0].mxu0
    %v4931 = vadd.f32 %v4890, %v4930
    %v4932 = vpop.f32.mrb[0].mxu0
    %v4933 = vadd.f32 %v4892, %v4932
    %v4934 = vpop.f32.mrb[0].mxu0
    %v4935 = vpop.f32.mrb[0].mxu0
    %4936 = vdwg.mxu0
    %4937 = vmatprep.subr.bf16.mxu0 %v3680
    %4938 = vmatpush1.bf16.msra.mxu0 %v3679
    %4939 = vmatprep.subr.bf16.mxu0 %v3684
    %4940 = vmatpush1.bf16.msra.mxu0 %v3683
    %4941 = vmatprep.subr.bf16.mxu0 %v3688
    %4942 = vmatpush1.bf16.msra.mxu0 %v3687
    %4943 = vmatprep.subr.bf16.mxu0 %v3692
    %4944 = vmatpush1.bf16.msra.mxu0 %v3691
    %4945 = vmatprep.subr.bf16.mxu0 %v3696
    %4946 = vmatpush1.bf16.msra.mxu0 %v3695
    %4947 = vmatprep.subr.bf16.mxu0 %v3700
    %4948 = vmatpush1.bf16.msra.mxu0 %v3699
    %4949 = vmatprep.subr.bf16.mxu0 %v3704
    %4950 = vmatpush1.bf16.msra.mxu0 %v3703
    %4951 = vmatprep.subr.bf16.mxu0 %v3708
    %4952 = vmatpush1.bf16.msra.mxu0 %v3707
    %4953 = vmatprep.subr.bf16.mxu0 %v3712
    %4954 = vmatpush1.bf16.msra.mxu0 %v3711
    %4955 = vmatprep.subr.bf16.mxu0 %v3716
    %4956 = vmatpush1.bf16.msra.mxu0 %v3715
    %4957 = vmatprep.subr.bf16.mxu0 %v3720
    %4958 = vmatpush1.bf16.msra.mxu0 %v3719
    %4959 = vmatprep.subr.bf16.mxu0 %v3724
    %4960 = vmatpush1.bf16.msra.mxu0 %v3723
    %4961 = vmatprep.subr.bf16.mxu0 %v3728
    %4962 = vmatpush1.bf16.msra.mxu0 %v3727
    %4963 = vmatprep.subr.bf16.mxu0 %v3732
    %4964 = vmatpush1.bf16.msra.mxu0 %v3731
    %4965 = vmatprep.subr.bf16.mxu0 %v3736
    %4966 = vmatpush1.bf16.msra.mxu0 %v3735
    %4967 = vmatprep.subr.bf16.mxu0 %v3740
    %4968 = vmatpush1.bf16.msra.mxu0 %v3739
    %4969 = vmatprep.mubr.bf16.mxu0 %v1344
    %4970 = vmatmul.mubr.bf16.gmra.mrb[0].mxu0 %v1343
    %v4971 = vpop.f32.mrb[0].mxu0
    %v4972 = vadd.f32 %v4931, %v4971
    %v4973 = vpop.f32.mrb[0].mxu0
    %v4974 = vadd.f32 %v4933, %v4973
    %v4975 = vpop.f32.mrb[0].mxu0
    %v4976 = vpop.f32.mrb[0].mxu0
    %4977 = vdwg.mxu0
    %4978 = vmatprep.subr.bf16.mxu0 %v3744
    %4979 = vmatpush1.bf16.msra.mxu0 %v3743
    %4980 = vmatprep.subr.bf16.mxu0 %v3748
    %4981 = vmatpush1.bf16.msra.mxu0 %v3747
    %4982 = vmatprep.subr.bf16.mxu0 %v3752
    %4983 = vmatpush1.bf16.msra.mxu0 %v3751
    %4984 = vmatprep.subr.bf16.mxu0 %v3756
    %4985 = vmatpush1.bf16.msra.mxu0 %v3755
    %4986 = vmatprep.subr.bf16.mxu0 %v3760
    %4987 = vmatpush1.bf16.msra.mxu0 %v3759
    %4988 = vmatprep.subr.bf16.mxu0 %v3764
    %4989 = vmatpush1.bf16.msra.mxu0 %v3763
    %4990 = vmatprep.subr.bf16.mxu0 %v3768
    %4991 = vmatpush1.bf16.msra.mxu0 %v3767
    %4992 = vmatprep.subr.bf16.mxu0 %v3772
    %4993 = vmatpush1.bf16.msra.mxu0 %v3771
    %4994 = vmatprep.subr.bf16.mxu0 %v3776
    %4995 = vmatpush1.bf16.msra.mxu0 %v3775
    %4996 = vmatprep.subr.bf16.mxu0 %v3780
    %4997 = vmatpush1.bf16.msra.mxu0 %v3779
    %4998 = vmatprep.subr.bf16.mxu0 %v3784
    %4999 = vmatpush1.bf16.msra.mxu0 %v3783
    %5000 = vmatprep.subr.bf16.mxu0 %v3788
    %5001 = vmatpush1.bf16.msra.mxu0 %v3787
    %5002 = vmatprep.subr.bf16.mxu0 %v3792
    %5003 = vmatpush1.bf16.msra.mxu0 %v3791
    %5004 = vmatprep.subr.bf16.mxu0 %v3796
    %5005 = vmatpush1.bf16.msra.mxu0 %v3795
    %5006 = vmatprep.subr.bf16.mxu0 %v3800
    %5007 = vmatpush1.bf16.msra.mxu0 %v3799
    %5008 = vmatprep.subr.bf16.mxu0 %v3804
    %5009 = vmatpush1.bf16.msra.mxu0 %v3803
    %5010 = vmatprep.mubr.bf16.mxu0 %v1346
    %5011 = vmatmul.mubr.bf16.gmra.mrb[0].mxu0 %v1345
    %v5012 = vpop.f32.mrb[0].mxu0
    %v5013 = vadd.f32 %v4972, %v5012
    %v5014 = vpop.f32.mrb[0].mxu0
    %v5015 = vadd.f32 %v4974, %v5014
    %v5016 = vpop.f32.mrb[0].mxu0
    %v5017 = vpop.f32.mrb[0].mxu0
    %5018 = vdwg.mxu0
    %5019 = vmatprep.subr.bf16.mxu0 %v3808
    %5020 = vmatpush1.bf16.msra.mxu0 %v3807
    %5021 = vmatprep.subr.bf16.mxu0 %v3812
    %5022 = vmatpush1.bf16.msra.mxu0 %v3811
    %5023 = vmatprep.subr.bf16.mxu0 %v3816
    %5024 = vmatpush1.bf16.msra.mxu0 %v3815
    %5025 = vmatprep.subr.bf16.mxu0 %v3820
    %5026 = vmatpush1.bf16.msra.mxu0 %v3819
    %5027 = vmatprep.subr.bf16.mxu0 %v3824
    %5028 = vmatpush1.bf16.msra.mxu0 %v3823
    %5029 = vmatprep.subr.bf16.mxu0 %v3828
    %5030 = vmatpush1.bf16.msra.mxu0 %v3827
    %5031 = vmatprep.subr.bf16.mxu0 %v3832
    %5032 = vmatpush1.bf16.msra.mxu0 %v3831
    %5033 = vmatprep.subr.bf16.mxu0 %v3836
    %5034 = vmatpush1.bf16.msra.mxu0 %v3835
    %5035 = vmatprep.subr.bf16.mxu0 %v3840
    %5036 = vmatpush1.bf16.msra.mxu0 %v3839
    %5037 = vmatprep.subr.bf16.mxu0 %v3844
    %5038 = vmatpush1.bf16.msra.mxu0 %v3843
    %5039 = vmatprep.subr.bf16.mxu0 %v3848
    %5040 = vmatpush1.bf16.msra.mxu0 %v3847
    %5041 = vmatprep.subr.bf16.mxu0 %v3852
    %5042 = vmatpush1.bf16.msra.mxu0 %v3851
    %5043 = vmatprep.subr.bf16.mxu0 %v3856
    %5044 = vmatpush1.bf16.msra.mxu0 %v3855
    %5045 = vmatprep.subr.bf16.mxu0 %v3860
    %5046 = vmatpush1.bf16.msra.mxu0 %v3859
    %5047 = vmatprep.subr.bf16.mxu0 %v3864
    %5048 = vmatpush1.bf16.msra.mxu0 %v3863
    %5049 = vmatprep.subr.bf16.mxu0 %v3868
    %5050 = vmatpush1.bf16.msra.mxu0 %v3867
    %5051 = vmatprep.mubr.bf16.mxu0 %v1348
    %5052 = vmatmul.mubr.bf16.gmra.mrb[0].mxu0 %v1347
    %v5053 = vpop.f32.mrb[0].mxu0
    %v5054 = vadd.f32 %v5013, %v5053
    %v5055 = vpop.f32.mrb[0].mxu0
    %v5056 = vadd.f32 %v5015, %v5055
    %v5057 = vpop.f32.mrb[0].mxu0
    %v5058 = vpop.f32.mrb[0].mxu0
    %5059 = vdwg.mxu0
    %5060 = vmatprep.subr.bf16.mxu0 %v3872
    %5061 = vmatpush1.bf16.msra.mxu0 %v3871
    %5062 = vmatprep.subr.bf16.mxu0 %v3876
    %5063 = vmatpush1.bf16.msra.mxu0 %v3875
    %5064 = vmatprep.subr.bf16.mxu0 %v3880
    %5065 = vmatpush1.bf16.msra.mxu0 %v3879
    %5066 = vmatprep.subr.bf16.mxu0 %v3884
    %5067 = vmatpush1.bf16.msra.mxu0 %v3883
    %5068 = vmatprep.subr.bf16.mxu0 %v3888
    %5069 = vmatpush1.bf16.msra.mxu0 %v3887
    %5070 = vmatprep.subr.bf16.mxu0 %v3892
    %5071 = vmatpush1.bf16.msra.mxu0 %v3891
    %5072 = vmatprep.subr.bf16.mxu0 %v3896
    %5073 = vmatpush1.bf16.msra.mxu0 %v3895
    %5074 = vmatprep.subr.bf16.mxu0 %v3900
    %5075 = vmatpush1.bf16.msra.mxu0 %v3899
    %5076 = vmatprep.subr.bf16.mxu0 %v3904
    %5077 = vmatpush1.bf16.msra.mxu0 %v3903
    %5078 = vmatprep.subr.bf16.mxu0 %v3908
    %5079 = vmatpush1.bf16.msra.mxu0 %v3907
    %5080 = vmatprep.subr.bf16.mxu0 %v3912
    %5081 = vmatpush1.bf16.msra.mxu0 %v3911
    %5082 = vmatprep.subr.bf16.mxu0 %v3916
    %5083 = vmatpush1.bf16.msra.mxu0 %v3915
    %5084 = vmatprep.subr.bf16.mxu0 %v3920
    %5085 = vmatpush1.bf16.msra.mxu0 %v3919
    %5086 = vmatprep.subr.bf16.mxu0 %v3924
    %5087 = vmatpush1.bf16.msra.mxu0 %v3923
    %5088 = vmatprep.subr.bf16.mxu0 %v3928
    %5089 = vmatpush1.bf16.msra.mxu0 %v3927
    %5090 = vmatprep.subr.bf16.mxu0 %v3932
    %5091 = vmatpush1.bf16.msra.mxu0 %v3931
    %5092 = vmatprep.mubr.bf16.mxu0 %v1350
    %5093 = vmatmul.mubr.bf16.gmra.mrb[0].mxu0 %v1349
    %v5094 = vpop.f32.mrb[0].mxu0
    %v5095 = vadd.f32 %v5054, %v5094
    %v5096 = vpop.f32.mrb[0].mxu0
    %v5097 = vadd.f32 %v5056, %v5096
    %v5098 = vpop.f32.mrb[0].mxu0
    %v5099 = vpop.f32.mrb[0].mxu0
    %5100 = vdwg.mxu0
    %v5101 = vmul.f32 %v4767, 0.01
    %v5102 = vmul.f32 %v4769, 0.01
    %v5103 = vmul.f32 %v5095, 0.01
    %v5104 = vmul.f32 %v5097, 0.01
    %v5105 = vmax.f32 %v4767, %v5101
    %v5106 = vmax.f32 %v4769, %v5102
    %v5107 = vmax.f32 %v5095, %v5103
    %v5108 = vmax.f32 %v5097, %v5104
    %v5109 = vpack.c.bf16 %v5105, %v5105
    %v5110 = vpack.c.bf16 %v5106, %v5106
    %v5111 = vpack.c.bf16 %v5107, %v5107
    %v5112 = vpack.c.bf16 %v5108, %v5108
    %v5113 = vld [vmem:[#allocation11] sm:$0xf]
    %v5114 = vld [vmem:[#allocation11 + $0x4] sm:$0xf]
    %v5115 = vld [vmem:[#allocation11 + $0x8] sm:$0xf]
    %v5116 = vld [vmem:[#allocation11 + $0xc] sm:$0xf]
    %v5117 = vld [vmem:[#allocation11 + $0x10] sm:$0xf]
    %v5118 = vld [vmem:[#allocation11 + $0x14] sm:$0xf]
    %v5119 = vld [vmem:[#allocation11 + $0x18] sm:$0xf]
    %v5120 = vld [vmem:[#allocation11 + $0x1c] sm:$0xf]
    %v5121 = vld [vmem:[#allocation11 + $0x20] sm:$0xf]
    %v5122 = vld [vmem:[#allocation11 + $0x24] sm:$0xf]
    %v5123 = vld [vmem:[#allocation11 + $0x28] sm:$0xf]
    %v5124 = vld [vmem:[#allocation11 + $0x2c] sm:$0xf]
    %v5125 = vld [vmem:[#allocation11 + $0x30] sm:$0xf]
    %v5126 = vld [vmem:[#allocation11 + $0x34] sm:$0xf]
    %v5127 = vld [vmem:[#allocation11 + $0x38] sm:$0xf]
    %v5128 = vld [vmem:[#allocation11 + $0x3c] sm:$0xf]
    %v5129 = vld [vmem:[#allocation11 + $0x40] sm:$0xf]
    %v5130 = vld [vmem:[#allocation11 + $0x44] sm:$0xf]
    %v5131 = vld [vmem:[#allocation11 + $0x48] sm:$0xf]
    %v5132 = vld [vmem:[#allocation11 + $0x4c] sm:$0xf]
    %v5133 = vld [vmem:[#allocation11 + $0x50] sm:$0xf]
    %v5134 = vld [vmem:[#allocation11 + $0x54] sm:$0xf]
    %v5135 = vld [vmem:[#allocation11 + $0x58] sm:$0xf]
    %v5136 = vld [vmem:[#allocation11 + $0x5c] sm:$0xf]
    %v5137 = vld [vmem:[#allocation11 + $0x60] sm:$0xf]
    %v5138 = vld [vmem:[#allocation11 + $0x64] sm:$0xf]
    %v5139 = vld [vmem:[#allocation11 + $0x68] sm:$0xf]
    %v5140 = vld [vmem:[#allocation11 + $0x6c] sm:$0xf]
    %v5141 = vld [vmem:[#allocation11 + $0x70] sm:$0xf]
    %v5142 = vld [vmem:[#allocation11 + $0x74] sm:$0xf]
    %v5143 = vld [vmem:[#allocation11 + $0x78] sm:$0xf]
    %v5144 = vld [vmem:[#allocation11 + $0x7c] sm:$0xf]
    %v5145 = vld [vmem:[#allocation11 + $0x80] sm:$0xf]
    %v5146 = vld [vmem:[#allocation11 + $0x84] sm:$0xf]
    %v5147 = vld [vmem:[#allocation11 + $0x88] sm:$0xf]
    %v5148 = vld [vmem:[#allocation11 + $0x8c] sm:$0xf]
    %v5149 = vld [vmem:[#allocation11 + $0x90] sm:$0xf]
    %v5150 = vld [vmem:[#allocation11 + $0x94] sm:$0xf]
    %v5151 = vld [vmem:[#allocation11 + $0x98] sm:$0xf]
    %v5152 = vld [vmem:[#allocation11 + $0x9c] sm:$0xf]
    %v5153 = vld [vmem:[#allocation11 + $0xa0] sm:$0xf]
    %v5154 = vld [vmem:[#allocation11 + $0xa4] sm:$0xf]
    %v5155 = vld [vmem:[#allocation11 + $0xa8] sm:$0xf]
    %v5156 = vld [vmem:[#allocation11 + $0xac] sm:$0xf]
    %v5157 = vld [vmem:[#allocation11 + $0xb0] sm:$0xf]
    %v5158 = vld [vmem:[#allocation11 + $0xb4] sm:$0xf]
    %v5159 = vld [vmem:[#allocation11 + $0xb8] sm:$0xf]
    %v5160 = vld [vmem:[#allocation11 + $0xbc] sm:$0xf]
    %v5161 = vld [vmem:[#allocation11 + $0xc0] sm:$0xf]
    %v5162 = vld [vmem:[#allocation11 + $0xc4] sm:$0xf]
    %v5163 = vld [vmem:[#allocation11 + $0xc8] sm:$0xf]
    %v5164 = vld [vmem:[#allocation11 + $0xcc] sm:$0xf]
    %v5165 = vld [vmem:[#allocation11 + $0xd0] sm:$0xf]
    %v5166 = vld [vmem:[#allocation11 + $0xd4] sm:$0xf]
    %v5167 = vld [vmem:[#allocation11 + $0xd8] sm:$0xf]
    %v5168 = vld [vmem:[#allocation11 + $0xdc] sm:$0xf]
    %v5169 = vld [vmem:[#allocation11 + $0xe0] sm:$0xf]
    %v5170 = vld [vmem:[#allocation11 + $0xe4] sm:$0xf]
    %v5171 = vld [vmem:[#allocation11 + $0xe8] sm:$0xf]
    %v5172 = vld [vmem:[#allocation11 + $0xec] sm:$0xf]
    %v5173 = vld [vmem:[#allocation11 + $0xf0] sm:$0xf]
    %v5174 = vld [vmem:[#allocation11 + $0xf4] sm:$0xf]
    %v5175 = vld [vmem:[#allocation11 + $0xf8] sm:$0xf]
    %v5176 = vld [vmem:[#allocation11 + $0xfc] sm:$0xf]
    %v5177 = vld [vmem:[#allocation12] sm:$0x1]
    %v5179 = vlaneseq
    %v5180 = vshrl.u32 %v5179, 7
    %v5181 = vsub.s32 0, %v5180
    %v5182 = vrot.slane %v5177, %v5181
    %v5248 = vunpack.c.l.b16 %v5113
    %v5249 = vunpack.c.l.b16 %v5114
    %v5250 = vunpack.c.l.b16 %v5115
    %v5251 = vunpack.c.l.b16 %v5116
    %v5252 = vunpack.c.l.b16 %v5117
    %v5253 = vunpack.c.l.b16 %v5118
    %v5254 = vunpack.c.l.b16 %v5119
    %v5255 = vunpack.c.l.b16 %v5120
    %v5256 = vunpack.c.l.b16 %v5121
    %v5257 = vunpack.c.l.b16 %v5122
    %v5258 = vunpack.c.l.b16 %v5123
    %v5259 = vunpack.c.l.b16 %v5124
    %v5260 = vunpack.c.l.b16 %v5125
    %v5261 = vunpack.c.l.b16 %v5126
    %v5262 = vunpack.c.l.b16 %v5127
    %v5263 = vunpack.c.l.b16 %v5128
    %v5264 = vunpack.c.l.b16 %v5129
    %v5265 = vunpack.c.l.b16 %v5130
    %v5266 = vunpack.c.l.b16 %v5131
    %v5267 = vunpack.c.l.b16 %v5132
    %v5268 = vunpack.c.l.b16 %v5133
    %v5269 = vunpack.c.l.b16 %v5134
    %v5270 = vunpack.c.l.b16 %v5135
    %v5271 = vunpack.c.l.b16 %v5136
    %v5272 = vunpack.c.l.b16 %v5137
    %v5273 = vunpack.c.l.b16 %v5138
    %v5274 = vunpack.c.l.b16 %v5139
    %v5275 = vunpack.c.l.b16 %v5140
    %v5276 = vunpack.c.l.b16 %v5141
    %v5277 = vunpack.c.l.b16 %v5142
    %v5278 = vunpack.c.l.b16 %v5143
    %v5279 = vunpack.c.l.b16 %v5144
    %v5280 = vunpack.c.l.b16 %v5145
    %v5281 = vunpack.c.l.b16 %v5146
    %v5282 = vunpack.c.l.b16 %v5147
    %v5283 = vunpack.c.l.b16 %v5148
    %v5284 = vunpack.c.l.b16 %v5149
    %v5285 = vunpack.c.l.b16 %v5150
    %v5286 = vunpack.c.l.b16 %v5151
    %v5287 = vunpack.c.l.b16 %v5152
    %v5288 = vunpack.c.l.b16 %v5153
    %v5289 = vunpack.c.l.b16 %v5154
    %v5290 = vunpack.c.l.b16 %v5155
    %v5291 = vunpack.c.l.b16 %v5156
    %v5292 = vunpack.c.l.b16 %v5157
    %v5293 = vunpack.c.l.b16 %v5158
    %v5294 = vunpack.c.l.b16 %v5159
    %v5295 = vunpack.c.l.b16 %v5160
    %v5296 = vunpack.c.l.b16 %v5161
    %v5297 = vunpack.c.l.b16 %v5162
    %v5298 = vunpack.c.l.b16 %v5163
    %v5299 = vunpack.c.l.b16 %v5164
    %v5300 = vunpack.c.l.b16 %v5165
    %v5301 = vunpack.c.l.b16 %v5166
    %v5302 = vunpack.c.l.b16 %v5167
    %v5303 = vunpack.c.l.b16 %v5168
    %v5304 = vunpack.c.l.b16 %v5169
    %v5305 = vunpack.c.l.b16 %v5170
    %v5306 = vunpack.c.l.b16 %v5171
    %v5307 = vunpack.c.l.b16 %v5172
    %v5308 = vunpack.c.l.b16 %v5173
    %v5309 = vunpack.c.l.b16 %v5174
    %v5310 = vunpack.c.l.b16 %v5175
    %v5311 = vunpack.c.l.b16 %v5176
    %v5312 = vpack.c.b16 %v5249, %v5248
    %v5313 = vpack.c.b16 %v5251, %v5250
    %v5314 = vpack.c.b16 %v5253, %v5252
    %v5315 = vpack.c.b16 %v5255, %v5254
    %v5316 = vpack.c.b16 %v5257, %v5256
    %v5317 = vpack.c.b16 %v5259, %v5258
    %v5318 = vpack.c.b16 %v5261, %v5260
    %v5319 = vpack.c.b16 %v5263, %v5262
    %v5320 = vpack.c.b16 %v5265, %v5264
    %v5321 = vpack.c.b16 %v5267, %v5266
    %v5322 = vpack.c.b16 %v5269, %v5268
    %v5323 = vpack.c.b16 %v5271, %v5270
    %v5324 = vpack.c.b16 %v5273, %v5272
    %v5325 = vpack.c.b16 %v5275, %v5274
    %v5326 = vpack.c.b16 %v5277, %v5276
    %v5327 = vpack.c.b16 %v5279, %v5278
    %v5328 = vpack.c.b16 %v5281, %v5280
    %v5329 = vpack.c.b16 %v5283, %v5282
    %v5330 = vpack.c.b16 %v5285, %v5284
    %v5331 = vpack.c.b16 %v5287, %v5286
    %v5332 = vpack.c.b16 %v5289, %v5288
    %v5333 = vpack.c.b16 %v5291, %v5290
    %v5334 = vpack.c.b16 %v5293, %v5292
    %v5335 = vpack.c.b16 %v5295, %v5294
    %v5336 = vpack.c.b16 %v5297, %v5296
    %v5337 = vpack.c.b16 %v5299, %v5298
    %v5338 = vpack.c.b16 %v5301, %v5300
    %v5339 = vpack.c.b16 %v5303, %v5302
    %v5340 = vpack.c.b16 %v5305, %v5304
    %v5341 = vpack.c.b16 %v5307, %v5306
    %v5342 = vpack.c.b16 %v5309, %v5308
    %v5343 = vpack.c.b16 %v5311, %v5310
    %5376 = vmatprep.subr.bf16.mxu0 0
    %5377 = vmatpush1.bf16.msra.mxu0 %v5312
    %5378 = vmatprep.subr.bf16.mxu0 0
    %5379 = vmatpush1.bf16.msra.mxu0 %v5313
    %5380 = vmatprep.subr.bf16.mxu0 0
    %5381 = vmatpush1.bf16.msra.mxu0 %v5314
    %5382 = vmatprep.subr.bf16.mxu0 0
    %5383 = vmatpush1.bf16.msra.mxu0 %v5315
    %5384 = vmatprep.subr.bf16.mxu0 0
    %5385 = vmatpush1.bf16.msra.mxu0 %v5316
    %5386 = vmatprep.subr.bf16.mxu0 0
    %5387 = vmatpush1.bf16.msra.mxu0 %v5317
    %5388 = vmatprep.subr.bf16.mxu0 0
    %5389 = vmatpush1.bf16.msra.mxu0 %v5318
    %5390 = vmatprep.subr.bf16.mxu0 0
    %5391 = vmatpush1.bf16.msra.mxu0 %v5319
    %5392 = vmatprep.subr.bf16.mxu0 0
    %5393 = vmatpush1.bf16.msra.mxu0 %v5320
    %5394 = vmatprep.subr.bf16.mxu0 0
    %5395 = vmatpush1.bf16.msra.mxu0 %v5321
    %5396 = vmatprep.subr.bf16.mxu0 0
    %5397 = vmatpush1.bf16.msra.mxu0 %v5322
    %5398 = vmatprep.subr.bf16.mxu0 0
    %5399 = vmatpush1.bf16.msra.mxu0 %v5323
    %5400 = vmatprep.subr.bf16.mxu0 0
    %5401 = vmatpush1.bf16.msra.mxu0 %v5324
    %5402 = vmatprep.subr.bf16.mxu0 0
    %5403 = vmatpush1.bf16.msra.mxu0 %v5325
    %5404 = vmatprep.subr.bf16.mxu0 0
    %5405 = vmatpush1.bf16.msra.mxu0 %v5326
    %5406 = vmatprep.subr.bf16.mxu0 0
    %5407 = vmatpush1.bf16.msra.mxu0 %v5327
    %5408 = vmatprep.mubr.bf16.mxu0 %v5110
    %5409 = vmatmul.mubr.bf16.gmra.mrb[0].mxu0 %v5109
    %v5410 = vpop.f32.mrb[0].mxu0
    %v5411 = vadd.f32 %v5182, %v5410
    %v5412 = vpop.f32.mrb[0].mxu0
    %v5413 = vpop.f32.mrb[0].mxu0
    %v5414 = vpop.f32.mrb[0].mxu0
    %5415 = vdwg.mxu0
    %5416 = vmatprep.subr.bf16.mxu0 0
    %5417 = vmatpush1.bf16.msra.mxu0 %v5328
    %5418 = vmatprep.subr.bf16.mxu0 0
    %5419 = vmatpush1.bf16.msra.mxu0 %v5329
    %5420 = vmatprep.subr.bf16.mxu0 0
    %5421 = vmatpush1.bf16.msra.mxu0 %v5330
    %5422 = vmatprep.subr.bf16.mxu0 0
    %5423 = vmatpush1.bf16.msra.mxu0 %v5331
    %5424 = vmatprep.subr.bf16.mxu0 0
    %5425 = vmatpush1.bf16.msra.mxu0 %v5332
    %5426 = vmatprep.subr.bf16.mxu0 0
    %5427 = vmatpush1.bf16.msra.mxu0 %v5333
    %5428 = vmatprep.subr.bf16.mxu0 0
    %5429 = vmatpush1.bf16.msra.mxu0 %v5334
    %5430 = vmatprep.subr.bf16.mxu0 0
    %5431 = vmatpush1.bf16.msra.mxu0 %v5335
    %5432 = vmatprep.subr.bf16.mxu0 0
    %5433 = vmatpush1.bf16.msra.mxu0 %v5336
    %5434 = vmatprep.subr.bf16.mxu0 0
    %5435 = vmatpush1.bf16.msra.mxu0 %v5337
    %5436 = vmatprep.subr.bf16.mxu0 0
    %5437 = vmatpush1.bf16.msra.mxu0 %v5338
    %5438 = vmatprep.subr.bf16.mxu0 0
    %5439 = vmatpush1.bf16.msra.mxu0 %v5339
    %5440 = vmatprep.subr.bf16.mxu0 0
    %5441 = vmatpush1.bf16.msra.mxu0 %v5340
    %5442 = vmatprep.subr.bf16.mxu0 0
    %5443 = vmatpush1.bf16.msra.mxu0 %v5341
    %5444 = vmatprep.subr.bf16.mxu0 0
    %5445 = vmatpush1.bf16.msra.mxu0 %v5342
    %5446 = vmatprep.subr.bf16.mxu0 0
    %5447 = vmatpush1.bf16.msra.mxu0 %v5343
    %5448 = vmatprep.mubr.bf16.mxu0 %v5112
    %5449 = vmatmul.mubr.bf16.gmra.mrb[0].mxu0 %v5111
    %v5450 = vpop.f32.mrb[0].mxu0
    %v5451 = vadd.f32 %v5411, %v5450
    %v5452 = vpop.f32.mrb[0].mxu0
    %v5453 = vpop.f32.mrb[0].mxu0
    %v5454 = vpop.f32.mrb[0].mxu0
    %5455 = vdwg.mxu0
    %v5456 = vmul.f32 %v5451, 0.01
    %v5457 = vmax.f32 %v5451, %v5456
    %v5458 = vld [vmem:[#allocation14] sm:$0x1]
    %v5459 = vunpack.c.l.bf16 %v5458
    %v5460 = vlaneseq
    %v5461 = vshrl.u32 %v5460, 7
    %v5462 = vsub.s32 0, %v5461
    %v5463 = vrot.slane %v5459, %v5462
    %v5464 = vmul.f32 %v5457, %v5463
    %5465 = vadd.xlane.f32.xlu0 %v5464
    %v5466 = vpop.xlane.xlu0 %5465
    %s5467 = sld [smem:[#allocation2]]
    %v5468 = vstv %s5467
    %v5469 = vadd.f32 %v5466, %v5468
    %5470 = vxpose.xlu0.b32.start [1/16] %v5469, 128
    %5471 = vxpose.xlu0.b32.cont [2/16] 0.0, 128
    %5472 = vxpose.xlu0.b32.cont [3/16] 0.0, 128
    %5473 = vxpose.xlu0.b32.cont [4/16] 0.0, 128
    %5474 = vxpose.xlu0.b32.cont [5/16] 0.0, 128
    %5475 = vxpose.xlu0.b32.cont [6/16] 0.0, 128
    %5476 = vxpose.xlu0.b32.cont [7/16] 0.0, 128
    %5477 = vxpose.xlu0.b32.cont [8/16] 0.0, 128
    %5478 = vxpose.xlu0.b32.cont [9/16] 0.0, 128
    %5479 = vxpose.xlu0.b32.cont [10/16] 0.0, 128
    %5480 = vxpose.xlu0.b32.cont [11/16] 0.0, 128
    %5481 = vxpose.xlu0.b32.cont [12/16] 0.0, 128
    %5482 = vxpose.xlu0.b32.cont [13/16] 0.0, 128
    %5483 = vxpose.xlu0.b32.cont [14/16] 0.0, 128
    %5484 = vxpose.xlu0.b32.cont [15/16] 0.0, 128
    %5485 = vxpose.xlu0.b32.end [16/16] 0.0, 128
    %v5486 = vpop.trf.xlu0
    %v5487 = vpop.trf.xlu0
    %v5488 = vpop.trf.xlu0
    %v5489 = vpop.trf.xlu0
    %v5490 = vpop.trf.xlu0
    %v5491 = vpop.trf.xlu0
    %v5492 = vpop.trf.xlu0
    %v5493 = vpop.trf.xlu0
    %v5494 = vpop.trf.xlu0
    %v5495 = vpop.trf.xlu0
    %v5496 = vpop.trf.xlu0
    %v5497 = vpop.trf.xlu0
    %v5498 = vpop.trf.xlu0
    %v5499 = vpop.trf.xlu0
    %v5500 = vpop.trf.xlu0
    %v5501 = vpop.trf.xlu0
    %vm5502 = vcmask 57344
    %5503 = vst.msk [vmem:[#allocation15] sm:$0x1] %vm5502, %v5486
    // Predicated region
    $region66: #{dnn_forward_pallas.1} parent=1 // pred_check
      _
    $region67: #{dnn_forward_pallas.1} parent=1 // pred_check_branch
      %5505 = sbr.rel (0) target = $region69
    $region68: #{dnn_forward_pallas.1} parent=1 // pred_region
      %s5507 = ssub.s32 16, 16
      %5508 = vsyncadd [#allocation5], %s5507
      %s5510 = sshll.u32 [#allocation15], 4
      %s5511 = int_to_ptr.vmem [resolvable:$true] %s5510
      %5513 = dma.vmem_to_hbm [thread:$0]  %s5511, 16, %s9, [#allocation5]
    $region69: #{dnn_forward_pallas.1} parent=1 // pred_fallthru
      _
    // Predicated region
    $region70: #{dnn_forward_pallas.1} parent=1 // pred_check
      _
    $region71: #{dnn_forward_pallas.1} parent=1 // pred_check_branch
      %5515 = sbr.rel (0) target = $region73
    $region72: #{dnn_forward_pallas.1} parent=1 // pred_region
      %5516 = dma.done [#allocation5], 16
    $region73: #{dnn_forward_pallas.1} parent=1 // pred_fallthru
      _
    %5517 = vsyncpa [#allocation4], 1
    %5518 = vsyncpa [#allocation7], 1
    %5519 = vsyncpa [#allocation10], 1
    %5520 = vsyncpa [#allocation13], 1
    %5521 = vsyncpa [#allocation5], 1

</llo_original>
